<compile_context>
chip_gen: v5e
topology: v5e:2x2
jax: 0.10.0
libtpu: 0.0.40
codegen_flags: <defaults>
</compile_context>

<pallas_src>
import functools
import math

import jax
import jax.numpy as jnp
import numpy as np
from jax import lax
from jax.experimental import pallas as pl
from jax.experimental.pallas import tpu as pltpu


# ----------------------------------------------------------------------------
# Fused decoder-layer kernel (one batch element per grid step)
# ----------------------------------------------------------------------------
def fused_decoder_layer_kernel(
    tgt_ref, embs_ref, embs2_ref, conv_ref, tmask_ref, mmask_ref,
    wq_ref, wkvt_ref, wo_ref, bq_ref, bkvt_ref, bo_ref,
    lng_ref, lnb_ref, w1_ref, b1_ref, w2_ref, b2_ref,
    o_ref, *, n_heads, eps):

    D = wq_ref.shape[-1]
    d_k = D // n_heads
    scale = 1.0 / math.sqrt(d_k)
    f32 = jnp.float32
    bf16 = jnp.bfloat16

    def mha(xq, kv, amask, i):
        """Multi-head attention with fused K|V projection in transposed layout."""
        xb = xq.astype(bf16)
        kvb = xb if kv is None else kv.astype(bf16)        # no duplicate cast for self-attn

        # Q in natural (T, D) layout: one wide matmul.
        q = jnp.dot(xb, wq_ref[i], preferred_element_type=f32) + bq_ref[i]
        qb = (q * scale).astype(bf16)

        # K^T | V^T computed directly as a (2D, S) slab with ONE fused matmul
        # (contract feature dims of both operands -> no transposes needed, and
        # per-head slices below are 8-aligned sublane slices = free views).
        kvt = lax.dot_general(wkvt_ref[i], kvb, (((1,), (1,)), ((), ())),
                              preferred_element_type=f32) + bkvt_ref[i]
        kvtb = kvt.astype(bf16)

        heads = []
        for h in range(n_heads):                           # static loop
            qh = qb[:, h * d_k:(h + 1) * d_k]              # (T, d_k)
            kth = kvtb[h * d_k:(h + 1) * d_k, :]           # (d_k, S)  = K_h^T
            vth = kvtb[D + h * d_k:D + (h + 1) * d_k, :]   # (d_k, S)  = V_h^T
            s = jnp.dot(qh, kth, preferred_element_type=f32) + amask       # (T, S)
            m = jnp.max(s, axis=-1, keepdims=True)
            e = jnp.exp(s - m)
            inv = pl.reciprocal(jnp.sum(e, axis=-1, keepdims=True), approx=True)
            p = (e * inv).astype(bf16)                                      # softmax (EUP recip)
            heads.append(lax.dot_general(p, vth, (((1,), (1,)), ((), ())),
                                         preferred_element_type=f32))      # (T, d_k)
        attn = jnp.concatenate(heads, axis=-1).astype(bf16)                 # (T, D)
        return jnp.dot(attn, wo_ref[i], preferred_element_type=f32) + bo_ref[i]

    def add_ln(x_in, y_in, i):
        z = x_in + y_in                                    # residual (+identity dropout)
        mu = jnp.mean(z, axis=-1, keepdims=True)
        ms = jnp.mean(z * z, axis=-1, keepdims=True)       # independent reductions
        var = jnp.maximum(ms - mu * mu, 0.0)
        return (z - mu) * lax.rsqrt(var + eps) * lng_ref[i] + lnb_ref[i]

    def ffn(x_in):
        h = jnp.dot(x_in.astype(bf16), w1_ref[...],
                    preferred_element_type=f32) + b1_ref[...]
        h = jnp.maximum(h, 0.0)                            # ReLU (+identity dropout)
        return jnp.dot(h.astype(bf16), w2_ref[...],
                       preferred_element_type=f32) + b2_ref[...]

    x = tgt_ref[0]                                         # (T, D) f32, resident all layer
    tmask = tmask_ref[...]
    mmask = mmask_ref[...]

    x = add_ln(x, mha(x, None, tmask, 0), 0)               # self-attn   + norm1
    x = add_ln(x, mha(x, embs_ref[0], mmask, 1), 1)        # cross-attn  + norm_cross
    x = add_ln(x, mha(x, embs2_ref[0], mmask, 2), 2)       # cross-attn2 + norm_cross2
    x = add_ln(x, mha(x, conv_ref[0], mmask, 3), 3)        # cross-attn3 + norm_cross3
    x = add_ln(x, ffn(x), 4)                               # ffn + norm3

    o_ref[0] = x.astype(o_ref.dtype)


# ----------------------------------------------------------------------------
# Wrapper: parameter packing (stacked per-attention weights, bf16 MXU operands)
# ----------------------------------------------------------------------------
def _pack_params(params):
    bf = lambda a: a.astype(jnp.bfloat16)
    attn_names = ("self_attn", "cross_attn", "cross_attn2", "cross_attn3")
    wq, bq, wkvt, bkvt, wo, bo = [], [], [], [], [], []
    for n in attn_names:
        wq_, bq_, wk_, bk_, wv_, bv_, wo_, bo_ = params[n]
        wq.append(wq_)
        bq.append(bq_)
        wkvt.append(jnp.concatenate([wk_.T, wv_.T], axis=0))   # (2D, D)
        bkvt.append(jnp.concatenate([bk_.T, bv_.T], axis=0))   # (2D, 1)
        wo.append(wo_)
        bo.append(bo_)
    norm_names = ("norm1", "norm_cross", "norm_cross2", "norm_cross3", "norm3")
    lng = jnp.stack([params[n][0] for n in norm_names])        # (5, 1, D)
    lnb = jnp.stack([params[n][1] for n in norm_names])        # (5, 1, D)
    w1, b1, w2, b2 = params["ffn"]
    return [bf(jnp.stack(wq)), bf(jnp.stack(wkvt)), bf(jnp.stack(wo)),
            jnp.stack(bq), jnp.stack(bkvt), jnp.stack(bo),
            lng, lnb, bf(w1), b1, bf(w2), b2]


def transformer_decoder_layer(tgt, embs, embs2, conv_embs, tgt_mask, memory_mask,
                              params, n_heads, eps=1e-5):
    B, T, D = tgt.shape
    S = embs.shape[1]

    # Additive masks, precomputed once (finite -1e30 -> exp underflows to exact 0).
    tgt_amask = jnp.where(tgt_mask == 0, jnp.float32(-1e30), jnp.float32(0.0))
    mem_amask = jnp.where(memory_mask == 0, jnp.float32(-1e30), jnp.float32(0.0))

    flat_w = _pack_params(params)

    def block_all(arr):
        nd = arr.ndim
        return pl.BlockSpec(arr.shape, lambda b, _nd=nd: (0,) * _nd)

    in_specs = [
        pl.BlockSpec((1, T, D), lambda b: (b, 0, 0)),   # tgt
        pl.BlockSpec((1, S, D), lambda b: (b, 0, 0)),   # embs
        pl.BlockSpec((1, S, D), lambda b: (b, 0, 0)),   # embs2
        pl.BlockSpec((1, S, D), lambda b: (b, 0, 0)),   # conv_embs
        block_all(tgt_amask),
        block_all(mem_amask),
    ] + [block_all(w) for w in flat_w]                  # constant-index weight blocks

    kernel = functools.partial(fused_decoder_layer_kernel, n_heads=n_heads, eps=eps)
    return pl.pallas_call(
        kernel,
        out_shape=jax.ShapeDtypeStruct((B, T, D), tgt.dtype),
        grid=(B,),
        in_specs=in_specs,
        out_specs=pl.BlockSpec((1, T, D), lambda b: (b, 0, 0)),
        compiler_params=pltpu.CompilerParams(
            dimension_semantics=("parallel",),          # v7x: batch split across 2 TCs
        ),
    )(tgt, embs, embs2, conv_embs, tgt_amask, mem_amask, *flat_w)


# ----------------------------------------------------------------------------
# Pure-JAX reference (float32, matches PyTorch semantics)
# ----------------------------------------------------------------------------
def ref_mha(q, kv, mask, params, n_heads):
    wq, bq, wk, bk, wv, bv, wo, bo = params
    B, T, D = q.shape
    S = kv.shape[1]
    d_k = D // n_heads
    Q = (q @ wq + bq).reshape(B, T, n_heads, d_k).transpose(0, 2, 1, 3)
    K = (kv @ wk + bk).reshape(B, S, n_heads, d_k).transpose(0, 2, 1, 3)
    V = (kv @ wv + bv).reshape(B, S, n_heads, d_k).transpose(0, 2, 1, 3)
    s = jnp.einsum("bhtd,bhsd->bhts", Q, K) / math.sqrt(d_k)
    s = jnp.where(mask[None, None] == 0, -jnp.inf, s)
    p = jax.nn.softmax(s, axis=-1)
    a = jnp.einsum("bhts,bhsd->bhtd", p, V).transpose(0, 2, 1, 3).reshape(B, T, D)
    return a @ wo + bo


def ref_add_ln(x, y, gamma, beta, eps=1e-5):
    z = x + y
    m = jnp.mean(z, -1, keepdims=True)
    v = jnp.mean((z - m) ** 2, -1, keepdims=True)
    return (z - m) / jnp.sqrt(v + eps) * gamma + beta


def ref_layer(tgt, embs, embs2, conv_embs, tgt_mask, memory_mask, params, n_heads):
    t2 = ref_mha(tgt, tgt, tgt_mask, params["self_attn"], n_heads)
    tgt = ref_add_ln(tgt, t2, *params["norm1"])
    t2 = ref_mha(tgt, embs, memory_mask, params["cross_attn"], n_heads)
    tgt = ref_add_ln(tgt, t2, *params["norm_cross"])
    t2 = ref_mha(tgt, embs2, memory_mask, params["cross_attn2"], n_heads)
    tgt = ref_add_ln(tgt, t2, *params["norm_cross2"])
    t2 = ref_mha(tgt, conv_embs, memory_mask, params["cross_attn3"], n_heads)
    tgt = ref_add_ln(tgt, t2, *params["norm_cross3"])
    w1, b1, w2, b2 = params["ffn"]
    t2 = jnp.maximum(tgt @ w1 + b1, 0.0) @ w2 + b2
    return ref_add_ln(tgt, t2, *params["norm3"])


# ----------------------------------------------------------------------------
# Deterministic parameter construction
# ----------------------------------------------------------------------------
def make_params(key, embed_dim, ffn_dim):
    keys = iter(jax.random.split(key, 64))

    def lin(din, dout):
        w = jax.random.normal(next(keys), (din, dout), jnp.float32) * 0.05
        b = jax.random.normal(next(keys), (1, dout), jnp.float32) * 0.02
        return w, b

    def attn():
        wq, bq = lin(embed_dim, embed_dim)
        wk, bk = lin(embed_dim, embed_dim)
        wv, bv = lin(embed_dim, embed_dim)
        wo, bo = lin(embed_dim, embed_dim)
        return (wq, bq, wk, bk, wv, bv, wo, bo)

    def ln():
        g = 1.0 + jax.random.normal(next(keys), (1, embed_dim), jnp.float32) * 0.01
        b = jax.random.normal(next(keys), (1, embed_dim), jnp.float32) * 0.01
        return (g, b)

    w1, b1 = lin(embed_dim, ffn_dim)
    w2, b2 = lin(ffn_dim, embed_dim)
    return {
        "self_attn": attn(), "norm1": ln(),
        "cross_attn": attn(), "norm_cross": ln(),
        "cross_attn2": attn(), "norm_cross2": ln(),
        "cross_attn3": attn(), "norm_cross3": ln(),
        "ffn": (w1, b1, w2, b2), "norm3": ln(),
    }


# ----------------------------------------------------------------------------
if __name__ == "__main__":
    B, T, S = 2, 8, 10          # batch, target seq, memory seq
    D, H, F = 32, 4, 64         # embed_dim, n_heads, ffn_dim

    key = jax.random.PRNGKey(0)
    k_tgt, k_e1, k_e2, k_e3, k_par = jax.random.split(key, 5)

    tgt = jax.random.normal(k_tgt, (B, T, D), jnp.float32)
    embs = jax.random.normal(k_e1, (B, S, D), jnp.float32)
    embs2 = jax.random.normal(k_e2, (B, S, D), jnp.float32)
    conv_embs = jax.random.normal(k_e3, (B, S, D), jnp.float32)

    # causal target mask; all-ones memory mask (== no masking)
    tgt_mask = jnp.tril(jnp.ones((T, T), jnp.float32))
    memory_mask = jnp.ones((T, S), jnp.float32)

    params = make_params(k_par, D, F)

    out = transformer_decoder_layer(tgt, embs, embs2, conv_embs,
                                    tgt_mask, memory_mask, params, H)
    out = jax.block_until_ready(out)

    ref = ref_layer(tgt, embs, embs2, conv_embs, tgt_mask, memory_mask, params, H)
    # bf16 MXU operands with f32 accumulation + approx reciprocal -> loose tolerance.
    np.testing.assert_allclose(np.asarray(out), np.asarray(ref), rtol=3e-2, atol=3e-2)

    print("KERNEL_OK")
</pallas_src>

<mosaic_0001>
module attributes {stable_mosaic.version = 11 : i64} {
  func.func @fused_decoder_layer_kernel(%arg0: i32, %arg1: memref<1x8x32xf32, #tpu.memory_space<vmem>>, %arg2: memref<1x10x32xf32, #tpu.memory_space<vmem>>, %arg3: memref<1x10x32xf32, #tpu.memory_space<vmem>>, %arg4: memref<1x10x32xf32, #tpu.memory_space<vmem>>, %arg5: memref<8x8xf32, #tpu.memory_space<vmem>>, %arg6: memref<8x10xf32, #tpu.memory_space<vmem>>, %arg7: memref<4x32x32xbf16, #tpu.memory_space<vmem>>, %arg8: memref<4x64x32xbf16, #tpu.memory_space<vmem>>, %arg9: memref<4x32x32xbf16, #tpu.memory_space<vmem>>, %arg10: memref<4x1x32xf32, #tpu.memory_space<vmem>>, %arg11: memref<4x64x1xf32, #tpu.memory_space<vmem>>, %arg12: memref<4x1x32xf32, #tpu.memory_space<vmem>>, %arg13: memref<5x1x32xf32, #tpu.memory_space<vmem>>, %arg14: memref<5x1x32xf32, #tpu.memory_space<vmem>>, %arg15: memref<32x64xbf16, #tpu.memory_space<vmem>>, %arg16: memref<1x64xf32, #tpu.memory_space<vmem>>, %arg17: memref<64x32xbf16, #tpu.memory_space<vmem>>, %arg18: memref<1x32xf32, #tpu.memory_space<vmem>>, %arg19: memref<1x8x32xf32, #tpu.memory_space<vmem>>) attributes {dimension_semantics = [#tpu.dimension_semantics<parallel>], iteration_bounds = array<i64: 2>, scalar_prefetch = 0 : i64, scratch_operands = 0 : i64, tpu.core_type = #tpu.core_type<tc>, window_params = [{transform_indices = @transform_0, window_bounds = array<i64: 1, 8, 32>}, {transform_indices = @transform_1, window_bounds = array<i64: 1, 10, 32>}, {transform_indices = @transform_2, window_bounds = array<i64: 1, 10, 32>}, {transform_indices = @transform_3, window_bounds = array<i64: 1, 10, 32>}, {pipeline_mode = #tpu.pipeline_mode<synchronous>, transform_indices = @transform_4, window_bounds = array<i64: 8, 8>}, {pipeline_mode = #tpu.pipeline_mode<synchronous>, transform_indices = @transform_5, window_bounds = array<i64: 8, 10>}, {pipeline_mode = #tpu.pipeline_mode<synchronous>, transform_indices = @transform_6, window_bounds = array<i64: 4, 32, 32>}, {pipeline_mode = #tpu.pipeline_mode<synchronous>, transform_indices = @transform_7, window_bounds = array<i64: 4, 64, 32>}, {pipeline_mode = #tpu.pipeline_mode<synchronous>, transform_indices = @transform_8, window_bounds = array<i64: 4, 32, 32>}, {pipeline_mode = #tpu.pipeline_mode<synchronous>, transform_indices = @transform_9, window_bounds = array<i64: 4, 1, 32>}, {pipeline_mode = #tpu.pipeline_mode<synchronous>, transform_indices = @transform_10, window_bounds = array<i64: 4, 64, 1>}, {pipeline_mode = #tpu.pipeline_mode<synchronous>, transform_indices = @transform_11, window_bounds = array<i64: 4, 1, 32>}, {pipeline_mode = #tpu.pipeline_mode<synchronous>, transform_indices = @transform_12, window_bounds = array<i64: 5, 1, 32>}, {pipeline_mode = #tpu.pipeline_mode<synchronous>, transform_indices = @transform_13, window_bounds = array<i64: 5, 1, 32>}, {pipeline_mode = #tpu.pipeline_mode<synchronous>, transform_indices = @transform_14, window_bounds = array<i64: 32, 64>}, {pipeline_mode = #tpu.pipeline_mode<synchronous>, transform_indices = @transform_15, window_bounds = array<i64: 1, 64>}, {pipeline_mode = #tpu.pipeline_mode<synchronous>, transform_indices = @transform_16, window_bounds = array<i64: 64, 32>}, {pipeline_mode = #tpu.pipeline_mode<synchronous>, transform_indices = @transform_17, window_bounds = array<i64: 1, 32>}, {transform_indices = @transform_18, window_bounds = array<i64: 1, 8, 32>}]} {
    %c0 = arith.constant 0 : index
    %c0_0 = arith.constant 0 : index
    %c0_1 = arith.constant 0 : index
    %0 = vector.load %arg1[%c0, %c0_0, %c0_1] : memref<1x8x32xf32, #tpu.memory_space<vmem>>, vector<1x8x32xf32>
    %1 = vector.shape_cast %0 : vector<1x8x32xf32> to vector<8x32xf32>
    %c0_2 = arith.constant 0 : index
    %c0_3 = arith.constant 0 : index
    %2 = vector.load %arg5[%c0_2, %c0_3] : memref<8x8xf32, #tpu.memory_space<vmem>>, vector<8x8xf32>
    %c0_4 = arith.constant 0 : index
    %c0_5 = arith.constant 0 : index
    %3 = vector.load %arg6[%c0_4, %c0_5] : memref<8x10xf32, #tpu.memory_space<vmem>>, vector<8x10xf32>
    %4 = arith.truncf %1 : vector<8x32xf32> to vector<8x32xbf16>
    %c0_6 = arith.constant 0 : index
    %c0_7 = arith.constant 0 : index
    %c0_8 = arith.constant 0 : index
    %5 = vector.load %arg7[%c0_6, %c0_7, %c0_8] : memref<4x32x32xbf16, #tpu.memory_space<vmem>>, vector<1x32x32xbf16>
    %6 = vector.shape_cast %5 : vector<1x32x32xbf16> to vector<32x32xbf16>
    %cst = arith.constant dense<0.000000e+00> : vector<8x32xf32>
    %7 = tpu.matmul %4, %6, %cst {dimension_numbers = #tpu.dot_dimension_numbers<[1], [0], [0], [1], [0, 0, 1, 1], [], []>} : vector<8x32xbf16>, vector<32x32xbf16>, vector<8x32xf32> -> vector<8x32xf32>
    %c0_9 = arith.constant 0 : index
    %c0_10 = arith.constant 0 : index
    %c0_11 = arith.constant 0 : index
    %8 = vector.load %arg10[%c0_9, %c0_10, %c0_11] : memref<4x1x32xf32, #tpu.memory_space<vmem>>, vector<1x1x32xf32>
    %9 = vector.shape_cast %8 : vector<1x1x32xf32> to vector<1x32xf32>
    %10 = vector.broadcast %9 : vector<1x32xf32> to vector<8x32xf32>
    %11 = arith.addf %7, %10 : vector<8x32xf32>
    %cst_12 = arith.constant 0.353553385 : f32
    %12 = vector.broadcast %cst_12 : f32 to vector<8x32xf32>
    %13 = arith.mulf %11, %12 : vector<8x32xf32>
    %14 = arith.truncf %13 : vector<8x32xf32> to vector<8x32xbf16>
    %c0_13 = arith.constant 0 : index
    %c0_14 = arith.constant 0 : index
    %c0_15 = arith.constant 0 : index
    %15 = vector.load %arg8[%c0_13, %c0_14, %c0_15] : memref<4x64x32xbf16, #tpu.memory_space<vmem>>, vector<1x64x32xbf16>
    %16 = vector.shape_cast %15 : vector<1x64x32xbf16> to vector<64x32xbf16>
    %cst_16 = arith.constant dense<0.000000e+00> : vector<64x8xf32>
    %17 = tpu.matmul %16, %4, %cst_16 {dimension_numbers = #tpu.dot_dimension_numbers<[1], [1], [0], [0], [0, 0, 1, 0], [], []>} : vector<64x32xbf16>, vector<8x32xbf16>, vector<64x8xf32> -> vector<64x8xf32>
    %c0_17 = arith.constant 0 : index
    %c0_18 = arith.constant 0 : index
    %c0_19 = arith.constant 0 : index
    %18 = vector.load %arg11[%c0_17, %c0_18, %c0_19] : memref<4x64x1xf32, #tpu.memory_space<vmem>>, vector<1x64x1xf32>
    %19 = vector.shape_cast %18 : vector<1x64x1xf32> to vector<64x1xf32>
    %20 = vector.broadcast %19 : vector<64x1xf32> to vector<64x8xf32>
    %21 = arith.addf %17, %20 : vector<64x8xf32>
    %22 = arith.truncf %21 : vector<64x8xf32> to vector<64x8xbf16>
    %23 = vector.extract_strided_slice %14 {offsets = [0, 0], sizes = [8, 8], strides = [1, 1]} : vector<8x32xbf16> to vector<8x8xbf16>
    %24 = vector.extract_strided_slice %22 {offsets = [0, 0], sizes = [8, 8], strides = [1, 1]} : vector<64x8xbf16> to vector<8x8xbf16>
    %25 = vector.extract_strided_slice %22 {offsets = [32, 0], sizes = [8, 8], strides = [1, 1]} : vector<64x8xbf16> to vector<8x8xbf16>
    %cst_20 = arith.constant dense<0.000000e+00> : vector<8x8xf32>
    %26 = tpu.matmul %23, %24, %cst_20 {dimension_numbers = #tpu.dot_dimension_numbers<[1], [0], [0], [1], [0, 0, 1, 1], [], []>} : vector<8x8xbf16>, vector<8x8xbf16>, vector<8x8xf32> -> vector<8x8xf32>
    %27 = arith.addf %26, %2 : vector<8x8xf32>
    %cst_21 = arith.constant dense<0xFF800000> : vector<8xf32>
    %28 = vector.multi_reduction <maximumf>, %27, %cst_21 [1] : vector<8x8xf32> to vector<8xf32>
    %29 = vector.shape_cast %28 : vector<8xf32> to vector<8x1xf32>
    %30 = vector.broadcast %29 : vector<8x1xf32> to vector<8x8xf32>
    %31 = arith.subf %27, %30 : vector<8x8xf32>
    %32 = math.exp %31 : vector<8x8xf32>
    %cst_22 = arith.constant dense<0.000000e+00> : vector<8xf32>
    %33 = vector.multi_reduction <add>, %32, %cst_22 [1] : vector<8x8xf32> to vector<8xf32>
    %34 = vector.shape_cast %33 : vector<8xf32> to vector<8x1xf32>
    %35 = tpu.reciprocal %34 {approx = true} : vector<8x1xf32> -> vector<8x1xf32>
    %36 = vector.broadcast %35 : vector<8x1xf32> to vector<8x8xf32>
    %37 = arith.mulf %32, %36 : vector<8x8xf32>
    %38 = arith.truncf %37 : vector<8x8xf32> to vector<8x8xbf16>
    %cst_23 = arith.constant dense<0.000000e+00> : vector<8x8xf32>
    %39 = tpu.matmul %38, %25, %cst_23 {dimension_numbers = #tpu.dot_dimension_numbers<[1], [1], [0], [0], [0, 0, 1, 0], [], []>} : vector<8x8xbf16>, vector<8x8xbf16>, vector<8x8xf32> -> vector<8x8xf32>
    %40 = vector.extract_strided_slice %14 {offsets = [0, 8], sizes = [8, 8], strides = [1, 1]} : vector<8x32xbf16> to vector<8x8xbf16>
    %41 = vector.extract_strided_slice %22 {offsets = [8, 0], sizes = [8, 8], strides = [1, 1]} : vector<64x8xbf16> to vector<8x8xbf16>
    %42 = vector.extract_strided_slice %22 {offsets = [40, 0], sizes = [8, 8], strides = [1, 1]} : vector<64x8xbf16> to vector<8x8xbf16>
    %cst_24 = arith.constant dense<0.000000e+00> : vector<8x8xf32>
    %43 = tpu.matmul %40, %41, %cst_24 {dimension_numbers = #tpu.dot_dimension_numbers<[1], [0], [0], [1], [0, 0, 1, 1], [], []>} : vector<8x8xbf16>, vector<8x8xbf16>, vector<8x8xf32> -> vector<8x8xf32>
    %44 = arith.addf %43, %2 : vector<8x8xf32>
    %cst_25 = arith.constant dense<0xFF800000> : vector<8xf32>
    %45 = vector.multi_reduction <maximumf>, %44, %cst_25 [1] : vector<8x8xf32> to vector<8xf32>
    %46 = vector.shape_cast %45 : vector<8xf32> to vector<8x1xf32>
    %47 = vector.broadcast %46 : vector<8x1xf32> to vector<8x8xf32>
    %48 = arith.subf %44, %47 : vector<8x8xf32>
    %49 = math.exp %48 : vector<8x8xf32>
    %cst_26 = arith.constant dense<0.000000e+00> : vector<8xf32>
    %50 = vector.multi_reduction <add>, %49, %cst_26 [1] : vector<8x8xf32> to vector<8xf32>
    %51 = vector.shape_cast %50 : vector<8xf32> to vector<8x1xf32>
    %52 = tpu.reciprocal %51 {approx = true} : vector<8x1xf32> -> vector<8x1xf32>
    %53 = vector.broadcast %52 : vector<8x1xf32> to vector<8x8xf32>
    %54 = arith.mulf %49, %53 : vector<8x8xf32>
    %55 = arith.truncf %54 : vector<8x8xf32> to vector<8x8xbf16>
    %cst_27 = arith.constant dense<0.000000e+00> : vector<8x8xf32>
    %56 = tpu.matmul %55, %42, %cst_27 {dimension_numbers = #tpu.dot_dimension_numbers<[1], [1], [0], [0], [0, 0, 1, 0], [], []>} : vector<8x8xbf16>, vector<8x8xbf16>, vector<8x8xf32> -> vector<8x8xf32>
    %57 = vector.extract_strided_slice %14 {offsets = [0, 16], sizes = [8, 8], strides = [1, 1]} : vector<8x32xbf16> to vector<8x8xbf16>
    %58 = vector.extract_strided_slice %22 {offsets = [16, 0], sizes = [8, 8], strides = [1, 1]} : vector<64x8xbf16> to vector<8x8xbf16>
    %59 = vector.extract_strided_slice %22 {offsets = [48, 0], sizes = [8, 8], strides = [1, 1]} : vector<64x8xbf16> to vector<8x8xbf16>
    %cst_28 = arith.constant dense<0.000000e+00> : vector<8x8xf32>
    %60 = tpu.matmul %57, %58, %cst_28 {dimension_numbers = #tpu.dot_dimension_numbers<[1], [0], [0], [1], [0, 0, 1, 1], [], []>} : vector<8x8xbf16>, vector<8x8xbf16>, vector<8x8xf32> -> vector<8x8xf32>
    %61 = arith.addf %60, %2 : vector<8x8xf32>
    %cst_29 = arith.constant dense<0xFF800000> : vector<8xf32>
    %62 = vector.multi_reduction <maximumf>, %61, %cst_29 [1] : vector<8x8xf32> to vector<8xf32>
    %63 = vector.shape_cast %62 : vector<8xf32> to vector<8x1xf32>
    %64 = vector.broadcast %63 : vector<8x1xf32> to vector<8x8xf32>
    %65 = arith.subf %61, %64 : vector<8x8xf32>
    %66 = math.exp %65 : vector<8x8xf32>
    %cst_30 = arith.constant dense<0.000000e+00> : vector<8xf32>
    %67 = vector.multi_reduction <add>, %66, %cst_30 [1] : vector<8x8xf32> to vector<8xf32>
    %68 = vector.shape_cast %67 : vector<8xf32> to vector<8x1xf32>
    %69 = tpu.reciprocal %68 {approx = true} : vector<8x1xf32> -> vector<8x1xf32>
    %70 = vector.broadcast %69 : vector<8x1xf32> to vector<8x8xf32>
    %71 = arith.mulf %66, %70 : vector<8x8xf32>
    %72 = arith.truncf %71 : vector<8x8xf32> to vector<8x8xbf16>
    %cst_31 = arith.constant dense<0.000000e+00> : vector<8x8xf32>
    %73 = tpu.matmul %72, %59, %cst_31 {dimension_numbers = #tpu.dot_dimension_numbers<[1], [1], [0], [0], [0, 0, 1, 0], [], []>} : vector<8x8xbf16>, vector<8x8xbf16>, vector<8x8xf32> -> vector<8x8xf32>
    %74 = vector.extract_strided_slice %14 {offsets = [0, 24], sizes = [8, 8], strides = [1, 1]} : vector<8x32xbf16> to vector<8x8xbf16>
    %75 = vector.extract_strided_slice %22 {offsets = [24, 0], sizes = [8, 8], strides = [1, 1]} : vector<64x8xbf16> to vector<8x8xbf16>
    %76 = vector.extract_strided_slice %22 {offsets = [56, 0], sizes = [8, 8], strides = [1, 1]} : vector<64x8xbf16> to vector<8x8xbf16>
    %cst_32 = arith.constant dense<0.000000e+00> : vector<8x8xf32>
    %77 = tpu.matmul %74, %75, %cst_32 {dimension_numbers = #tpu.dot_dimension_numbers<[1], [0], [0], [1], [0, 0, 1, 1], [], []>} : vector<8x8xbf16>, vector<8x8xbf16>, vector<8x8xf32> -> vector<8x8xf32>
    %78 = arith.addf %77, %2 : vector<8x8xf32>
    %cst_33 = arith.constant dense<0xFF800000> : vector<8xf32>
    %79 = vector.multi_reduction <maximumf>, %78, %cst_33 [1] : vector<8x8xf32> to vector<8xf32>
    %80 = vector.shape_cast %79 : vector<8xf32> to vector<8x1xf32>
    %81 = vector.broadcast %80 : vector<8x1xf32> to vector<8x8xf32>
    %82 = arith.subf %78, %81 : vector<8x8xf32>
    %83 = math.exp %82 : vector<8x8xf32>
    %cst_34 = arith.constant dense<0.000000e+00> : vector<8xf32>
    %84 = vector.multi_reduction <add>, %83, %cst_34 [1] : vector<8x8xf32> to vector<8xf32>
    %85 = vector.shape_cast %84 : vector<8xf32> to vector<8x1xf32>
    %86 = tpu.reciprocal %85 {approx = true} : vector<8x1xf32> -> vector<8x1xf32>
    %87 = vector.broadcast %86 : vector<8x1xf32> to vector<8x8xf32>
    %88 = arith.mulf %83, %87 : vector<8x8xf32>
    %89 = arith.truncf %88 : vector<8x8xf32> to vector<8x8xbf16>
    %cst_35 = arith.constant dense<0.000000e+00> : vector<8x8xf32>
    %90 = tpu.matmul %89, %76, %cst_35 {dimension_numbers = #tpu.dot_dimension_numbers<[1], [1], [0], [0], [0, 0, 1, 0], [], []>} : vector<8x8xbf16>, vector<8x8xbf16>, vector<8x8xf32> -> vector<8x8xf32>
    %91 = tpu.concatenate %39, %56, %73, %90 in 1 : vector<8x8xf32>, vector<8x8xf32>, vector<8x8xf32>, vector<8x8xf32> -> vector<8x32xf32>
    %92 = arith.truncf %91 : vector<8x32xf32> to vector<8x32xbf16>
    %c0_36 = arith.constant 0 : index
    %c0_37 = arith.constant 0 : index
    %c0_38 = arith.constant 0 : index
    %93 = vector.load %arg9[%c0_36, %c0_37, %c0_38] : memref<4x32x32xbf16, #tpu.memory_space<vmem>>, vector<1x32x32xbf16>
    %94 = vector.shape_cast %93 : vector<1x32x32xbf16> to vector<32x32xbf16>
    %cst_39 = arith.constant dense<0.000000e+00> : vector<8x32xf32>
    %95 = tpu.matmul %92, %94, %cst_39 {dimension_numbers = #tpu.dot_dimension_numbers<[1], [0], [0], [1], [0, 0, 1, 1], [], []>} : vector<8x32xbf16>, vector<32x32xbf16>, vector<8x32xf32> -> vector<8x32xf32>
    %c0_40 = arith.constant 0 : index
    %c0_41 = arith.constant 0 : index
    %c0_42 = arith.constant 0 : index
    %96 = vector.load %arg12[%c0_40, %c0_41, %c0_42] : memref<4x1x32xf32, #tpu.memory_space<vmem>>, vector<1x1x32xf32>
    %97 = vector.shape_cast %96 : vector<1x1x32xf32> to vector<1x32xf32>
    %98 = vector.broadcast %97 : vector<1x32xf32> to vector<8x32xf32>
    %99 = arith.addf %95, %98 : vector<8x32xf32>
    %100 = arith.addf %1, %99 : vector<8x32xf32>
    %cst_43 = arith.constant dense<0.000000e+00> : vector<8xf32>
    %101 = vector.multi_reduction <add>, %100, %cst_43 [1] : vector<8x32xf32> to vector<8xf32>
    %102 = vector.shape_cast %101 : vector<8xf32> to vector<8x1xf32>
    %cst_44 = arith.constant 3.200000e+01 : f32
    %103 = vector.broadcast %cst_44 : f32 to vector<8x1xf32>
    %104 = arith.divf %102, %103 : vector<8x1xf32>
    %105 = arith.mulf %100, %100 : vector<8x32xf32>
    %cst_45 = arith.constant dense<0.000000e+00> : vector<8xf32>
    %106 = vector.multi_reduction <add>, %105, %cst_45 [1] : vector<8x32xf32> to vector<8xf32>
    %107 = vector.shape_cast %106 : vector<8xf32> to vector<8x1xf32>
    %cst_46 = arith.constant 3.200000e+01 : f32
    %108 = vector.broadcast %cst_46 : f32 to vector<8x1xf32>
    %109 = arith.divf %107, %108 : vector<8x1xf32>
    %110 = arith.mulf %104, %104 : vector<8x1xf32>
    %111 = arith.subf %109, %110 : vector<8x1xf32>
    %cst_47 = arith.constant 0.000000e+00 : f32
    %112 = vector.broadcast %cst_47 : f32 to vector<8x1xf32>
    %113 = arith.maximumf %111, %112 : vector<8x1xf32>
    %114 = vector.broadcast %104 : vector<8x1xf32> to vector<8x32xf32>
    %115 = arith.subf %100, %114 : vector<8x32xf32>
    %cst_48 = arith.constant 9.99999974E-6 : f32
    %116 = vector.broadcast %cst_48 : f32 to vector<8x1xf32>
    %117 = arith.addf %113, %116 : vector<8x1xf32>
    %118 = math.rsqrt %117 : vector<8x1xf32>
    %119 = vector.broadcast %118 : vector<8x1xf32> to vector<8x32xf32>
    %120 = arith.mulf %115, %119 : vector<8x32xf32>
    %c0_49 = arith.constant 0 : index
    %c0_50 = arith.constant 0 : index
    %c0_51 = arith.constant 0 : index
    %121 = vector.load %arg13[%c0_49, %c0_50, %c0_51] : memref<5x1x32xf32, #tpu.memory_space<vmem>>, vector<1x1x32xf32>
    %122 = vector.shape_cast %121 : vector<1x1x32xf32> to vector<1x32xf32>
    %123 = vector.broadcast %122 : vector<1x32xf32> to vector<8x32xf32>
    %124 = arith.mulf %120, %123 : vector<8x32xf32>
    %c0_52 = arith.constant 0 : index
    %c0_53 = arith.constant 0 : index
    %c0_54 = arith.constant 0 : index
    %125 = vector.load %arg14[%c0_52, %c0_53, %c0_54] : memref<5x1x32xf32, #tpu.memory_space<vmem>>, vector<1x1x32xf32>
    %126 = vector.shape_cast %125 : vector<1x1x32xf32> to vector<1x32xf32>
    %127 = vector.broadcast %126 : vector<1x32xf32> to vector<8x32xf32>
    %128 = arith.addf %124, %127 : vector<8x32xf32>
    %c0_55 = arith.constant 0 : index
    %c0_56 = arith.constant 0 : index
    %c0_57 = arith.constant 0 : index
    %129 = vector.load %arg2[%c0_55, %c0_56, %c0_57] : memref<1x10x32xf32, #tpu.memory_space<vmem>>, vector<1x10x32xf32>
    %130 = vector.shape_cast %129 : vector<1x10x32xf32> to vector<10x32xf32>
    %131 = arith.truncf %128 : vector<8x32xf32> to vector<8x32xbf16>
    %132 = arith.truncf %130 : vector<10x32xf32> to vector<10x32xbf16>
    %c1 = arith.constant 1 : index
    %c0_58 = arith.constant 0 : index
    %c0_59 = arith.constant 0 : index
    %133 = vector.load %arg7[%c1, %c0_58, %c0_59] : memref<4x32x32xbf16, #tpu.memory_space<vmem>>, vector<1x32x32xbf16>
    %134 = vector.shape_cast %133 : vector<1x32x32xbf16> to vector<32x32xbf16>
    %cst_60 = arith.constant dense<0.000000e+00> : vector<8x32xf32>
    %135 = tpu.matmul %131, %134, %cst_60 {dimension_numbers = #tpu.dot_dimension_numbers<[1], [0], [0], [1], [0, 0, 1, 1], [], []>} : vector<8x32xbf16>, vector<32x32xbf16>, vector<8x32xf32> -> vector<8x32xf32>
    %c1_61 = arith.constant 1 : index
    %c0_62 = arith.constant 0 : index
    %c0_63 = arith.constant 0 : index
    %136 = vector.load %arg10[%c1_61, %c0_62, %c0_63] : memref<4x1x32xf32, #tpu.memory_space<vmem>>, vector<1x1x32xf32>
    %137 = vector.shape_cast %136 : vector<1x1x32xf32> to vector<1x32xf32>
    %138 = vector.broadcast %137 : vector<1x32xf32> to vector<8x32xf32>
    %139 = arith.addf %135, %138 : vector<8x32xf32>
    %cst_64 = arith.constant 0.353553385 : f32
    %140 = vector.broadcast %cst_64 : f32 to vector<8x32xf32>
    %141 = arith.mulf %139, %140 : vector<8x32xf32>
    %142 = arith.truncf %141 : vector<8x32xf32> to vector<8x32xbf16>
    %c1_65 = arith.constant 1 : index
    %c0_66 = arith.constant 0 : index
    %c0_67 = arith.constant 0 : index
    %143 = vector.load %arg8[%c1_65, %c0_66, %c0_67] : memref<4x64x32xbf16, #tpu.memory_space<vmem>>, vector<1x64x32xbf16>
    %144 = vector.shape_cast %143 : vector<1x64x32xbf16> to vector<64x32xbf16>
    %cst_68 = arith.constant dense<0.000000e+00> : vector<64x10xf32>
    %145 = tpu.matmul %144, %132, %cst_68 {dimension_numbers = #tpu.dot_dimension_numbers<[1], [1], [0], [0], [0, 0, 1, 0], [], []>} : vector<64x32xbf16>, vector<10x32xbf16>, vector<64x10xf32> -> vector<64x10xf32>
    %c1_69 = arith.constant 1 : index
    %c0_70 = arith.constant 0 : index
    %c0_71 = arith.constant 0 : index
    %146 = vector.load %arg11[%c1_69, %c0_70, %c0_71] : memref<4x64x1xf32, #tpu.memory_space<vmem>>, vector<1x64x1xf32>
    %147 = vector.shape_cast %146 : vector<1x64x1xf32> to vector<64x1xf32>
    %148 = vector.broadcast %147 : vector<64x1xf32> to vector<64x10xf32>
    %149 = arith.addf %145, %148 : vector<64x10xf32>
    %150 = arith.truncf %149 : vector<64x10xf32> to vector<64x10xbf16>
    %151 = vector.extract_strided_slice %142 {offsets = [0, 0], sizes = [8, 8], strides = [1, 1]} : vector<8x32xbf16> to vector<8x8xbf16>
    %152 = vector.extract_strided_slice %150 {offsets = [0, 0], sizes = [8, 10], strides = [1, 1]} : vector<64x10xbf16> to vector<8x10xbf16>
    %153 = vector.extract_strided_slice %150 {offsets = [32, 0], sizes = [8, 10], strides = [1, 1]} : vector<64x10xbf16> to vector<8x10xbf16>
    %cst_72 = arith.constant dense<0.000000e+00> : vector<8x10xf32>
    %154 = tpu.matmul %151, %152, %cst_72 {dimension_numbers = #tpu.dot_dimension_numbers<[1], [0], [0], [1], [0, 0, 1, 1], [], []>} : vector<8x8xbf16>, vector<8x10xbf16>, vector<8x10xf32> -> vector<8x10xf32>
    %155 = arith.addf %154, %3 : vector<8x10xf32>
    %cst_73 = arith.constant dense<0xFF800000> : vector<8xf32>
    %156 = vector.multi_reduction <maximumf>, %155, %cst_73 [1] : vector<8x10xf32> to vector<8xf32>
    %157 = vector.shape_cast %156 : vector<8xf32> to vector<8x1xf32>
    %158 = vector.broadcast %157 : vector<8x1xf32> to vector<8x10xf32>
    %159 = arith.subf %155, %158 : vector<8x10xf32>
    %160 = math.exp %159 : vector<8x10xf32>
    %cst_74 = arith.constant dense<0.000000e+00> : vector<8xf32>
    %161 = vector.multi_reduction <add>, %160, %cst_74 [1] : vector<8x10xf32> to vector<8xf32>
    %162 = vector.shape_cast %161 : vector<8xf32> to vector<8x1xf32>
    %163 = tpu.reciprocal %162 {approx = true} : vector<8x1xf32> -> vector<8x1xf32>
    %164 = vector.broadcast %163 : vector<8x1xf32> to vector<8x10xf32>
    %165 = arith.mulf %160, %164 : vector<8x10xf32>
    %166 = arith.truncf %165 : vector<8x10xf32> to vector<8x10xbf16>
    %cst_75 = arith.constant dense<0.000000e+00> : vector<8x8xf32>
    %167 = tpu.matmul %166, %153, %cst_75 {dimension_numbers = #tpu.dot_dimension_numbers<[1], [1], [0], [0], [0, 0, 1, 0], [], []>} : vector<8x10xbf16>, vector<8x10xbf16>, vector<8x8xf32> -> vector<8x8xf32>
    %168 = vector.extract_strided_slice %142 {offsets = [0, 8], sizes = [8, 8], strides = [1, 1]} : vector<8x32xbf16> to vector<8x8xbf16>
    %169 = vector.extract_strided_slice %150 {offsets = [8, 0], sizes = [8, 10], strides = [1, 1]} : vector<64x10xbf16> to vector<8x10xbf16>
    %170 = vector.extract_strided_slice %150 {offsets = [40, 0], sizes = [8, 10], strides = [1, 1]} : vector<64x10xbf16> to vector<8x10xbf16>
    %cst_76 = arith.constant dense<0.000000e+00> : vector<8x10xf32>
    %171 = tpu.matmul %168, %169, %cst_76 {dimension_numbers = #tpu.dot_dimension_numbers<[1], [0], [0], [1], [0, 0, 1, 1], [], []>} : vector<8x8xbf16>, vector<8x10xbf16>, vector<8x10xf32> -> vector<8x10xf32>
    %172 = arith.addf %171, %3 : vector<8x10xf32>
    %cst_77 = arith.constant dense<0xFF800000> : vector<8xf32>
    %173 = vector.multi_reduction <maximumf>, %172, %cst_77 [1] : vector<8x10xf32> to vector<8xf32>
    %174 = vector.shape_cast %173 : vector<8xf32> to vector<8x1xf32>
    %175 = vector.broadcast %174 : vector<8x1xf32> to vector<8x10xf32>
    %176 = arith.subf %172, %175 : vector<8x10xf32>
    %177 = math.exp %176 : vector<8x10xf32>
    %cst_78 = arith.constant dense<0.000000e+00> : vector<8xf32>
    %178 = vector.multi_reduction <add>, %177, %cst_78 [1] : vector<8x10xf32> to vector<8xf32>
    %179 = vector.shape_cast %178 : vector<8xf32> to vector<8x1xf32>
    %180 = tpu.reciprocal %179 {approx = true} : vector<8x1xf32> -> vector<8x1xf32>
    %181 = vector.broadcast %180 : vector<8x1xf32> to vector<8x10xf32>
    %182 = arith.mulf %177, %181 : vector<8x10xf32>
    %183 = arith.truncf %182 : vector<8x10xf32> to vector<8x10xbf16>
    %cst_79 = arith.constant dense<0.000000e+00> : vector<8x8xf32>
    %184 = tpu.matmul %183, %170, %cst_79 {dimension_numbers = #tpu.dot_dimension_numbers<[1], [1], [0], [0], [0, 0, 1, 0], [], []>} : vector<8x10xbf16>, vector<8x10xbf16>, vector<8x8xf32> -> vector<8x8xf32>
    %185 = vector.extract_strided_slice %142 {offsets = [0, 16], sizes = [8, 8], strides = [1, 1]} : vector<8x32xbf16> to vector<8x8xbf16>
    %186 = vector.extract_strided_slice %150 {offsets = [16, 0], sizes = [8, 10], strides = [1, 1]} : vector<64x10xbf16> to vector<8x10xbf16>
    %187 = vector.extract_strided_slice %150 {offsets = [48, 0], sizes = [8, 10], strides = [1, 1]} : vector<64x10xbf16> to vector<8x10xbf16>
    %cst_80 = arith.constant dense<0.000000e+00> : vector<8x10xf32>
    %188 = tpu.matmul %185, %186, %cst_80 {dimension_numbers = #tpu.dot_dimension_numbers<[1], [0], [0], [1], [0, 0, 1, 1], [], []>} : vector<8x8xbf16>, vector<8x10xbf16>, vector<8x10xf32> -> vector<8x10xf32>
    %189 = arith.addf %188, %3 : vector<8x10xf32>
    %cst_81 = arith.constant dense<0xFF800000> : vector<8xf32>
    %190 = vector.multi_reduction <maximumf>, %189, %cst_81 [1] : vector<8x10xf32> to vector<8xf32>
    %191 = vector.shape_cast %190 : vector<8xf32> to vector<8x1xf32>
    %192 = vector.broadcast %191 : vector<8x1xf32> to vector<8x10xf32>
    %193 = arith.subf %189, %192 : vector<8x10xf32>
    %194 = math.exp %193 : vector<8x10xf32>
    %cst_82 = arith.constant dense<0.000000e+00> : vector<8xf32>
    %195 = vector.multi_reduction <add>, %194, %cst_82 [1] : vector<8x10xf32> to vector<8xf32>
    %196 = vector.shape_cast %195 : vector<8xf32> to vector<8x1xf32>
    %197 = tpu.reciprocal %196 {approx = true} : vector<8x1xf32> -> vector<8x1xf32>
    %198 = vector.broadcast %197 : vector<8x1xf32> to vector<8x10xf32>
    %199 = arith.mulf %194, %198 : vector<8x10xf32>
    %200 = arith.truncf %199 : vector<8x10xf32> to vector<8x10xbf16>
    %cst_83 = arith.constant dense<0.000000e+00> : vector<8x8xf32>
    %201 = tpu.matmul %200, %187, %cst_83 {dimension_numbers = #tpu.dot_dimension_numbers<[1], [1], [0], [0], [0, 0, 1, 0], [], []>} : vector<8x10xbf16>, vector<8x10xbf16>, vector<8x8xf32> -> vector<8x8xf32>
    %202 = vector.extract_strided_slice %142 {offsets = [0, 24], sizes = [8, 8], strides = [1, 1]} : vector<8x32xbf16> to vector<8x8xbf16>
    %203 = vector.extract_strided_slice %150 {offsets = [24, 0], sizes = [8, 10], strides = [1, 1]} : vector<64x10xbf16> to vector<8x10xbf16>
    %204 = vector.extract_strided_slice %150 {offsets = [56, 0], sizes = [8, 10], strides = [1, 1]} : vector<64x10xbf16> to vector<8x10xbf16>
    %cst_84 = arith.constant dense<0.000000e+00> : vector<8x10xf32>
    %205 = tpu.matmul %202, %203, %cst_84 {dimension_numbers = #tpu.dot_dimension_numbers<[1], [0], [0], [1], [0, 0, 1, 1], [], []>} : vector<8x8xbf16>, vector<8x10xbf16>, vector<8x10xf32> -> vector<8x10xf32>
    %206 = arith.addf %205, %3 : vector<8x10xf32>
    %cst_85 = arith.constant dense<0xFF800000> : vector<8xf32>
    %207 = vector.multi_reduction <maximumf>, %206, %cst_85 [1] : vector<8x10xf32> to vector<8xf32>
    %208 = vector.shape_cast %207 : vector<8xf32> to vector<8x1xf32>
    %209 = vector.broadcast %208 : vector<8x1xf32> to vector<8x10xf32>
    %210 = arith.subf %206, %209 : vector<8x10xf32>
    %211 = math.exp %210 : vector<8x10xf32>
    %cst_86 = arith.constant dense<0.000000e+00> : vector<8xf32>
    %212 = vector.multi_reduction <add>, %211, %cst_86 [1] : vector<8x10xf32> to vector<8xf32>
    %213 = vector.shape_cast %212 : vector<8xf32> to vector<8x1xf32>
    %214 = tpu.reciprocal %213 {approx = true} : vector<8x1xf32> -> vector<8x1xf32>
    %215 = vector.broadcast %214 : vector<8x1xf32> to vector<8x10xf32>
    %216 = arith.mulf %211, %215 : vector<8x10xf32>
    %217 = arith.truncf %216 : vector<8x10xf32> to vector<8x10xbf16>
    %cst_87 = arith.constant dense<0.000000e+00> : vector<8x8xf32>
    %218 = tpu.matmul %217, %204, %cst_87 {dimension_numbers = #tpu.dot_dimension_numbers<[1], [1], [0], [0], [0, 0, 1, 0], [], []>} : vector<8x10xbf16>, vector<8x10xbf16>, vector<8x8xf32> -> vector<8x8xf32>
    %219 = tpu.concatenate %167, %184, %201, %218 in 1 : vector<8x8xf32>, vector<8x8xf32>, vector<8x8xf32>, vector<8x8xf32> -> vector<8x32xf32>
    %220 = arith.truncf %219 : vector<8x32xf32> to vector<8x32xbf16>
    %c1_88 = arith.constant 1 : index
    %c0_89 = arith.constant 0 : index
    %c0_90 = arith.constant 0 : index
    %221 = vector.load %arg9[%c1_88, %c0_89, %c0_90] : memref<4x32x32xbf16, #tpu.memory_space<vmem>>, vector<1x32x32xbf16>
    %222 = vector.shape_cast %221 : vector<1x32x32xbf16> to vector<32x32xbf16>
    %cst_91 = arith.constant dense<0.000000e+00> : vector<8x32xf32>
    %223 = tpu.matmul %220, %222, %cst_91 {dimension_numbers = #tpu.dot_dimension_numbers<[1], [0], [0], [1], [0, 0, 1, 1], [], []>} : vector<8x32xbf16>, vector<32x32xbf16>, vector<8x32xf32> -> vector<8x32xf32>
    %c1_92 = arith.constant 1 : index
    %c0_93 = arith.constant 0 : index
    %c0_94 = arith.constant 0 : index
    %224 = vector.load %arg12[%c1_92, %c0_93, %c0_94] : memref<4x1x32xf32, #tpu.memory_space<vmem>>, vector<1x1x32xf32>
    %225 = vector.shape_cast %224 : vector<1x1x32xf32> to vector<1x32xf32>
    %226 = vector.broadcast %225 : vector<1x32xf32> to vector<8x32xf32>
    %227 = arith.addf %223, %226 : vector<8x32xf32>
    %228 = arith.addf %128, %227 : vector<8x32xf32>
    %cst_95 = arith.constant dense<0.000000e+00> : vector<8xf32>
    %229 = vector.multi_reduction <add>, %228, %cst_95 [1] : vector<8x32xf32> to vector<8xf32>
    %230 = vector.shape_cast %229 : vector<8xf32> to vector<8x1xf32>
    %cst_96 = arith.constant 3.200000e+01 : f32
    %231 = vector.broadcast %cst_96 : f32 to vector<8x1xf32>
    %232 = arith.divf %230, %231 : vector<8x1xf32>
    %233 = arith.mulf %228, %228 : vector<8x32xf32>
    %cst_97 = arith.constant dense<0.000000e+00> : vector<8xf32>
    %234 = vector.multi_reduction <add>, %233, %cst_97 [1] : vector<8x32xf32> to vector<8xf32>
    %235 = vector.shape_cast %234 : vector<8xf32> to vector<8x1xf32>
    %cst_98 = arith.constant 3.200000e+01 : f32
    %236 = vector.broadcast %cst_98 : f32 to vector<8x1xf32>
    %237 = arith.divf %235, %236 : vector<8x1xf32>
    %238 = arith.mulf %232, %232 : vector<8x1xf32>
    %239 = arith.subf %237, %238 : vector<8x1xf32>
    %cst_99 = arith.constant 0.000000e+00 : f32
    %240 = vector.broadcast %cst_99 : f32 to vector<8x1xf32>
    %241 = arith.maximumf %239, %240 : vector<8x1xf32>
    %242 = vector.broadcast %232 : vector<8x1xf32> to vector<8x32xf32>
    %243 = arith.subf %228, %242 : vector<8x32xf32>
    %cst_100 = arith.constant 9.99999974E-6 : f32
    %244 = vector.broadcast %cst_100 : f32 to vector<8x1xf32>
    %245 = arith.addf %241, %244 : vector<8x1xf32>
    %246 = math.rsqrt %245 : vector<8x1xf32>
    %247 = vector.broadcast %246 : vector<8x1xf32> to vector<8x32xf32>
    %248 = arith.mulf %243, %247 : vector<8x32xf32>
    %c1_101 = arith.constant 1 : index
    %c0_102 = arith.constant 0 : index
    %c0_103 = arith.constant 0 : index
    %249 = vector.load %arg13[%c1_101, %c0_102, %c0_103] : memref<5x1x32xf32, #tpu.memory_space<vmem>>, vector<1x1x32xf32>
    %250 = vector.shape_cast %249 : vector<1x1x32xf32> to vector<1x32xf32>
    %251 = vector.broadcast %250 : vector<1x32xf32> to vector<8x32xf32>
    %252 = arith.mulf %248, %251 : vector<8x32xf32>
    %c1_104 = arith.constant 1 : index
    %c0_105 = arith.constant 0 : index
    %c0_106 = arith.constant 0 : index
    %253 = vector.load %arg14[%c1_104, %c0_105, %c0_106] : memref<5x1x32xf32, #tpu.memory_space<vmem>>, vector<1x1x32xf32>
    %254 = vector.shape_cast %253 : vector<1x1x32xf32> to vector<1x32xf32>
    %255 = vector.broadcast %254 : vector<1x32xf32> to vector<8x32xf32>
    %256 = arith.addf %252, %255 : vector<8x32xf32>
    %c0_107 = arith.constant 0 : index
    %c0_108 = arith.constant 0 : index
    %c0_109 = arith.constant 0 : index
    %257 = vector.load %arg3[%c0_107, %c0_108, %c0_109] : memref<1x10x32xf32, #tpu.memory_space<vmem>>, vector<1x10x32xf32>
    %258 = vector.shape_cast %257 : vector<1x10x32xf32> to vector<10x32xf32>
    %259 = arith.truncf %256 : vector<8x32xf32> to vector<8x32xbf16>
    %260 = arith.truncf %258 : vector<10x32xf32> to vector<10x32xbf16>
    %c2 = arith.constant 2 : index
    %c0_110 = arith.constant 0 : index
    %c0_111 = arith.constant 0 : index
    %261 = vector.load %arg7[%c2, %c0_110, %c0_111] : memref<4x32x32xbf16, #tpu.memory_space<vmem>>, vector<1x32x32xbf16>
    %262 = vector.shape_cast %261 : vector<1x32x32xbf16> to vector<32x32xbf16>
    %cst_112 = arith.constant dense<0.000000e+00> : vector<8x32xf32>
    %263 = tpu.matmul %259, %262, %cst_112 {dimension_numbers = #tpu.dot_dimension_numbers<[1], [0], [0], [1], [0, 0, 1, 1], [], []>} : vector<8x32xbf16>, vector<32x32xbf16>, vector<8x32xf32> -> vector<8x32xf32>
    %c2_113 = arith.constant 2 : index
    %c0_114 = arith.constant 0 : index
    %c0_115 = arith.constant 0 : index
    %264 = vector.load %arg10[%c2_113, %c0_114, %c0_115] : memref<4x1x32xf32, #tpu.memory_space<vmem>>, vector<1x1x32xf32>
    %265 = vector.shape_cast %264 : vector<1x1x32xf32> to vector<1x32xf32>
    %266 = vector.broadcast %265 : vector<1x32xf32> to vector<8x32xf32>
    %267 = arith.addf %263, %266 : vector<8x32xf32>
    %cst_116 = arith.constant 0.353553385 : f32
    %268 = vector.broadcast %cst_116 : f32 to vector<8x32xf32>
    %269 = arith.mulf %267, %268 : vector<8x32xf32>
    %270 = arith.truncf %269 : vector<8x32xf32> to vector<8x32xbf16>
    %c2_117 = arith.constant 2 : index
    %c0_118 = arith.constant 0 : index
    %c0_119 = arith.constant 0 : index
    %271 = vector.load %arg8[%c2_117, %c0_118, %c0_119] : memref<4x64x32xbf16, #tpu.memory_space<vmem>>, vector<1x64x32xbf16>
    %272 = vector.shape_cast %271 : vector<1x64x32xbf16> to vector<64x32xbf16>
    %cst_120 = arith.constant dense<0.000000e+00> : vector<64x10xf32>
    %273 = tpu.matmul %272, %260, %cst_120 {dimension_numbers = #tpu.dot_dimension_numbers<[1], [1], [0], [0], [0, 0, 1, 0], [], []>} : vector<64x32xbf16>, vector<10x32xbf16>, vector<64x10xf32> -> vector<64x10xf32>
    %c2_121 = arith.constant 2 : index
    %c0_122 = arith.constant 0 : index
    %c0_123 = arith.constant 0 : index
    %274 = vector.load %arg11[%c2_121, %c0_122, %c0_123] : memref<4x64x1xf32, #tpu.memory_space<vmem>>, vector<1x64x1xf32>
    %275 = vector.shape_cast %274 : vector<1x64x1xf32> to vector<64x1xf32>
    %276 = vector.broadcast %275 : vector<64x1xf32> to vector<64x10xf32>
    %277 = arith.addf %273, %276 : vector<64x10xf32>
    %278 = arith.truncf %277 : vector<64x10xf32> to vector<64x10xbf16>
    %279 = vector.extract_strided_slice %270 {offsets = [0, 0], sizes = [8, 8], strides = [1, 1]} : vector<8x32xbf16> to vector<8x8xbf16>
    %280 = vector.extract_strided_slice %278 {offsets = [0, 0], sizes = [8, 10], strides = [1, 1]} : vector<64x10xbf16> to vector<8x10xbf16>
    %281 = vector.extract_strided_slice %278 {offsets = [32, 0], sizes = [8, 10], strides = [1, 1]} : vector<64x10xbf16> to vector<8x10xbf16>
    %cst_124 = arith.constant dense<0.000000e+00> : vector<8x10xf32>
    %282 = tpu.matmul %279, %280, %cst_124 {dimension_numbers = #tpu.dot_dimension_numbers<[1], [0], [0], [1], [0, 0, 1, 1], [], []>} : vector<8x8xbf16>, vector<8x10xbf16>, vector<8x10xf32> -> vector<8x10xf32>
    %283 = arith.addf %282, %3 : vector<8x10xf32>
    %cst_125 = arith.constant dense<0xFF800000> : vector<8xf32>
    %284 = vector.multi_reduction <maximumf>, %283, %cst_125 [1] : vector<8x10xf32> to vector<8xf32>
    %285 = vector.shape_cast %284 : vector<8xf32> to vector<8x1xf32>
    %286 = vector.broadcast %285 : vector<8x1xf32> to vector<8x10xf32>
    %287 = arith.subf %283, %286 : vector<8x10xf32>
    %288 = math.exp %287 : vector<8x10xf32>
    %cst_126 = arith.constant dense<0.000000e+00> : vector<8xf32>
    %289 = vector.multi_reduction <add>, %288, %cst_126 [1] : vector<8x10xf32> to vector<8xf32>
    %290 = vector.shape_cast %289 : vector<8xf32> to vector<8x1xf32>
    %291 = tpu.reciprocal %290 {approx = true} : vector<8x1xf32> -> vector<8x1xf32>
    %292 = vector.broadcast %291 : vector<8x1xf32> to vector<8x10xf32>
    %293 = arith.mulf %288, %292 : vector<8x10xf32>
    %294 = arith.truncf %293 : vector<8x10xf32> to vector<8x10xbf16>
    %cst_127 = arith.constant dense<0.000000e+00> : vector<8x8xf32>
    %295 = tpu.matmul %294, %281, %cst_127 {dimension_numbers = #tpu.dot_dimension_numbers<[1], [1], [0], [0], [0, 0, 1, 0], [], []>} : vector<8x10xbf16>, vector<8x10xbf16>, vector<8x8xf32> -> vector<8x8xf32>
    %296 = vector.extract_strided_slice %270 {offsets = [0, 8], sizes = [8, 8], strides = [1, 1]} : vector<8x32xbf16> to vector<8x8xbf16>
    %297 = vector.extract_strided_slice %278 {offsets = [8, 0], sizes = [8, 10], strides = [1, 1]} : vector<64x10xbf16> to vector<8x10xbf16>
    %298 = vector.extract_strided_slice %278 {offsets = [40, 0], sizes = [8, 10], strides = [1, 1]} : vector<64x10xbf16> to vector<8x10xbf16>
    %cst_128 = arith.constant dense<0.000000e+00> : vector<8x10xf32>
    %299 = tpu.matmul %296, %297, %cst_128 {dimension_numbers = #tpu.dot_dimension_numbers<[1], [0], [0], [1], [0, 0, 1, 1], [], []>} : vector<8x8xbf16>, vector<8x10xbf16>, vector<8x10xf32> -> vector<8x10xf32>
    %300 = arith.addf %299, %3 : vector<8x10xf32>
    %cst_129 = arith.constant dense<0xFF800000> : vector<8xf32>
    %301 = vector.multi_reduction <maximumf>, %300, %cst_129 [1] : vector<8x10xf32> to vector<8xf32>
    %302 = vector.shape_cast %301 : vector<8xf32> to vector<8x1xf32>
    %303 = vector.broadcast %302 : vector<8x1xf32> to vector<8x10xf32>
    %304 = arith.subf %300, %303 : vector<8x10xf32>
    %305 = math.exp %304 : vector<8x10xf32>
    %cst_130 = arith.constant dense<0.000000e+00> : vector<8xf32>
    %306 = vector.multi_reduction <add>, %305, %cst_130 [1] : vector<8x10xf32> to vector<8xf32>
    %307 = vector.shape_cast %306 : vector<8xf32> to vector<8x1xf32>
    %308 = tpu.reciprocal %307 {approx = true} : vector<8x1xf32> -> vector<8x1xf32>
    %309 = vector.broadcast %308 : vector<8x1xf32> to vector<8x10xf32>
    %310 = arith.mulf %305, %309 : vector<8x10xf32>
    %311 = arith.truncf %310 : vector<8x10xf32> to vector<8x10xbf16>
    %cst_131 = arith.constant dense<0.000000e+00> : vector<8x8xf32>
    %312 = tpu.matmul %311, %298, %cst_131 {dimension_numbers = #tpu.dot_dimension_numbers<[1], [1], [0], [0], [0, 0, 1, 0], [], []>} : vector<8x10xbf16>, vector<8x10xbf16>, vector<8x8xf32> -> vector<8x8xf32>
    %313 = vector.extract_strided_slice %270 {offsets = [0, 16], sizes = [8, 8], strides = [1, 1]} : vector<8x32xbf16> to vector<8x8xbf16>
    %314 = vector.extract_strided_slice %278 {offsets = [16, 0], sizes = [8, 10], strides = [1, 1]} : vector<64x10xbf16> to vector<8x10xbf16>
    %315 = vector.extract_strided_slice %278 {offsets = [48, 0], sizes = [8, 10], strides = [1, 1]} : vector<64x10xbf16> to vector<8x10xbf16>
    %cst_132 = arith.constant dense<0.000000e+00> : vector<8x10xf32>
    %316 = tpu.matmul %313, %314, %cst_132 {dimension_numbers = #tpu.dot_dimension_numbers<[1], [0], [0], [1], [0, 0, 1, 1], [], []>} : vector<8x8xbf16>, vector<8x10xbf16>, vector<8x10xf32> -> vector<8x10xf32>
    %317 = arith.addf %316, %3 : vector<8x10xf32>
    %cst_133 = arith.constant dense<0xFF800000> : vector<8xf32>
    %318 = vector.multi_reduction <maximumf>, %317, %cst_133 [1] : vector<8x10xf32> to vector<8xf32>
    %319 = vector.shape_cast %318 : vector<8xf32> to vector<8x1xf32>
    %320 = vector.broadcast %319 : vector<8x1xf32> to vector<8x10xf32>
    %321 = arith.subf %317, %320 : vector<8x10xf32>
    %322 = math.exp %321 : vector<8x10xf32>
    %cst_134 = arith.constant dense<0.000000e+00> : vector<8xf32>
    %323 = vector.multi_reduction <add>, %322, %cst_134 [1] : vector<8x10xf32> to vector<8xf32>
    %324 = vector.shape_cast %323 : vector<8xf32> to vector<8x1xf32>
    %325 = tpu.reciprocal %324 {approx = true} : vector<8x1xf32> -> vector<8x1xf32>
    %326 = vector.broadcast %325 : vector<8x1xf32> to vector<8x10xf32>
    %327 = arith.mulf %322, %326 : vector<8x10xf32>
    %328 = arith.truncf %327 : vector<8x10xf32> to vector<8x10xbf16>
    %cst_135 = arith.constant dense<0.000000e+00> : vector<8x8xf32>
    %329 = tpu.matmul %328, %315, %cst_135 {dimension_numbers = #tpu.dot_dimension_numbers<[1], [1], [0], [0], [0, 0, 1, 0], [], []>} : vector<8x10xbf16>, vector<8x10xbf16>, vector<8x8xf32> -> vector<8x8xf32>
    %330 = vector.extract_strided_slice %270 {offsets = [0, 24], sizes = [8, 8], strides = [1, 1]} : vector<8x32xbf16> to vector<8x8xbf16>
    %331 = vector.extract_strided_slice %278 {offsets = [24, 0], sizes = [8, 10], strides = [1, 1]} : vector<64x10xbf16> to vector<8x10xbf16>
    %332 = vector.extract_strided_slice %278 {offsets = [56, 0], sizes = [8, 10], strides = [1, 1]} : vector<64x10xbf16> to vector<8x10xbf16>
    %cst_136 = arith.constant dense<0.000000e+00> : vector<8x10xf32>
    %333 = tpu.matmul %330, %331, %cst_136 {dimension_numbers = #tpu.dot_dimension_numbers<[1], [0], [0], [1], [0, 0, 1, 1], [], []>} : vector<8x8xbf16>, vector<8x10xbf16>, vector<8x10xf32> -> vector<8x10xf32>
    %334 = arith.addf %333, %3 : vector<8x10xf32>
    %cst_137 = arith.constant dense<0xFF800000> : vector<8xf32>
    %335 = vector.multi_reduction <maximumf>, %334, %cst_137 [1] : vector<8x10xf32> to vector<8xf32>
    %336 = vector.shape_cast %335 : vector<8xf32> to vector<8x1xf32>
    %337 = vector.broadcast %336 : vector<8x1xf32> to vector<8x10xf32>
    %338 = arith.subf %334, %337 : vector<8x10xf32>
    %339 = math.exp %338 : vector<8x10xf32>
    %cst_138 = arith.constant dense<0.000000e+00> : vector<8xf32>
    %340 = vector.multi_reduction <add>, %339, %cst_138 [1] : vector<8x10xf32> to vector<8xf32>
    %341 = vector.shape_cast %340 : vector<8xf32> to vector<8x1xf32>
    %342 = tpu.reciprocal %341 {approx = true} : vector<8x1xf32> -> vector<8x1xf32>
    %343 = vector.broadcast %342 : vector<8x1xf32> to vector<8x10xf32>
    %344 = arith.mulf %339, %343 : vector<8x10xf32>
    %345 = arith.truncf %344 : vector<8x10xf32> to vector<8x10xbf16>
    %cst_139 = arith.constant dense<0.000000e+00> : vector<8x8xf32>
    %346 = tpu.matmul %345, %332, %cst_139 {dimension_numbers = #tpu.dot_dimension_numbers<[1], [1], [0], [0], [0, 0, 1, 0], [], []>} : vector<8x10xbf16>, vector<8x10xbf16>, vector<8x8xf32> -> vector<8x8xf32>
    %347 = tpu.concatenate %295, %312, %329, %346 in 1 : vector<8x8xf32>, vector<8x8xf32>, vector<8x8xf32>, vector<8x8xf32> -> vector<8x32xf32>
    %348 = arith.truncf %347 : vector<8x32xf32> to vector<8x32xbf16>
    %c2_140 = arith.constant 2 : index
    %c0_141 = arith.constant 0 : index
    %c0_142 = arith.constant 0 : index
    %349 = vector.load %arg9[%c2_140, %c0_141, %c0_142] : memref<4x32x32xbf16, #tpu.memory_space<vmem>>, vector<1x32x32xbf16>
    %350 = vector.shape_cast %349 : vector<1x32x32xbf16> to vector<32x32xbf16>
    %cst_143 = arith.constant dense<0.000000e+00> : vector<8x32xf32>
    %351 = tpu.matmul %348, %350, %cst_143 {dimension_numbers = #tpu.dot_dimension_numbers<[1], [0], [0], [1], [0, 0, 1, 1], [], []>} : vector<8x32xbf16>, vector<32x32xbf16>, vector<8x32xf32> -> vector<8x32xf32>
    %c2_144 = arith.constant 2 : index
    %c0_145 = arith.constant 0 : index
    %c0_146 = arith.constant 0 : index
    %352 = vector.load %arg12[%c2_144, %c0_145, %c0_146] : memref<4x1x32xf32, #tpu.memory_space<vmem>>, vector<1x1x32xf32>
    %353 = vector.shape_cast %352 : vector<1x1x32xf32> to vector<1x32xf32>
    %354 = vector.broadcast %353 : vector<1x32xf32> to vector<8x32xf32>
    %355 = arith.addf %351, %354 : vector<8x32xf32>
    %356 = arith.addf %256, %355 : vector<8x32xf32>
    %cst_147 = arith.constant dense<0.000000e+00> : vector<8xf32>
    %357 = vector.multi_reduction <add>, %356, %cst_147 [1] : vector<8x32xf32> to vector<8xf32>
    %358 = vector.shape_cast %357 : vector<8xf32> to vector<8x1xf32>
    %cst_148 = arith.constant 3.200000e+01 : f32
    %359 = vector.broadcast %cst_148 : f32 to vector<8x1xf32>
    %360 = arith.divf %358, %359 : vector<8x1xf32>
    %361 = arith.mulf %356, %356 : vector<8x32xf32>
    %cst_149 = arith.constant dense<0.000000e+00> : vector<8xf32>
    %362 = vector.multi_reduction <add>, %361, %cst_149 [1] : vector<8x32xf32> to vector<8xf32>
    %363 = vector.shape_cast %362 : vector<8xf32> to vector<8x1xf32>
    %cst_150 = arith.constant 3.200000e+01 : f32
    %364 = vector.broadcast %cst_150 : f32 to vector<8x1xf32>
    %365 = arith.divf %363, %364 : vector<8x1xf32>
    %366 = arith.mulf %360, %360 : vector<8x1xf32>
    %367 = arith.subf %365, %366 : vector<8x1xf32>
    %cst_151 = arith.constant 0.000000e+00 : f32
    %368 = vector.broadcast %cst_151 : f32 to vector<8x1xf32>
    %369 = arith.maximumf %367, %368 : vector<8x1xf32>
    %370 = vector.broadcast %360 : vector<8x1xf32> to vector<8x32xf32>
    %371 = arith.subf %356, %370 : vector<8x32xf32>
    %cst_152 = arith.constant 9.99999974E-6 : f32
    %372 = vector.broadcast %cst_152 : f32 to vector<8x1xf32>
    %373 = arith.addf %369, %372 : vector<8x1xf32>
    %374 = math.rsqrt %373 : vector<8x1xf32>
    %375 = vector.broadcast %374 : vector<8x1xf32> to vector<8x32xf32>
    %376 = arith.mulf %371, %375 : vector<8x32xf32>
    %c2_153 = arith.constant 2 : index
    %c0_154 = arith.constant 0 : index
    %c0_155 = arith.constant 0 : index
    %377 = vector.load %arg13[%c2_153, %c0_154, %c0_155] : memref<5x1x32xf32, #tpu.memory_space<vmem>>, vector<1x1x32xf32>
    %378 = vector.shape_cast %377 : vector<1x1x32xf32> to vector<1x32xf32>
    %379 = vector.broadcast %378 : vector<1x32xf32> to vector<8x32xf32>
    %380 = arith.mulf %376, %379 : vector<8x32xf32>
    %c2_156 = arith.constant 2 : index
    %c0_157 = arith.constant 0 : index
    %c0_158 = arith.constant 0 : index
    %381 = vector.load %arg14[%c2_156, %c0_157, %c0_158] : memref<5x1x32xf32, #tpu.memory_space<vmem>>, vector<1x1x32xf32>
    %382 = vector.shape_cast %381 : vector<1x1x32xf32> to vector<1x32xf32>
    %383 = vector.broadcast %382 : vector<1x32xf32> to vector<8x32xf32>
    %384 = arith.addf %380, %383 : vector<8x32xf32>
    %c0_159 = arith.constant 0 : index
    %c0_160 = arith.constant 0 : index
    %c0_161 = arith.constant 0 : index
    %385 = vector.load %arg4[%c0_159, %c0_160, %c0_161] : memref<1x10x32xf32, #tpu.memory_space<vmem>>, vector<1x10x32xf32>
    %386 = vector.shape_cast %385 : vector<1x10x32xf32> to vector<10x32xf32>
    %387 = arith.truncf %384 : vector<8x32xf32> to vector<8x32xbf16>
    %388 = arith.truncf %386 : vector<10x32xf32> to vector<10x32xbf16>
    %c3 = arith.constant 3 : index
    %c0_162 = arith.constant 0 : index
    %c0_163 = arith.constant 0 : index
    %389 = vector.load %arg7[%c3, %c0_162, %c0_163] : memref<4x32x32xbf16, #tpu.memory_space<vmem>>, vector<1x32x32xbf16>
    %390 = vector.shape_cast %389 : vector<1x32x32xbf16> to vector<32x32xbf16>
    %cst_164 = arith.constant dense<0.000000e+00> : vector<8x32xf32>
    %391 = tpu.matmul %387, %390, %cst_164 {dimension_numbers = #tpu.dot_dimension_numbers<[1], [0], [0], [1], [0, 0, 1, 1], [], []>} : vector<8x32xbf16>, vector<32x32xbf16>, vector<8x32xf32> -> vector<8x32xf32>
    %c3_165 = arith.constant 3 : index
    %c0_166 = arith.constant 0 : index
    %c0_167 = arith.constant 0 : index
    %392 = vector.load %arg10[%c3_165, %c0_166, %c0_167] : memref<4x1x32xf32, #tpu.memory_space<vmem>>, vector<1x1x32xf32>
    %393 = vector.shape_cast %392 : vector<1x1x32xf32> to vector<1x32xf32>
    %394 = vector.broadcast %393 : vector<1x32xf32> to vector<8x32xf32>
    %395 = arith.addf %391, %394 : vector<8x32xf32>
    %cst_168 = arith.constant 0.353553385 : f32
    %396 = vector.broadcast %cst_168 : f32 to vector<8x32xf32>
    %397 = arith.mulf %395, %396 : vector<8x32xf32>
    %398 = arith.truncf %397 : vector<8x32xf32> to vector<8x32xbf16>
    %c3_169 = arith.constant 3 : index
    %c0_170 = arith.constant 0 : index
    %c0_171 = arith.constant 0 : index
    %399 = vector.load %arg8[%c3_169, %c0_170, %c0_171] : memref<4x64x32xbf16, #tpu.memory_space<vmem>>, vector<1x64x32xbf16>
    %400 = vector.shape_cast %399 : vector<1x64x32xbf16> to vector<64x32xbf16>
    %cst_172 = arith.constant dense<0.000000e+00> : vector<64x10xf32>
    %401 = tpu.matmul %400, %388, %cst_172 {dimension_numbers = #tpu.dot_dimension_numbers<[1], [1], [0], [0], [0, 0, 1, 0], [], []>} : vector<64x32xbf16>, vector<10x32xbf16>, vector<64x10xf32> -> vector<64x10xf32>
    %c3_173 = arith.constant 3 : index
    %c0_174 = arith.constant 0 : index
    %c0_175 = arith.constant 0 : index
    %402 = vector.load %arg11[%c3_173, %c0_174, %c0_175] : memref<4x64x1xf32, #tpu.memory_space<vmem>>, vector<1x64x1xf32>
    %403 = vector.shape_cast %402 : vector<1x64x1xf32> to vector<64x1xf32>
    %404 = vector.broadcast %403 : vector<64x1xf32> to vector<64x10xf32>
    %405 = arith.addf %401, %404 : vector<64x10xf32>
    %406 = arith.truncf %405 : vector<64x10xf32> to vector<64x10xbf16>
    %407 = vector.extract_strided_slice %398 {offsets = [0, 0], sizes = [8, 8], strides = [1, 1]} : vector<8x32xbf16> to vector<8x8xbf16>
    %408 = vector.extract_strided_slice %406 {offsets = [0, 0], sizes = [8, 10], strides = [1, 1]} : vector<64x10xbf16> to vector<8x10xbf16>
    %409 = vector.extract_strided_slice %406 {offsets = [32, 0], sizes = [8, 10], strides = [1, 1]} : vector<64x10xbf16> to vector<8x10xbf16>
    %cst_176 = arith.constant dense<0.000000e+00> : vector<8x10xf32>
    %410 = tpu.matmul %407, %408, %cst_176 {dimension_numbers = #tpu.dot_dimension_numbers<[1], [0], [0], [1], [0, 0, 1, 1], [], []>} : vector<8x8xbf16>, vector<8x10xbf16>, vector<8x10xf32> -> vector<8x10xf32>
    %411 = arith.addf %410, %3 : vector<8x10xf32>
    %cst_177 = arith.constant dense<0xFF800000> : vector<8xf32>
    %412 = vector.multi_reduction <maximumf>, %411, %cst_177 [1] : vector<8x10xf32> to vector<8xf32>
    %413 = vector.shape_cast %412 : vector<8xf32> to vector<8x1xf32>
    %414 = vector.broadcast %413 : vector<8x1xf32> to vector<8x10xf32>
    %415 = arith.subf %411, %414 : vector<8x10xf32>
    %416 = math.exp %415 : vector<8x10xf32>
    %cst_178 = arith.constant dense<0.000000e+00> : vector<8xf32>
    %417 = vector.multi_reduction <add>, %416, %cst_178 [1] : vector<8x10xf32> to vector<8xf32>
    %418 = vector.shape_cast %417 : vector<8xf32> to vector<8x1xf32>
    %419 = tpu.reciprocal %418 {approx = true} : vector<8x1xf32> -> vector<8x1xf32>
    %420 = vector.broadcast %419 : vector<8x1xf32> to vector<8x10xf32>
    %421 = arith.mulf %416, %420 : vector<8x10xf32>
    %422 = arith.truncf %421 : vector<8x10xf32> to vector<8x10xbf16>
    %cst_179 = arith.constant dense<0.000000e+00> : vector<8x8xf32>
    %423 = tpu.matmul %422, %409, %cst_179 {dimension_numbers = #tpu.dot_dimension_numbers<[1], [1], [0], [0], [0, 0, 1, 0], [], []>} : vector<8x10xbf16>, vector<8x10xbf16>, vector<8x8xf32> -> vector<8x8xf32>
    %424 = vector.extract_strided_slice %398 {offsets = [0, 8], sizes = [8, 8], strides = [1, 1]} : vector<8x32xbf16> to vector<8x8xbf16>
    %425 = vector.extract_strided_slice %406 {offsets = [8, 0], sizes = [8, 10], strides = [1, 1]} : vector<64x10xbf16> to vector<8x10xbf16>
    %426 = vector.extract_strided_slice %406 {offsets = [40, 0], sizes = [8, 10], strides = [1, 1]} : vector<64x10xbf16> to vector<8x10xbf16>
    %cst_180 = arith.constant dense<0.000000e+00> : vector<8x10xf32>
    %427 = tpu.matmul %424, %425, %cst_180 {dimension_numbers = #tpu.dot_dimension_numbers<[1], [0], [0], [1], [0, 0, 1, 1], [], []>} : vector<8x8xbf16>, vector<8x10xbf16>, vector<8x10xf32> -> vector<8x10xf32>
    %428 = arith.addf %427, %3 : vector<8x10xf32>
    %cst_181 = arith.constant dense<0xFF800000> : vector<8xf32>
    %429 = vector.multi_reduction <maximumf>, %428, %cst_181 [1] : vector<8x10xf32> to vector<8xf32>
    %430 = vector.shape_cast %429 : vector<8xf32> to vector<8x1xf32>
    %431 = vector.broadcast %430 : vector<8x1xf32> to vector<8x10xf32>
    %432 = arith.subf %428, %431 : vector<8x10xf32>
    %433 = math.exp %432 : vector<8x10xf32>
    %cst_182 = arith.constant dense<0.000000e+00> : vector<8xf32>
    %434 = vector.multi_reduction <add>, %433, %cst_182 [1] : vector<8x10xf32> to vector<8xf32>
    %435 = vector.shape_cast %434 : vector<8xf32> to vector<8x1xf32>
    %436 = tpu.reciprocal %435 {approx = true} : vector<8x1xf32> -> vector<8x1xf32>
    %437 = vector.broadcast %436 : vector<8x1xf32> to vector<8x10xf32>
    %438 = arith.mulf %433, %437 : vector<8x10xf32>
    %439 = arith.truncf %438 : vector<8x10xf32> to vector<8x10xbf16>
    %cst_183 = arith.constant dense<0.000000e+00> : vector<8x8xf32>
    %440 = tpu.matmul %439, %426, %cst_183 {dimension_numbers = #tpu.dot_dimension_numbers<[1], [1], [0], [0], [0, 0, 1, 0], [], []>} : vector<8x10xbf16>, vector<8x10xbf16>, vector<8x8xf32> -> vector<8x8xf32>
    %441 = vector.extract_strided_slice %398 {offsets = [0, 16], sizes = [8, 8], strides = [1, 1]} : vector<8x32xbf16> to vector<8x8xbf16>
    %442 = vector.extract_strided_slice %406 {offsets = [16, 0], sizes = [8, 10], strides = [1, 1]} : vector<64x10xbf16> to vector<8x10xbf16>
    %443 = vector.extract_strided_slice %406 {offsets = [48, 0], sizes = [8, 10], strides = [1, 1]} : vector<64x10xbf16> to vector<8x10xbf16>
    %cst_184 = arith.constant dense<0.000000e+00> : vector<8x10xf32>
    %444 = tpu.matmul %441, %442, %cst_184 {dimension_numbers = #tpu.dot_dimension_numbers<[1], [0], [0], [1], [0, 0, 1, 1], [], []>} : vector<8x8xbf16>, vector<8x10xbf16>, vector<8x10xf32> -> vector<8x10xf32>
    %445 = arith.addf %444, %3 : vector<8x10xf32>
    %cst_185 = arith.constant dense<0xFF800000> : vector<8xf32>
    %446 = vector.multi_reduction <maximumf>, %445, %cst_185 [1] : vector<8x10xf32> to vector<8xf32>
    %447 = vector.shape_cast %446 : vector<8xf32> to vector<8x1xf32>
    %448 = vector.broadcast %447 : vector<8x1xf32> to vector<8x10xf32>
    %449 = arith.subf %445, %448 : vector<8x10xf32>
    %450 = math.exp %449 : vector<8x10xf32>
    %cst_186 = arith.constant dense<0.000000e+00> : vector<8xf32>
    %451 = vector.multi_reduction <add>, %450, %cst_186 [1] : vector<8x10xf32> to vector<8xf32>
    %452 = vector.shape_cast %451 : vector<8xf32> to vector<8x1xf32>
    %453 = tpu.reciprocal %452 {approx = true} : vector<8x1xf32> -> vector<8x1xf32>
    %454 = vector.broadcast %453 : vector<8x1xf32> to vector<8x10xf32>
    %455 = arith.mulf %450, %454 : vector<8x10xf32>
    %456 = arith.truncf %455 : vector<8x10xf32> to vector<8x10xbf16>
    %cst_187 = arith.constant dense<0.000000e+00> : vector<8x8xf32>
    %457 = tpu.matmul %456, %443, %cst_187 {dimension_numbers = #tpu.dot_dimension_numbers<[1], [1], [0], [0], [0, 0, 1, 0], [], []>} : vector<8x10xbf16>, vector<8x10xbf16>, vector<8x8xf32> -> vector<8x8xf32>
    %458 = vector.extract_strided_slice %398 {offsets = [0, 24], sizes = [8, 8], strides = [1, 1]} : vector<8x32xbf16> to vector<8x8xbf16>
    %459 = vector.extract_strided_slice %406 {offsets = [24, 0], sizes = [8, 10], strides = [1, 1]} : vector<64x10xbf16> to vector<8x10xbf16>
    %460 = vector.extract_strided_slice %406 {offsets = [56, 0], sizes = [8, 10], strides = [1, 1]} : vector<64x10xbf16> to vector<8x10xbf16>
    %cst_188 = arith.constant dense<0.000000e+00> : vector<8x10xf32>
    %461 = tpu.matmul %458, %459, %cst_188 {dimension_numbers = #tpu.dot_dimension_numbers<[1], [0], [0], [1], [0, 0, 1, 1], [], []>} : vector<8x8xbf16>, vector<8x10xbf16>, vector<8x10xf32> -> vector<8x10xf32>
    %462 = arith.addf %461, %3 : vector<8x10xf32>
    %cst_189 = arith.constant dense<0xFF800000> : vector<8xf32>
    %463 = vector.multi_reduction <maximumf>, %462, %cst_189 [1] : vector<8x10xf32> to vector<8xf32>
    %464 = vector.shape_cast %463 : vector<8xf32> to vector<8x1xf32>
    %465 = vector.broadcast %464 : vector<8x1xf32> to vector<8x10xf32>
    %466 = arith.subf %462, %465 : vector<8x10xf32>
    %467 = math.exp %466 : vector<8x10xf32>
    %cst_190 = arith.constant dense<0.000000e+00> : vector<8xf32>
    %468 = vector.multi_reduction <add>, %467, %cst_190 [1] : vector<8x10xf32> to vector<8xf32>
    %469 = vector.shape_cast %468 : vector<8xf32> to vector<8x1xf32>
    %470 = tpu.reciprocal %469 {approx = true} : vector<8x1xf32> -> vector<8x1xf32>
    %471 = vector.broadcast %470 : vector<8x1xf32> to vector<8x10xf32>
    %472 = arith.mulf %467, %471 : vector<8x10xf32>
    %473 = arith.truncf %472 : vector<8x10xf32> to vector<8x10xbf16>
    %cst_191 = arith.constant dense<0.000000e+00> : vector<8x8xf32>
    %474 = tpu.matmul %473, %460, %cst_191 {dimension_numbers = #tpu.dot_dimension_numbers<[1], [1], [0], [0], [0, 0, 1, 0], [], []>} : vector<8x10xbf16>, vector<8x10xbf16>, vector<8x8xf32> -> vector<8x8xf32>
    %475 = tpu.concatenate %423, %440, %457, %474 in 1 : vector<8x8xf32>, vector<8x8xf32>, vector<8x8xf32>, vector<8x8xf32> -> vector<8x32xf32>
    %476 = arith.truncf %475 : vector<8x32xf32> to vector<8x32xbf16>
    %c3_192 = arith.constant 3 : index
    %c0_193 = arith.constant 0 : index
    %c0_194 = arith.constant 0 : index
    %477 = vector.load %arg9[%c3_192, %c0_193, %c0_194] : memref<4x32x32xbf16, #tpu.memory_space<vmem>>, vector<1x32x32xbf16>
    %478 = vector.shape_cast %477 : vector<1x32x32xbf16> to vector<32x32xbf16>
    %cst_195 = arith.constant dense<0.000000e+00> : vector<8x32xf32>
    %479 = tpu.matmul %476, %478, %cst_195 {dimension_numbers = #tpu.dot_dimension_numbers<[1], [0], [0], [1], [0, 0, 1, 1], [], []>} : vector<8x32xbf16>, vector<32x32xbf16>, vector<8x32xf32> -> vector<8x32xf32>
    %c3_196 = arith.constant 3 : index
    %c0_197 = arith.constant 0 : index
    %c0_198 = arith.constant 0 : index
    %480 = vector.load %arg12[%c3_196, %c0_197, %c0_198] : memref<4x1x32xf32, #tpu.memory_space<vmem>>, vector<1x1x32xf32>
    %481 = vector.shape_cast %480 : vector<1x1x32xf32> to vector<1x32xf32>
    %482 = vector.broadcast %481 : vector<1x32xf32> to vector<8x32xf32>
    %483 = arith.addf %479, %482 : vector<8x32xf32>
    %484 = arith.addf %384, %483 : vector<8x32xf32>
    %cst_199 = arith.constant dense<0.000000e+00> : vector<8xf32>
    %485 = vector.multi_reduction <add>, %484, %cst_199 [1] : vector<8x32xf32> to vector<8xf32>
    %486 = vector.shape_cast %485 : vector<8xf32> to vector<8x1xf32>
    %cst_200 = arith.constant 3.200000e+01 : f32
    %487 = vector.broadcast %cst_200 : f32 to vector<8x1xf32>
    %488 = arith.divf %486, %487 : vector<8x1xf32>
    %489 = arith.mulf %484, %484 : vector<8x32xf32>
    %cst_201 = arith.constant dense<0.000000e+00> : vector<8xf32>
    %490 = vector.multi_reduction <add>, %489, %cst_201 [1] : vector<8x32xf32> to vector<8xf32>
    %491 = vector.shape_cast %490 : vector<8xf32> to vector<8x1xf32>
    %cst_202 = arith.constant 3.200000e+01 : f32
    %492 = vector.broadcast %cst_202 : f32 to vector<8x1xf32>
    %493 = arith.divf %491, %492 : vector<8x1xf32>
    %494 = arith.mulf %488, %488 : vector<8x1xf32>
    %495 = arith.subf %493, %494 : vector<8x1xf32>
    %cst_203 = arith.constant 0.000000e+00 : f32
    %496 = vector.broadcast %cst_203 : f32 to vector<8x1xf32>
    %497 = arith.maximumf %495, %496 : vector<8x1xf32>
    %498 = vector.broadcast %488 : vector<8x1xf32> to vector<8x32xf32>
    %499 = arith.subf %484, %498 : vector<8x32xf32>
    %cst_204 = arith.constant 9.99999974E-6 : f32
    %500 = vector.broadcast %cst_204 : f32 to vector<8x1xf32>
    %501 = arith.addf %497, %500 : vector<8x1xf32>
    %502 = math.rsqrt %501 : vector<8x1xf32>
    %503 = vector.broadcast %502 : vector<8x1xf32> to vector<8x32xf32>
    %504 = arith.mulf %499, %503 : vector<8x32xf32>
    %c3_205 = arith.constant 3 : index
    %c0_206 = arith.constant 0 : index
    %c0_207 = arith.constant 0 : index
    %505 = vector.load %arg13[%c3_205, %c0_206, %c0_207] : memref<5x1x32xf32, #tpu.memory_space<vmem>>, vector<1x1x32xf32>
    %506 = vector.shape_cast %505 : vector<1x1x32xf32> to vector<1x32xf32>
    %507 = vector.broadcast %506 : vector<1x32xf32> to vector<8x32xf32>
    %508 = arith.mulf %504, %507 : vector<8x32xf32>
    %c3_208 = arith.constant 3 : index
    %c0_209 = arith.constant 0 : index
    %c0_210 = arith.constant 0 : index
    %509 = vector.load %arg14[%c3_208, %c0_209, %c0_210] : memref<5x1x32xf32, #tpu.memory_space<vmem>>, vector<1x1x32xf32>
    %510 = vector.shape_cast %509 : vector<1x1x32xf32> to vector<1x32xf32>
    %511 = vector.broadcast %510 : vector<1x32xf32> to vector<8x32xf32>
    %512 = arith.addf %508, %511 : vector<8x32xf32>
    %513 = arith.truncf %512 : vector<8x32xf32> to vector<8x32xbf16>
    %c0_211 = arith.constant 0 : index
    %c0_212 = arith.constant 0 : index
    %514 = vector.load %arg15[%c0_211, %c0_212] : memref<32x64xbf16, #tpu.memory_space<vmem>>, vector<32x64xbf16>
    %cst_213 = arith.constant dense<0.000000e+00> : vector<8x64xf32>
    %515 = tpu.matmul %513, %514, %cst_213 {dimension_numbers = #tpu.dot_dimension_numbers<[1], [0], [0], [1], [0, 0, 1, 1], [], []>} : vector<8x32xbf16>, vector<32x64xbf16>, vector<8x64xf32> -> vector<8x64xf32>
    %c0_214 = arith.constant 0 : index
    %c0_215 = arith.constant 0 : index
    %516 = vector.load %arg16[%c0_214, %c0_215] : memref<1x64xf32, #tpu.memory_space<vmem>>, vector<1x64xf32>
    %517 = vector.broadcast %516 : vector<1x64xf32> to vector<8x64xf32>
    %518 = arith.addf %515, %517 : vector<8x64xf32>
    %cst_216 = arith.constant 0.000000e+00 : f32
    %519 = vector.broadcast %cst_216 : f32 to vector<8x64xf32>
    %520 = arith.maximumf %518, %519 : vector<8x64xf32>
    %521 = arith.truncf %520 : vector<8x64xf32> to vector<8x64xbf16>
    %c0_217 = arith.constant 0 : index
    %c0_218 = arith.constant 0 : index
    %522 = vector.load %arg17[%c0_217, %c0_218] : memref<64x32xbf16, #tpu.memory_space<vmem>>, vector<64x32xbf16>
    %cst_219 = arith.constant dense<0.000000e+00> : vector<8x32xf32>
    %523 = tpu.matmul %521, %522, %cst_219 {dimension_numbers = #tpu.dot_dimension_numbers<[1], [0], [0], [1], [0, 0, 1, 1], [], []>} : vector<8x64xbf16>, vector<64x32xbf16>, vector<8x32xf32> -> vector<8x32xf32>
    %c0_220 = arith.constant 0 : index
    %c0_221 = arith.constant 0 : index
    %524 = vector.load %arg18[%c0_220, %c0_221] : memref<1x32xf32, #tpu.memory_space<vmem>>, vector<1x32xf32>
    %525 = vector.broadcast %524 : vector<1x32xf32> to vector<8x32xf32>
    %526 = arith.addf %523, %525 : vector<8x32xf32>
    %527 = arith.addf %512, %526 : vector<8x32xf32>
    %cst_222 = arith.constant dense<0.000000e+00> : vector<8xf32>
    %528 = vector.multi_reduction <add>, %527, %cst_222 [1] : vector<8x32xf32> to vector<8xf32>
    %529 = vector.shape_cast %528 : vector<8xf32> to vector<8x1xf32>
    %cst_223 = arith.constant 3.200000e+01 : f32
    %530 = vector.broadcast %cst_223 : f32 to vector<8x1xf32>
    %531 = arith.divf %529, %530 : vector<8x1xf32>
    %532 = arith.mulf %527, %527 : vector<8x32xf32>
    %cst_224 = arith.constant dense<0.000000e+00> : vector<8xf32>
    %533 = vector.multi_reduction <add>, %532, %cst_224 [1] : vector<8x32xf32> to vector<8xf32>
    %534 = vector.shape_cast %533 : vector<8xf32> to vector<8x1xf32>
    %cst_225 = arith.constant 3.200000e+01 : f32
    %535 = vector.broadcast %cst_225 : f32 to vector<8x1xf32>
    %536 = arith.divf %534, %535 : vector<8x1xf32>
    %537 = arith.mulf %531, %531 : vector<8x1xf32>
    %538 = arith.subf %536, %537 : vector<8x1xf32>
    %cst_226 = arith.constant 0.000000e+00 : f32
    %539 = vector.broadcast %cst_226 : f32 to vector<8x1xf32>
    %540 = arith.maximumf %538, %539 : vector<8x1xf32>
    %541 = vector.broadcast %531 : vector<8x1xf32> to vector<8x32xf32>
    %542 = arith.subf %527, %541 : vector<8x32xf32>
    %cst_227 = arith.constant 9.99999974E-6 : f32
    %543 = vector.broadcast %cst_227 : f32 to vector<8x1xf32>
    %544 = arith.addf %540, %543 : vector<8x1xf32>
    %545 = math.rsqrt %544 : vector<8x1xf32>
    %546 = vector.broadcast %545 : vector<8x1xf32> to vector<8x32xf32>
    %547 = arith.mulf %542, %546 : vector<8x32xf32>
    %c4 = arith.constant 4 : index
    %c0_228 = arith.constant 0 : index
    %c0_229 = arith.constant 0 : index
    %548 = vector.load %arg13[%c4, %c0_228, %c0_229] : memref<5x1x32xf32, #tpu.memory_space<vmem>>, vector<1x1x32xf32>
    %549 = vector.shape_cast %548 : vector<1x1x32xf32> to vector<1x32xf32>
    %550 = vector.broadcast %549 : vector<1x32xf32> to vector<8x32xf32>
    %551 = arith.mulf %547, %550 : vector<8x32xf32>
    %c4_230 = arith.constant 4 : index
    %c0_231 = arith.constant 0 : index
    %c0_232 = arith.constant 0 : index
    %552 = vector.load %arg14[%c4_230, %c0_231, %c0_232] : memref<5x1x32xf32, #tpu.memory_space<vmem>>, vector<1x1x32xf32>
    %553 = vector.shape_cast %552 : vector<1x1x32xf32> to vector<1x32xf32>
    %554 = vector.broadcast %553 : vector<1x32xf32> to vector<8x32xf32>
    %555 = arith.addf %551, %554 : vector<8x32xf32>
    %c0_233 = arith.constant 0 : index
    %c0_234 = arith.constant 0 : index
    %c0_235 = arith.constant 0 : index
    %556 = vector.load %arg19[%c0_233, %c0_234, %c0_235] : memref<1x8x32xf32, #tpu.memory_space<vmem>>, vector<1x8x32xf32>
    %557 = vector.shape_cast %556 : vector<1x8x32xf32> to vector<8x32xf32>
    %558 = vector.shape_cast %555 : vector<8x32xf32> to vector<1x8x32xf32>
    tpu.vector_store %arg19[%c0_233, %c0_234, %c0_235], %558 {strides = array<i32>} : memref<1x8x32xf32, #tpu.memory_space<vmem>>, vector<1x8x32xf32>,
    return
  }
  func.func @transform_0(%arg0: i32) -> (i32, i32, i32) {
    %c0_i32 = arith.constant 0 : i32
    %c0_i32_0 = arith.constant 0 : i32
    %c0_i32_1 = arith.constant 0 : i32
    return %arg0, %c0_i32, %c0_i32_0 : i32, i32, i32
  }
  func.func @transform_1(%arg0: i32) -> (i32, i32, i32) {
    %c0_i32 = arith.constant 0 : i32
    %c0_i32_0 = arith.constant 0 : i32
    %c0_i32_1 = arith.constant 0 : i32
    return %arg0, %c0_i32, %c0_i32_0 : i32, i32, i32
  }
  func.func @transform_2(%arg0: i32) -> (i32, i32, i32) {
    %c0_i32 = arith.constant 0 : i32
    %c0_i32_0 = arith.constant 0 : i32
    %c0_i32_1 = arith.constant 0 : i32
    return %arg0, %c0_i32, %c0_i32_0 : i32, i32, i32
  }
  func.func @transform_3(%arg0: i32) -> (i32, i32, i32) {
    %c0_i32 = arith.constant 0 : i32
    %c0_i32_0 = arith.constant 0 : i32
    %c0_i32_1 = arith.constant 0 : i32
    return %arg0, %c0_i32, %c0_i32_0 : i32, i32, i32
  }
  func.func @transform_4(%arg0: i32) -> (i32, i32) {
    %c0_i32 = arith.constant 0 : i32
    %c0_i32_0 = arith.constant 0 : i32
    %c0_i32_1 = arith.constant 0 : i32
    return %c0_i32, %c0_i32_0 : i32, i32
  }
  func.func @transform_5(%arg0: i32) -> (i32, i32) {
    %c0_i32 = arith.constant 0 : i32
    %c0_i32_0 = arith.constant 0 : i32
    %c0_i32_1 = arith.constant 0 : i32
    return %c0_i32, %c0_i32_0 : i32, i32
  }
  func.func @transform_6(%arg0: i32) -> (i32, i32, i32) {
    %c0_i32 = arith.constant 0 : i32
    %c0_i32_0 = arith.constant 0 : i32
    %c0_i32_1 = arith.constant 0 : i32
    %c0_i32_2 = arith.constant 0 : i32
    return %c0_i32, %c0_i32_0, %c0_i32_1 : i32, i32, i32
  }
  func.func @transform_7(%arg0: i32) -> (i32, i32, i32) {
    %c0_i32 = arith.constant 0 : i32
    %c0_i32_0 = arith.constant 0 : i32
    %c0_i32_1 = arith.constant 0 : i32
    %c0_i32_2 = arith.constant 0 : i32
    return %c0_i32, %c0_i32_0, %c0_i32_1 : i32, i32, i32
  }
  func.func @transform_8(%arg0: i32) -> (i32, i32, i32) {
    %c0_i32 = arith.constant 0 : i32
    %c0_i32_0 = arith.constant 0 : i32
    %c0_i32_1 = arith.constant 0 : i32
    %c0_i32_2 = arith.constant 0 : i32
    return %c0_i32, %c0_i32_0, %c0_i32_1 : i32, i32, i32
  }
  func.func @transform_9(%arg0: i32) -> (i32, i32, i32) {
    %c0_i32 = arith.constant 0 : i32
    %c0_i32_0 = arith.constant 0 : i32
    %c0_i32_1 = arith.constant 0 : i32
    %c0_i32_2 = arith.constant 0 : i32
    return %c0_i32, %c0_i32_0, %c0_i32_1 : i32, i32, i32
  }
  func.func @transform_10(%arg0: i32) -> (i32, i32, i32) {
    %c0_i32 = arith.constant 0 : i32
    %c0_i32_0 = arith.constant 0 : i32
    %c0_i32_1 = arith.constant 0 : i32
    %c0_i32_2 = arith.constant 0 : i32
    return %c0_i32, %c0_i32_0, %c0_i32_1 : i32, i32, i32
  }
  func.func @transform_11(%arg0: i32) -> (i32, i32, i32) {
    %c0_i32 = arith.constant 0 : i32
    %c0_i32_0 = arith.constant 0 : i32
    %c0_i32_1 = arith.constant 0 : i32
    %c0_i32_2 = arith.constant 0 : i32
    return %c0_i32, %c0_i32_0, %c0_i32_1 : i32, i32, i32
  }
  func.func @transform_12(%arg0: i32) -> (i32, i32, i32) {
    %c0_i32 = arith.constant 0 : i32
    %c0_i32_0 = arith.constant 0 : i32
    %c0_i32_1 = arith.constant 0 : i32
    %c0_i32_2 = arith.constant 0 : i32
    return %c0_i32, %c0_i32_0, %c0_i32_1 : i32, i32, i32
  }
  func.func @transform_13(%arg0: i32) -> (i32, i32, i32) {
    %c0_i32 = arith.constant 0 : i32
    %c0_i32_0 = arith.constant 0 : i32
    %c0_i32_1 = arith.constant 0 : i32
    %c0_i32_2 = arith.constant 0 : i32
    return %c0_i32, %c0_i32_0, %c0_i32_1 : i32, i32, i32
  }
  func.func @transform_14(%arg0: i32) -> (i32, i32) {
    %c0_i32 = arith.constant 0 : i32
    %c0_i32_0 = arith.constant 0 : i32
    %c0_i32_1 = arith.constant 0 : i32
    return %c0_i32, %c0_i32_0 : i32, i32
  }
  func.func @transform_15(%arg0: i32) -> (i32, i32) {
    %c0_i32 = arith.constant 0 : i32
    %c0_i32_0 = arith.constant 0 : i32
    %c0_i32_1 = arith.constant 0 : i32
    return %c0_i32, %c0_i32_0 : i32, i32
  }
  func.func @transform_16(%arg0: i32) -> (i32, i32) {
    %c0_i32 = arith.constant 0 : i32
    %c0_i32_0 = arith.constant 0 : i32
    %c0_i32_1 = arith.constant 0 : i32
    return %c0_i32, %c0_i32_0 : i32, i32
  }
  func.func @transform_17(%arg0: i32) -> (i32, i32) {
    %c0_i32 = arith.constant 0 : i32
    %c0_i32_0 = arith.constant 0 : i32
    %c0_i32_1 = arith.constant 0 : i32
    return %c0_i32, %c0_i32_0 : i32, i32
  }
  func.func @transform_18(%arg0: i32) -> (i32, i32, i32) {
    %c0_i32 = arith.constant 0 : i32
    %c0_i32_0 = arith.constant 0 : i32
    %c0_i32_1 = arith.constant 0 : i32
    return %arg0, %c0_i32, %c0_i32_0 : i32, i32, i32
  }
}

</mosaic_0001>

<llo_original>
// kernel: tpu_custom_call.1
$region0: #{tpu_custom_call.1}
  #allocation0 [shape = 'u32[]', space=smem, size = 0x4, offset = 0x4, fixed_abs, tag = 'smem constant byte address 0x4 - core index']
  #allocation1 [shape = 'u32[72,128]{1,0:T(1,128)}', space=vmem, size = 0x9000, scoped, tag = 'internal scratch']
  %s0 = inlined_call_operand.vmem [shape: f32[2,8,32], index: 0, kind: input, shape index: {}]
  %s1 = inlined_call_operand.vmem [shape: f32[2,10,32], index: 1, kind: input, shape index: {}]
  %s2 = inlined_call_operand.vmem [shape: f32[2,10,32], index: 2, kind: input, shape index: {}]
  %s3 = inlined_call_operand.vmem [shape: f32[2,10,32], index: 3, kind: input, shape index: {}]
  %s4 = inlined_call_operand.vmem [shape: f32[8,8], index: 4, kind: input, shape index: {}]
  %s5 = inlined_call_operand.vmem [shape: f32[8,10], index: 5, kind: input, shape index: {}]
  %s6 = inlined_call_operand.vmem [shape: bf16[4,32,32], index: 6, kind: input, shape index: {}]
  %s7 = inlined_call_operand.vmem [shape: bf16[4,64,32], index: 7, kind: input, shape index: {}]
  %s8 = inlined_call_operand.vmem [shape: bf16[4,32,32], index: 8, kind: input, shape index: {}]
  %s9 = inlined_call_operand.vmem [shape: f32[4,1,32], index: 9, kind: input, shape index: {}]
  %s10 = inlined_call_operand.vmem [shape: f32[4,64,1], index: 10, kind: input, shape index: {}]
  %s11 = inlined_call_operand.vmem [shape: f32[4,1,32], index: 11, kind: input, shape index: {}]
  %s12 = inlined_call_operand.vmem [shape: f32[5,1,32], index: 12, kind: input, shape index: {}]
  %s13 = inlined_call_operand.vmem [shape: f32[5,1,32], index: 13, kind: input, shape index: {}]
  %s14 = inlined_call_operand.vmem [shape: bf16[32,64], index: 14, kind: input, shape index: {}]
  %s15 = inlined_call_operand.vmem [shape: f32[1,64], index: 15, kind: input, shape index: {}]
  %s16 = inlined_call_operand.vmem [shape: bf16[64,32], index: 16, kind: input, shape index: {}]
  %s17 = inlined_call_operand.vmem [shape: f32[1,32], index: 17, kind: input, shape index: {}]
  %s18 = inlined_call_operand.hbm [shape: f32[2,8,32], index: 18, kind: output, shape index: {}]
  %s19 = sld [smem:[#allocation0]]
  $region105: #{tpu_custom_call.1} parent=0
    _
  %s21 = ssub.s32 1, %s19
  %s22 = scalar_select 0, %s21, %s19
  $region1: #{tpu_custom_call.1} parent=0
    #allocation2 [shape = 'u8[8192]{0}', space=vmem, size = 0x2000, scoped, tag = 'output window, operand 0']
    #allocation3 [shape = 's32[2]{0}', space=sflag, size = 0x8, scoped, tag = 'scoped memory for tpu_custom_call.1']
    %23 = vsyncpa [#allocation3], 0
    %s24 = scalar_lea.sflag [#allocation3], 1
    %25 = vsyncpa %s24, 0
    loop: start=0, step=1, limit=4
    $region2: #{tpu_custom_call.1} parent=1 // loop_pre_header
      _
    $region3: #{tpu_custom_call.1} parent=1 // loop_header
      %s27 = sphi 0, %s31
      %p28 = scmp.ge.s32.totalorder %s27, 4
      %s37 = sphi 0, %s39
      %s40 = sphi 0, %s37
      %s41 = sphi 0, %s40
      %s57 = sphi 0, %s41
      %s63 = sphi 0, %s65
      %s66 = sphi 0, %s63
      %s67 = sphi 0, %s66
      %s83 = sphi 0, %s67
      %s89 = sphi 0, %s91
      %s92 = sphi 0, %s89
      %s93 = sphi 0, %s92
      %s109 = sphi 0, %s93
      %s115 = sphi 0, %s117
      %s118 = sphi 0, %s115
      %s119 = sphi 0, %s118
      %s135 = sphi 0, %s119
      %s139 = sphi 0, %s139
      %s141 = sphi 0, %s139
      %s142 = sphi 0, %s141
      %s156 = sphi 0, %s142
      %s160 = sphi 0, %s160
      %s162 = sphi 0, %s160
      %s163 = sphi 0, %s162
      %s177 = sphi 0, %s163
      %s181 = sphi 0, %s181
      %s183 = sphi 0, %s181
      %s184 = sphi 0, %s183
      %s198 = sphi 0, %s184
      %s202 = sphi 0, %s202
      %s204 = sphi 0, %s202
      %s205 = sphi 0, %s204
      %s219 = sphi 0, %s205
      %s223 = sphi 0, %s223
      %s225 = sphi 0, %s223
      %s226 = sphi 0, %s225
      %s240 = sphi 0, %s226
      %s244 = sphi 0, %s244
      %s246 = sphi 0, %s244
      %s247 = sphi 0, %s246
      %s261 = sphi 0, %s247
      %s265 = sphi 0, %s265
      %s267 = sphi 0, %s265
      %s268 = sphi 0, %s267
      %s282 = sphi 0, %s268
      %s286 = sphi 0, %s286
      %s288 = sphi 0, %s286
      %s289 = sphi 0, %s288
      %s303 = sphi 0, %s289
      %s307 = sphi 0, %s307
      %s309 = sphi 0, %s307
      %s310 = sphi 0, %s309
      %s324 = sphi 0, %s310
      %s328 = sphi 0, %s328
      %s330 = sphi 0, %s328
      %s331 = sphi 0, %s330
      %s345 = sphi 0, %s331
      %s349 = sphi 0, %s349
      %s351 = sphi 0, %s349
      %s352 = sphi 0, %s351
      %s366 = sphi 0, %s352
      %s370 = sphi 0, %s370
      %s372 = sphi 0, %s370
      %s373 = sphi 0, %s372
      %s387 = sphi 0, %s373
      %s391 = sphi 0, %s391
      %s393 = sphi 0, %s391
      %s394 = sphi 0, %s393
      %s408 = sphi 0, %s394
      %s412 = sphi 0, %s412
      %s414 = sphi 0, %s412
      %s415 = sphi 0, %s414
      %s429 = sphi 0, %s415
      %s435 = sphi 0, %s437
      %s438 = sphi 0, %s435
      %s439 = sphi 0, %s438
      %s455 = sphi 0, %s439
    $region4: #{tpu_custom_call.1} parent=1 // loop_header_branch
      %30 = sbr.rel (%p28) target = $region8
    $region5: #{tpu_custom_call.1} parent=1 // loop_body
      %s32 = ssub.s32 %s27, 1
      %s33 = ssub.s32 %s27, 2
      %s34 = sadd.s32 %s27, 1
      %s35 = ssub.s32 %s27, %s34
      %p36 = scmp.eq.s32.totalorder %s35, 0
      %s38 = sadd.s32 %s37, 1
      %s39 = scalar_select %p36, %s37, %s38
      %p42 = pneg %p36
      %p43 = scmp.eq.s32.totalorder %s27, 1
      %p44 = por %p42, %p43
      %p45 = scmp.ne.s32.totalorder %s37, %s40
      %p46 = scmp.eq.s32.totalorder %s27, 0
      %p47 = por %p45, %p46
      %p48 = scmp.ne.s32.totalorder %s37, %s40
      %p49 = scmp.eq.s32.totalorder %s32, 1
      %p50 = por %p48, %p49
      %p51 = scmp.ne.s32.totalorder %s40, %s41
      %p52 = scmp.eq.s32.totalorder %s32, 0
      %p53 = por %p51, %p52
      %p54 = scmp.ne.s32.totalorder %s40, %s41
      %p55 = scmp.eq.s32.totalorder %s33, 1
      %p56 = por %p54, %p55
      %p58 = scmp.ne.s32.totalorder %s41, %s57
      %p59 = scmp.eq.s32.totalorder %s33, 0
      %p60 = por %p58, %p59
      %s61 = ssub.s32 %s27, %s34
      %p62 = scmp.eq.s32.totalorder %s61, 0
      %s64 = sadd.s32 %s63, 1
      %s65 = scalar_select %p62, %s63, %s64
      %p68 = pneg %p62
      %p69 = scmp.eq.s32.totalorder %s27, 1
      %p70 = por %p68, %p69
      %p71 = scmp.ne.s32.totalorder %s63, %s66
      %p72 = scmp.eq.s32.totalorder %s27, 0
      %p73 = por %p71, %p72
      %p74 = scmp.ne.s32.totalorder %s63, %s66
      %p75 = scmp.eq.s32.totalorder %s32, 1
      %p76 = por %p74, %p75
      %p77 = scmp.ne.s32.totalorder %s66, %s67
      %p78 = scmp.eq.s32.totalorder %s32, 0
      %p79 = por %p77, %p78
      %p80 = scmp.ne.s32.totalorder %s66, %s67
      %p81 = scmp.eq.s32.totalorder %s33, 1
      %p82 = por %p80, %p81
      %p84 = scmp.ne.s32.totalorder %s67, %s83
      %p85 = scmp.eq.s32.totalorder %s33, 0
      %p86 = por %p84, %p85
      %s87 = ssub.s32 %s27, %s34
      %p88 = scmp.eq.s32.totalorder %s87, 0
      %s90 = sadd.s32 %s89, 1
      %s91 = scalar_select %p88, %s89, %s90
      %p94 = pneg %p88
      %p95 = scmp.eq.s32.totalorder %s27, 1
      %p96 = por %p94, %p95
      %p97 = scmp.ne.s32.totalorder %s89, %s92
      %p98 = scmp.eq.s32.totalorder %s27, 0
      %p99 = por %p97, %p98
      %p100 = scmp.ne.s32.totalorder %s89, %s92
      %p101 = scmp.eq.s32.totalorder %s32, 1
      %p102 = por %p100, %p101
      %p103 = scmp.ne.s32.totalorder %s92, %s93
      %p104 = scmp.eq.s32.totalorder %s32, 0
      %p105 = por %p103, %p104
      %p106 = scmp.ne.s32.totalorder %s92, %s93
      %p107 = scmp.eq.s32.totalorder %s33, 1
      %p108 = por %p106, %p107
      %p110 = scmp.ne.s32.totalorder %s93, %s109
      %p111 = scmp.eq.s32.totalorder %s33, 0
      %p112 = por %p110, %p111
      %s113 = ssub.s32 %s27, %s34
      %p114 = scmp.eq.s32.totalorder %s113, 0
      %s116 = sadd.s32 %s115, 1
      %s117 = scalar_select %p114, %s115, %s116
      %p120 = pneg %p114
      %p121 = scmp.eq.s32.totalorder %s27, 1
      %p122 = por %p120, %p121
      %p123 = scmp.ne.s32.totalorder %s115, %s118
      %p124 = scmp.eq.s32.totalorder %s27, 0
      %p125 = por %p123, %p124
      %p126 = scmp.ne.s32.totalorder %s115, %s118
      %p127 = scmp.eq.s32.totalorder %s32, 1
      %p128 = por %p126, %p127
      %p129 = scmp.ne.s32.totalorder %s118, %s119
      %p130 = scmp.eq.s32.totalorder %s32, 0
      %p131 = por %p129, %p130
      %p132 = scmp.ne.s32.totalorder %s118, %s119
      %p133 = scmp.eq.s32.totalorder %s33, 1
      %p134 = por %p132, %p133
      %p136 = scmp.ne.s32.totalorder %s119, %s135
      %p137 = scmp.eq.s32.totalorder %s33, 0
      %p138 = por %p136, %p137
      %s140 = sadd.s32 %s139, 1
      %p143 = scmp.eq.s32.totalorder %s27, 1
      %p144 = scmp.ne.s32.totalorder %s139, %s141
      %p145 = scmp.eq.s32.totalorder %s27, 0
      %p146 = por %p144, %p145
      %p147 = scmp.ne.s32.totalorder %s139, %s141
      %p148 = scmp.eq.s32.totalorder %s32, 1
      %p149 = por %p147, %p148
      %p150 = scmp.ne.s32.totalorder %s141, %s142
      %p151 = scmp.eq.s32.totalorder %s32, 0
      %p152 = por %p150, %p151
      %p153 = scmp.ne.s32.totalorder %s141, %s142
      %p154 = scmp.eq.s32.totalorder %s33, 1
      %p155 = por %p153, %p154
      %p157 = scmp.ne.s32.totalorder %s142, %s156
      %p158 = scmp.eq.s32.totalorder %s33, 0
      %p159 = por %p157, %p158
      %s161 = sadd.s32 %s160, 1
      %p164 = scmp.eq.s32.totalorder %s27, 1
      %p165 = scmp.ne.s32.totalorder %s160, %s162
      %p166 = scmp.eq.s32.totalorder %s27, 0
      %p167 = por %p165, %p166
      %p168 = scmp.ne.s32.totalorder %s160, %s162
      %p169 = scmp.eq.s32.totalorder %s32, 1
      %p170 = por %p168, %p169
      %p171 = scmp.ne.s32.totalorder %s162, %s163
      %p172 = scmp.eq.s32.totalorder %s32, 0
      %p173 = por %p171, %p172
      %p174 = scmp.ne.s32.totalorder %s162, %s163
      %p175 = scmp.eq.s32.totalorder %s33, 1
      %p176 = por %p174, %p175
      %p178 = scmp.ne.s32.totalorder %s163, %s177
      %p179 = scmp.eq.s32.totalorder %s33, 0
      %p180 = por %p178, %p179
      %s182 = sadd.s32 %s181, 1
      %p185 = scmp.eq.s32.totalorder %s27, 1
      %p186 = scmp.ne.s32.totalorder %s181, %s183
      %p187 = scmp.eq.s32.totalorder %s27, 0
      %p188 = por %p186, %p187
      %p189 = scmp.ne.s32.totalorder %s181, %s183
      %p190 = scmp.eq.s32.totalorder %s32, 1
      %p191 = por %p189, %p190
      %p192 = scmp.ne.s32.totalorder %s183, %s184
      %p193 = scmp.eq.s32.totalorder %s32, 0
      %p194 = por %p192, %p193
      %p195 = scmp.ne.s32.totalorder %s183, %s184
      %p196 = scmp.eq.s32.totalorder %s33, 1
      %p197 = por %p195, %p196
      %p199 = scmp.ne.s32.totalorder %s184, %s198
      %p200 = scmp.eq.s32.totalorder %s33, 0
      %p201 = por %p199, %p200
      %s203 = sadd.s32 %s202, 1
      %p206 = scmp.eq.s32.totalorder %s27, 1
      %p207 = scmp.ne.s32.totalorder %s202, %s204
      %p208 = scmp.eq.s32.totalorder %s27, 0
      %p209 = por %p207, %p208
      %p210 = scmp.ne.s32.totalorder %s202, %s204
      %p211 = scmp.eq.s32.totalorder %s32, 1
      %p212 = por %p210, %p211
      %p213 = scmp.ne.s32.totalorder %s204, %s205
      %p214 = scmp.eq.s32.totalorder %s32, 0
      %p215 = por %p213, %p214
      %p216 = scmp.ne.s32.totalorder %s204, %s205
      %p217 = scmp.eq.s32.totalorder %s33, 1
      %p218 = por %p216, %p217
      %p220 = scmp.ne.s32.totalorder %s205, %s219
      %p221 = scmp.eq.s32.totalorder %s33, 0
      %p222 = por %p220, %p221
      %s224 = sadd.s32 %s223, 1
      %p227 = scmp.eq.s32.totalorder %s27, 1
      %p228 = scmp.ne.s32.totalorder %s223, %s225
      %p229 = scmp.eq.s32.totalorder %s27, 0
      %p230 = por %p228, %p229
      %p231 = scmp.ne.s32.totalorder %s223, %s225
      %p232 = scmp.eq.s32.totalorder %s32, 1
      %p233 = por %p231, %p232
      %p234 = scmp.ne.s32.totalorder %s225, %s226
      %p235 = scmp.eq.s32.totalorder %s32, 0
      %p236 = por %p234, %p235
      %p237 = scmp.ne.s32.totalorder %s225, %s226
      %p238 = scmp.eq.s32.totalorder %s33, 1
      %p239 = por %p237, %p238
      %p241 = scmp.ne.s32.totalorder %s226, %s240
      %p242 = scmp.eq.s32.totalorder %s33, 0
      %p243 = por %p241, %p242
      %s245 = sadd.s32 %s244, 1
      %p248 = scmp.eq.s32.totalorder %s27, 1
      %p249 = scmp.ne.s32.totalorder %s244, %s246
      %p250 = scmp.eq.s32.totalorder %s27, 0
      %p251 = por %p249, %p250
      %p252 = scmp.ne.s32.totalorder %s244, %s246
      %p253 = scmp.eq.s32.totalorder %s32, 1
      %p254 = por %p252, %p253
      %p255 = scmp.ne.s32.totalorder %s246, %s247
      %p256 = scmp.eq.s32.totalorder %s32, 0
      %p257 = por %p255, %p256
      %p258 = scmp.ne.s32.totalorder %s246, %s247
      %p259 = scmp.eq.s32.totalorder %s33, 1
      %p260 = por %p258, %p259
      %p262 = scmp.ne.s32.totalorder %s247, %s261
      %p263 = scmp.eq.s32.totalorder %s33, 0
      %p264 = por %p262, %p263
      %s266 = sadd.s32 %s265, 1
      %p269 = scmp.eq.s32.totalorder %s27, 1
      %p270 = scmp.ne.s32.totalorder %s265, %s267
      %p271 = scmp.eq.s32.totalorder %s27, 0
      %p272 = por %p270, %p271
      %p273 = scmp.ne.s32.totalorder %s265, %s267
      %p274 = scmp.eq.s32.totalorder %s32, 1
      %p275 = por %p273, %p274
      %p276 = scmp.ne.s32.totalorder %s267, %s268
      %p277 = scmp.eq.s32.totalorder %s32, 0
      %p278 = por %p276, %p277
      %p279 = scmp.ne.s32.totalorder %s267, %s268
      %p280 = scmp.eq.s32.totalorder %s33, 1
      %p281 = por %p279, %p280
      %p283 = scmp.ne.s32.totalorder %s268, %s282
      %p284 = scmp.eq.s32.totalorder %s33, 0
      %p285 = por %p283, %p284
      %s287 = sadd.s32 %s286, 1
      %p290 = scmp.eq.s32.totalorder %s27, 1
      %p291 = scmp.ne.s32.totalorder %s286, %s288
      %p292 = scmp.eq.s32.totalorder %s27, 0
      %p293 = por %p291, %p292
      %p294 = scmp.ne.s32.totalorder %s286, %s288
      %p295 = scmp.eq.s32.totalorder %s32, 1
      %p296 = por %p294, %p295
      %p297 = scmp.ne.s32.totalorder %s288, %s289
      %p298 = scmp.eq.s32.totalorder %s32, 0
      %p299 = por %p297, %p298
      %p300 = scmp.ne.s32.totalorder %s288, %s289
      %p301 = scmp.eq.s32.totalorder %s33, 1
      %p302 = por %p300, %p301
      %p304 = scmp.ne.s32.totalorder %s289, %s303
      %p305 = scmp.eq.s32.totalorder %s33, 0
      %p306 = por %p304, %p305
      %s308 = sadd.s32 %s307, 1
      %p311 = scmp.eq.s32.totalorder %s27, 1
      %p312 = scmp.ne.s32.totalorder %s307, %s309
      %p313 = scmp.eq.s32.totalorder %s27, 0
      %p314 = por %p312, %p313
      %p315 = scmp.ne.s32.totalorder %s307, %s309
      %p316 = scmp.eq.s32.totalorder %s32, 1
      %p317 = por %p315, %p316
      %p318 = scmp.ne.s32.totalorder %s309, %s310
      %p319 = scmp.eq.s32.totalorder %s32, 0
      %p320 = por %p318, %p319
      %p321 = scmp.ne.s32.totalorder %s309, %s310
      %p322 = scmp.eq.s32.totalorder %s33, 1
      %p323 = por %p321, %p322
      %p325 = scmp.ne.s32.totalorder %s310, %s324
      %p326 = scmp.eq.s32.totalorder %s33, 0
      %p327 = por %p325, %p326
      %s329 = sadd.s32 %s328, 1
      %p332 = scmp.eq.s32.totalorder %s27, 1
      %p333 = scmp.ne.s32.totalorder %s328, %s330
      %p334 = scmp.eq.s32.totalorder %s27, 0
      %p335 = por %p333, %p334
      %p336 = scmp.ne.s32.totalorder %s328, %s330
      %p337 = scmp.eq.s32.totalorder %s32, 1
      %p338 = por %p336, %p337
      %p339 = scmp.ne.s32.totalorder %s330, %s331
      %p340 = scmp.eq.s32.totalorder %s32, 0
      %p341 = por %p339, %p340
      %p342 = scmp.ne.s32.totalorder %s330, %s331
      %p343 = scmp.eq.s32.totalorder %s33, 1
      %p344 = por %p342, %p343
      %p346 = scmp.ne.s32.totalorder %s331, %s345
      %p347 = scmp.eq.s32.totalorder %s33, 0
      %p348 = por %p346, %p347
      %s350 = sadd.s32 %s349, 1
      %p353 = scmp.eq.s32.totalorder %s27, 1
      %p354 = scmp.ne.s32.totalorder %s349, %s351
      %p355 = scmp.eq.s32.totalorder %s27, 0
      %p356 = por %p354, %p355
      %p357 = scmp.ne.s32.totalorder %s349, %s351
      %p358 = scmp.eq.s32.totalorder %s32, 1
      %p359 = por %p357, %p358
      %p360 = scmp.ne.s32.totalorder %s351, %s352
      %p361 = scmp.eq.s32.totalorder %s32, 0
      %p362 = por %p360, %p361
      %p363 = scmp.ne.s32.totalorder %s351, %s352
      %p364 = scmp.eq.s32.totalorder %s33, 1
      %p365 = por %p363, %p364
      %p367 = scmp.ne.s32.totalorder %s352, %s366
      %p368 = scmp.eq.s32.totalorder %s33, 0
      %p369 = por %p367, %p368
      %s371 = sadd.s32 %s370, 1
      %p374 = scmp.eq.s32.totalorder %s27, 1
      %p375 = scmp.ne.s32.totalorder %s370, %s372
      %p376 = scmp.eq.s32.totalorder %s27, 0
      %p377 = por %p375, %p376
      %p378 = scmp.ne.s32.totalorder %s370, %s372
      %p379 = scmp.eq.s32.totalorder %s32, 1
      %p380 = por %p378, %p379
      %p381 = scmp.ne.s32.totalorder %s372, %s373
      %p382 = scmp.eq.s32.totalorder %s32, 0
      %p383 = por %p381, %p382
      %p384 = scmp.ne.s32.totalorder %s372, %s373
      %p385 = scmp.eq.s32.totalorder %s33, 1
      %p386 = por %p384, %p385
      %p388 = scmp.ne.s32.totalorder %s373, %s387
      %p389 = scmp.eq.s32.totalorder %s33, 0
      %p390 = por %p388, %p389
      %s392 = sadd.s32 %s391, 1
      %p395 = scmp.eq.s32.totalorder %s27, 1
      %p396 = scmp.ne.s32.totalorder %s391, %s393
      %p397 = scmp.eq.s32.totalorder %s27, 0
      %p398 = por %p396, %p397
      %p399 = scmp.ne.s32.totalorder %s391, %s393
      %p400 = scmp.eq.s32.totalorder %s32, 1
      %p401 = por %p399, %p400
      %p402 = scmp.ne.s32.totalorder %s393, %s394
      %p403 = scmp.eq.s32.totalorder %s32, 0
      %p404 = por %p402, %p403
      %p405 = scmp.ne.s32.totalorder %s393, %s394
      %p406 = scmp.eq.s32.totalorder %s33, 1
      %p407 = por %p405, %p406
      %p409 = scmp.ne.s32.totalorder %s394, %s408
      %p410 = scmp.eq.s32.totalorder %s33, 0
      %p411 = por %p409, %p410
      %s413 = sadd.s32 %s412, 1
      %p416 = scmp.eq.s32.totalorder %s27, 1
      %p417 = scmp.ne.s32.totalorder %s412, %s414
      %p418 = scmp.eq.s32.totalorder %s27, 0
      %p419 = por %p417, %p418
      %p420 = scmp.ne.s32.totalorder %s412, %s414
      %p421 = scmp.eq.s32.totalorder %s32, 1
      %p422 = por %p420, %p421
      %p423 = scmp.ne.s32.totalorder %s414, %s415
      %p424 = scmp.eq.s32.totalorder %s32, 0
      %p425 = por %p423, %p424
      %p426 = scmp.ne.s32.totalorder %s414, %s415
      %p427 = scmp.eq.s32.totalorder %s33, 1
      %p428 = por %p426, %p427
      %p430 = scmp.ne.s32.totalorder %s415, %s429
      %p431 = scmp.eq.s32.totalorder %s33, 0
      %p432 = por %p430, %p431
      %s433 = ssub.s32 %s27, %s34
      %p434 = scmp.eq.s32.totalorder %s433, 0
      %s436 = sadd.s32 %s435, 1
      %s437 = scalar_select %p434, %s435, %s436
      %p440 = pneg %p434
      %p441 = scmp.eq.s32.totalorder %s27, 1
      %p442 = por %p440, %p441
      %p443 = scmp.ne.s32.totalorder %s435, %s438
      %p444 = scmp.eq.s32.totalorder %s27, 0
      %p445 = por %p443, %p444
      %p446 = scmp.ne.s32.totalorder %s435, %s438
      %p447 = scmp.eq.s32.totalorder %s32, 1
      %p448 = por %p446, %p447
      %p449 = scmp.ne.s32.totalorder %s438, %s439
      %p450 = scmp.eq.s32.totalorder %s32, 0
      %p451 = por %p449, %p450
      %p452 = scmp.ne.s32.totalorder %s438, %s439
      %p453 = scmp.eq.s32.totalorder %s33, 1
      %p454 = por %p452, %p453
      %p456 = scmp.ne.s32.totalorder %s439, %s455
      %p457 = scmp.eq.s32.totalorder %s33, 0
      %p458 = por %p456, %p457
      %p459 = scmp.le.s32.totalorder 1, %s27
      %p460 = scmp.lt.s32.totalorder %s27, 3
      %p461 = pnand %p459, %p460
      %p462 = pneg %p461
      // Predicated region
      $region9: #{tpu_custom_call.1} parent=5 // pred_check
        _
      $region10: #{tpu_custom_call.1} parent=5 // pred_check_branch
        %464 = sbr.rel (%p461) target = $region12
      $region11: #{tpu_custom_call.1} parent=5 // pred_region
        %s465 = ssub.s32 %s27, 1
        // Predicated region
        $region13: #{tpu_custom_call.1} parent=11 // pred_check
          %p466 = pneg %p152
        $region14: #{tpu_custom_call.1} parent=11 // pred_check_branch
          %468 = sbr.rel (%p466) target = $region16
        $region15: #{tpu_custom_call.1} parent=11 // pred_region
          _
        $region16: #{tpu_custom_call.1} parent=11 // pred_fallthru
          _
        // Predicated region
        $region17: #{tpu_custom_call.1} parent=11 // pred_check
          %p469 = pneg %p173
        $region18: #{tpu_custom_call.1} parent=11 // pred_check_branch
          %471 = sbr.rel (%p469) target = $region20
        $region19: #{tpu_custom_call.1} parent=11 // pred_region
          _
        $region20: #{tpu_custom_call.1} parent=11 // pred_fallthru
          _
        // Predicated region
        $region21: #{tpu_custom_call.1} parent=11 // pred_check
          %p472 = pneg %p194
        $region22: #{tpu_custom_call.1} parent=11 // pred_check_branch
          %474 = sbr.rel (%p472) target = $region24
        $region23: #{tpu_custom_call.1} parent=11 // pred_region
          _
        $region24: #{tpu_custom_call.1} parent=11 // pred_fallthru
          _
        // Predicated region
        $region25: #{tpu_custom_call.1} parent=11 // pred_check
          %p475 = pneg %p215
        $region26: #{tpu_custom_call.1} parent=11 // pred_check_branch
          %477 = sbr.rel (%p475) target = $region28
        $region27: #{tpu_custom_call.1} parent=11 // pred_region
          _
        $region28: #{tpu_custom_call.1} parent=11 // pred_fallthru
          _
        // Predicated region
        $region29: #{tpu_custom_call.1} parent=11 // pred_check
          %p478 = pneg %p236
        $region30: #{tpu_custom_call.1} parent=11 // pred_check_branch
          %480 = sbr.rel (%p478) target = $region32
        $region31: #{tpu_custom_call.1} parent=11 // pred_region
          _
        $region32: #{tpu_custom_call.1} parent=11 // pred_fallthru
          _
        // Predicated region
        $region33: #{tpu_custom_call.1} parent=11 // pred_check
          %p481 = pneg %p257
        $region34: #{tpu_custom_call.1} parent=11 // pred_check_branch
          %483 = sbr.rel (%p481) target = $region36
        $region35: #{tpu_custom_call.1} parent=11 // pred_region
          _
        $region36: #{tpu_custom_call.1} parent=11 // pred_fallthru
          _
        // Predicated region
        $region37: #{tpu_custom_call.1} parent=11 // pred_check
          %p484 = pneg %p278
        $region38: #{tpu_custom_call.1} parent=11 // pred_check_branch
          %486 = sbr.rel (%p484) target = $region40
        $region39: #{tpu_custom_call.1} parent=11 // pred_region
          _
        $region40: #{tpu_custom_call.1} parent=11 // pred_fallthru
          _
        // Predicated region
        $region41: #{tpu_custom_call.1} parent=11 // pred_check
          %p487 = pneg %p299
        $region42: #{tpu_custom_call.1} parent=11 // pred_check_branch
          %489 = sbr.rel (%p487) target = $region44
        $region43: #{tpu_custom_call.1} parent=11 // pred_region
          _
        $region44: #{tpu_custom_call.1} parent=11 // pred_fallthru
          _
        // Predicated region
        $region45: #{tpu_custom_call.1} parent=11 // pred_check
          %p490 = pneg %p320
        $region46: #{tpu_custom_call.1} parent=11 // pred_check_branch
          %492 = sbr.rel (%p490) target = $region48
        $region47: #{tpu_custom_call.1} parent=11 // pred_region
          _
        $region48: #{tpu_custom_call.1} parent=11 // pred_fallthru
          _
        // Predicated region
        $region49: #{tpu_custom_call.1} parent=11 // pred_check
          %p493 = pneg %p341
        $region50: #{tpu_custom_call.1} parent=11 // pred_check_branch
          %495 = sbr.rel (%p493) target = $region52
        $region51: #{tpu_custom_call.1} parent=11 // pred_region
          _
        $region52: #{tpu_custom_call.1} parent=11 // pred_fallthru
          _
        // Predicated region
        $region53: #{tpu_custom_call.1} parent=11 // pred_check
          %p496 = pneg %p362
        $region54: #{tpu_custom_call.1} parent=11 // pred_check_branch
          %498 = sbr.rel (%p496) target = $region56
        $region55: #{tpu_custom_call.1} parent=11 // pred_region
          _
        $region56: #{tpu_custom_call.1} parent=11 // pred_fallthru
          _
        // Predicated region
        $region57: #{tpu_custom_call.1} parent=11 // pred_check
          %p499 = pneg %p383
        $region58: #{tpu_custom_call.1} parent=11 // pred_check_branch
          %501 = sbr.rel (%p499) target = $region60
        $region59: #{tpu_custom_call.1} parent=11 // pred_region
          _
        $region60: #{tpu_custom_call.1} parent=11 // pred_fallthru
          _
        // Predicated region
        $region61: #{tpu_custom_call.1} parent=11 // pred_check
          %p502 = pneg %p404
        $region62: #{tpu_custom_call.1} parent=11 // pred_check_branch
          %504 = sbr.rel (%p502) target = $region64
        $region63: #{tpu_custom_call.1} parent=11 // pred_region
          _
        $region64: #{tpu_custom_call.1} parent=11 // pred_fallthru
          _
        // Predicated region
        $region65: #{tpu_custom_call.1} parent=11 // pred_check
          %p505 = pneg %p425
        $region66: #{tpu_custom_call.1} parent=11 // pred_check_branch
          %507 = sbr.rel (%p505) target = $region68
        $region67: #{tpu_custom_call.1} parent=11 // pred_region
          _
        $region68: #{tpu_custom_call.1} parent=11 // pred_fallthru
          _
      $region12: #{tpu_custom_call.1} parent=5 // pred_fallthru
        _
      %p508 = scmp.lt.s32.totalorder %s27, 2
      // Predicated region
      $region69: #{tpu_custom_call.1} parent=5 // pred_check
        %p509 = pneg %p508
      $region70: #{tpu_custom_call.1} parent=5 // pred_check_branch
        %511 = sbr.rel (%p509) target = $region72
      $region71: #{tpu_custom_call.1} parent=5 // pred_region
        // Predicated region
        $region73: #{tpu_custom_call.1} parent=71 // pred_check
          %p512 = pneg %p47
        $region74: #{tpu_custom_call.1} parent=71 // pred_check_branch
          %514 = sbr.rel (%p512) target = $region76
        $region75: #{tpu_custom_call.1} parent=71 // pred_region
          %p515 = scmp.lt.s32.totalorder %s27, 1
          %s516 = scalar_select %p515, %s27, 1
          %s517 = smul.addr %s516, 8
          %s518 = scalar_lea.vmem %s0, %s517
        $region76: #{tpu_custom_call.1} parent=71 // pred_fallthru
          _
        // Predicated region
        $region77: #{tpu_custom_call.1} parent=71 // pred_check
          %p519 = pneg %p73
        $region78: #{tpu_custom_call.1} parent=71 // pred_check_branch
          %521 = sbr.rel (%p519) target = $region80
        $region79: #{tpu_custom_call.1} parent=71 // pred_region
          %p522 = scmp.lt.s32.totalorder %s27, 1
          %s523 = scalar_select %p522, %s27, 1
          %s524 = smul.addr %s523, 2
          %s525 = smul.addr %s524, 8
          %s526 = scalar_lea.vmem %s1, %s525
        $region80: #{tpu_custom_call.1} parent=71 // pred_fallthru
          _
        // Predicated region
        $region81: #{tpu_custom_call.1} parent=71 // pred_check
          %p527 = pneg %p99
        $region82: #{tpu_custom_call.1} parent=71 // pred_check_branch
          %529 = sbr.rel (%p527) target = $region84
        $region83: #{tpu_custom_call.1} parent=71 // pred_region
          %p530 = scmp.lt.s32.totalorder %s27, 1
          %s531 = scalar_select %p530, %s27, 1
          %s532 = smul.addr %s531, 2
          %s533 = smul.addr %s532, 8
          %s534 = scalar_lea.vmem %s2, %s533
        $region84: #{tpu_custom_call.1} parent=71 // pred_fallthru
          _
        // Predicated region
        $region85: #{tpu_custom_call.1} parent=71 // pred_check
          %p535 = pneg %p125
        $region86: #{tpu_custom_call.1} parent=71 // pred_check_branch
          %537 = sbr.rel (%p535) target = $region88
        $region87: #{tpu_custom_call.1} parent=71 // pred_region
          %p538 = scmp.lt.s32.totalorder %s27, 1
          %s539 = scalar_select %p538, %s27, 1
          %s540 = smul.addr %s539, 2
          %s541 = smul.addr %s540, 8
          %s542 = scalar_lea.vmem %s3, %s541
        $region88: #{tpu_custom_call.1} parent=71 // pred_fallthru
          _
      $region72: #{tpu_custom_call.1} parent=5 // pred_fallthru
        _
      %p543 = scmp.le.s32.totalorder 1, %s27
      %p544 = scmp.lt.s32.totalorder %s27, 3
      %p545 = pnand %p543, %p544
      %p546 = pneg %p545
      // Predicated region
      $region89: #{tpu_custom_call.1} parent=5 // pred_check
        _
      $region90: #{tpu_custom_call.1} parent=5 // pred_check_branch
        %548 = sbr.rel (%p545) target = $region92
      $region91: #{tpu_custom_call.1} parent=5 // pred_region
        %s549 = ssub.s32 %s27, 1
        %p550 = scmp.lt.s32.totalorder %s32, 1
        %s551 = scalar_select %p550, %s32, 1
        %s552 = smul.addr %s551, 8
        %s553 = scalar_lea.vmem %s0, %s552
        %p554 = pneg %p53
        %p555 = pneg %p50
        %p556 = scmp.lt.s32.totalorder %s32, 1
        %s557 = scalar_select %p556, %s32, 1
        %s558 = smul.addr %s557, 2
        %s559 = smul.addr %s558, 8
        %s560 = scalar_lea.vmem %s1, %s559
        %p561 = pneg %p79
        %p562 = pneg %p76
        %p563 = scmp.lt.s32.totalorder %s32, 1
        %s564 = scalar_select %p563, %s32, 1
        %s565 = smul.addr %s564, 2
        %s566 = smul.addr %s565, 8
        %s567 = scalar_lea.vmem %s2, %s566
        %p568 = pneg %p105
        %p569 = pneg %p102
        %p570 = scmp.lt.s32.totalorder %s32, 1
        %s571 = scalar_select %p570, %s32, 1
        %s572 = smul.addr %s571, 2
        %s573 = smul.addr %s572, 8
        %s574 = scalar_lea.vmem %s3, %s573
        %p575 = pneg %p131
        %p576 = pneg %p128
        %p577 = pneg %p152
        %p578 = pneg %p149
        %p579 = pneg %p173
        %p580 = pneg %p170
        %p581 = pneg %p194
        %p582 = pneg %p191
        %p583 = pneg %p215
        %p584 = pneg %p212
        %p585 = pneg %p236
        %p586 = pneg %p233
        %p587 = pneg %p257
        %p588 = pneg %p254
        %p589 = pneg %p278
        %p590 = pneg %p275
        %p591 = pneg %p299
        %p592 = pneg %p296
        %p593 = pneg %p320
        %p594 = pneg %p317
        %p595 = pneg %p341
        %p596 = pneg %p338
        %p597 = pneg %p362
        %p598 = pneg %p359
        %p599 = pneg %p383
        %p600 = pneg %p380
        %p601 = pneg %p404
        %p602 = pneg %p401
        %p603 = pneg %p425
        %p604 = pneg %p422
        %p605 = pneg %p451
        %p606 = pneg %p448
        %s607 = sand.u32 %s438, 1
        %s608 = scalar_lea.sflag [#allocation3], %s607
        %s609 = sand.u32 %s438, 1
        %s610 = smul.addr %s609, 8
        %s611 = scalar_lea.vmem [#allocation2], %s610
        %p612 = scmp.lt.s32.totalorder %s32, 1
        %s613 = scalar_select %p612, %s32, 1
        %s614 = smul.addr %s613, 8
        %s615 = scalar_lea.vmem %s0, %s614
        %p616 = scmp.lt.s32.totalorder %s32, 1
        %s617 = scalar_select %p616, %s32, 1
        %s618 = smul.addr %s617, 2
        %s619 = smul.addr %s618, 8
        %s620 = scalar_lea.vmem %s1, %s619
        %p621 = scmp.lt.s32.totalorder %s32, 1
        %s622 = scalar_select %p621, %s32, 1
        %s623 = smul.addr %s622, 2
        %s624 = smul.addr %s623, 8
        %s625 = scalar_lea.vmem %s2, %s624
        %p626 = scmp.lt.s32.totalorder %s32, 1
        %s627 = scalar_select %p626, %s32, 1
        %s628 = smul.addr %s627, 2
        %s629 = smul.addr %s628, 8
        %s630 = scalar_lea.vmem %s3, %s629
        %v632 = vld [vmem:[%s615] sm:$0xff]
        %v633 = vld [vmem:[%s4] sm:$0xff]
        %v634 = vld [vmem:[%s5] sm:$0xff]
        %v635 = vpack.c.bf16 %v632, %v632
        %v636 = vld [vmem:[%s6] sm:$0xf]
        %v637 = vld [vmem:[%s6 + $0x4] sm:$0xf]
        %v638 = vld [vmem:[%s6 + $0x8] sm:$0xf]
        %v639 = vld [vmem:[%s6 + $0xc] sm:$0xf]
        %v640 = vld [vmem:[%s9] sm:$0x1]
        %v642 = vperm.slane %v640, 0
        %v648 = vunpack.c.l.b16 %v636
        %v649 = vunpack.c.l.b16 %v637
        %v650 = vunpack.c.l.b16 %v638
        %v651 = vunpack.c.l.b16 %v639
        %v652 = vpack.c.b16 %v649, %v648
        %v653 = vpack.c.b16 %v651, %v650
        %vm656 = vcmask 261120
        %v658 = vsel %vm656, %v635, 0
        %660 = vmatpush.bf16.msra.mxu0 0
        %661 = vmatpush.bf16.msra.mxu0 0
        %662 = vmatpush.bf16.msra.mxu0 0
        %663 = vmatpush.bf16.msra.mxu0 0
        %664 = vmatpush.bf16.msra.mxu0 0
        %665 = vmatpush.bf16.msra.mxu0 0
        %666 = vmatpush.bf16.msra.mxu0 %v653
        %667 = vmatpush.bf16.msra.mxu0 %v652
        %668 = vmatmul.bf16.gmra.mxu0 %v658
        %v669 = vpop.f32.mrf.mxu0
        %v670 = vadd.f32 %v642, %v669
        %v671 = vpop.f32.mrf.mxu0
        %672 = vdwg.mxu0
        %v673 = vmul.f32 %v670, 0.35355338
        %v674 = vpack.c.bf16 %v673, %v673
        %v675 = vld [vmem:[%s7] sm:$0xf]
        %v676 = vld [vmem:[%s7 + $0x4] sm:$0xf]
        %v677 = vld [vmem:[%s7 + $0x8] sm:$0xf]
        %v678 = vld [vmem:[%s7 + $0xc] sm:$0xf]
        %v679 = vld [vmem:[%s7 + $0x10] sm:$0xf]
        %v680 = vld [vmem:[%s7 + $0x14] sm:$0xf]
        %v681 = vld [vmem:[%s7 + $0x18] sm:$0xf]
        %v682 = vld [vmem:[%s7 + $0x1c] sm:$0xf]
        %v683 = vld [vmem:[%s10] sm:$0xff]
        %v684 = vld [vmem:[%s10 + $0x8] sm:$0xff]
        %v685 = vld [vmem:[%s10 + $0x10] sm:$0xff]
        %v686 = vld [vmem:[%s10 + $0x18] sm:$0xff]
        %v687 = vld [vmem:[%s10 + $0x20] sm:$0xff]
        %v688 = vld [vmem:[%s10 + $0x28] sm:$0xff]
        %v689 = vld [vmem:[%s10 + $0x30] sm:$0xff]
        %v690 = vld [vmem:[%s10 + $0x38] sm:$0xff]
        %692 = vset.pattern.permute.xlu0 0
        %693 = vperm.xlu0 %692, %v683
        %v694 = vpop.permute.xlu0 %693
        %697 = vset.pattern.permute.xlu0 0
        %698 = vperm.xlu0 %697, %v684
        %v699 = vpop.permute.xlu0 %698
        %702 = vset.pattern.permute.xlu0 0
        %703 = vperm.xlu0 %702, %v685
        %v704 = vpop.permute.xlu0 %703
        %707 = vset.pattern.permute.xlu0 0
        %708 = vperm.xlu0 %707, %v686
        %v709 = vpop.permute.xlu0 %708
        %712 = vset.pattern.permute.xlu0 0
        %713 = vperm.xlu0 %712, %v687
        %v714 = vpop.permute.xlu0 %713
        %717 = vset.pattern.permute.xlu0 0
        %718 = vperm.xlu0 %717, %v688
        %v719 = vpop.permute.xlu0 %718
        %722 = vset.pattern.permute.xlu0 0
        %723 = vperm.xlu0 %722, %v689
        %v724 = vpop.permute.xlu0 %723
        %727 = vset.pattern.permute.xlu0 0
        %728 = vperm.xlu0 %727, %v690
        %v729 = vpop.permute.xlu0 %728
        %v739 = vunpack.c.l.b16 %v675
        %v740 = vunpack.c.l.b16 %v676
        %v741 = vunpack.c.l.b16 %v677
        %v742 = vunpack.c.l.b16 %v678
        %v743 = vunpack.c.l.b16 %v679
        %v744 = vunpack.c.l.b16 %v680
        %v745 = vunpack.c.l.b16 %v681
        %v746 = vunpack.c.l.b16 %v682
        %v747 = vpack.c.b16 %v740, %v739
        %v748 = vpack.c.b16 %v742, %v741
        %v749 = vpack.c.b16 %v744, %v743
        %v750 = vpack.c.b16 %v746, %v745
        %v752 = vsel %vm656, %v747, 0
        %v755 = vsel %vm656, %v748, 0
        %v758 = vsel %vm656, %v749, 0
        %v761 = vsel %vm656, %v750, 0
        %763 = vmatpush.bf16.xpose.msra.mxu0 0
        %764 = vmatpush.bf16.xpose.msra.mxu0 0
        %765 = vmatpush.bf16.xpose.msra.mxu0 0
        %766 = vmatpush.bf16.xpose.msra.mxu0 0
        %767 = vmatpush.bf16.xpose.msra.mxu0 0
        %768 = vmatpush.bf16.xpose.msra.mxu0 0
        %769 = vmatpush.bf16.xpose.msra.mxu0 0
        %770 = vmatpush.bf16.xpose.msra.mxu0 %v658
        %771 = vmatmul.bf16.gmra.mxu0 %v752
        %v772 = vpop.f32.mrf.mxu0
        %v773 = vadd.f32 %v694, %v772
        %v774 = vpop.f32.mrf.mxu0
        %v775 = vadd.f32 %v699, %v774
        %776 = vmatmul.bf16.gmra.mxu0 %v755
        %v777 = vpop.f32.mrf.mxu0
        %v778 = vadd.f32 %v704, %v777
        %v779 = vpop.f32.mrf.mxu0
        %v780 = vadd.f32 %v709, %v779
        %781 = vmatmul.bf16.gmra.mxu0 %v758
        %v782 = vpop.f32.mrf.mxu0
        %v783 = vadd.f32 %v714, %v782
        %v784 = vpop.f32.mrf.mxu0
        %v785 = vadd.f32 %v719, %v784
        %786 = vmatmul.bf16.gmra.mxu0 %v761
        %v787 = vpop.f32.mrf.mxu0
        %v788 = vadd.f32 %v724, %v787
        %v789 = vpop.f32.mrf.mxu0
        %v790 = vadd.f32 %v729, %v789
        %791 = vdwg.mxu0
        %v792 = vpack.c.bf16 %v773, %v773
        %v793 = vpack.c.bf16 %v775, %v775
        %v794 = vpack.c.bf16 %v778, %v778
        %v795 = vpack.c.bf16 %v780, %v780
        %v796 = vpack.c.bf16 %v783, %v783
        %v797 = vpack.c.bf16 %v785, %v785
        %v798 = vpack.c.bf16 %v788, %v788
        %v799 = vpack.c.bf16 %v790, %v790
        %vm800 = vcmask 64512
        %v802 = vsel %vm800, %v674, 0
        %vm804 = vcmask 1043456
        %v806 = vsel %vm804, %v792, 0
        %808 = vmatpush.bf16.msra.mxu0 0
        %809 = vmatpush.bf16.msra.mxu0 0
        %810 = vmatpush.bf16.msra.mxu0 0
        %811 = vmatpush.bf16.msra.mxu0 0
        %812 = vmatpush.bf16.msra.mxu0 0
        %813 = vmatpush.bf16.msra.mxu0 0
        %814 = vmatpush.bf16.msra.mxu0 0
        %815 = vmatpush.bf16.msra.mxu0 %v806
        %816 = vmatmul.bf16.gmra.mxu0 %v802
        %v817 = vpop.f32.mrf.mxu0
        %v818 = vadd.f32 %v633, %v817
        %v819 = vpop.f32.mrf.mxu0
        %820 = vdwg.mxu0
        %v821 = vsel %vm800, %v818, -inf
        %822 = vmax.xlane.f32.xlu0 %v821
        %v823 = vpop.xlane.xlu0 %822
        %v824 = vsub.f32 %v818, %v823
        %v825 = vmul.f32 %v824, 1.442695
        %v826 = vpow.pop %v825
        %v827 = vsel %vm800, %v826, 0.0
        %828 = vadd.xlane.f32.xlu0 %v827
        %v829 = vpop.xlane.xlu0 %828
        %v830 = vrcp.pop %v829
        %v831 = vmul.f32 %v826, %v830
        %v832 = vpack.c.bf16 %v831, %v831
        %v834 = vsel %vm800, %v832, 0
        %v837 = vsel %vm800, %v796, 0
        %839 = vmatpush.bf16.xpose.msra.mxu0 0
        %840 = vmatpush.bf16.xpose.msra.mxu0 0
        %841 = vmatpush.bf16.xpose.msra.mxu0 0
        %842 = vmatpush.bf16.xpose.msra.mxu0 0
        %843 = vmatpush.bf16.xpose.msra.mxu0 0
        %844 = vmatpush.bf16.xpose.msra.mxu0 0
        %845 = vmatpush.bf16.xpose.msra.mxu0 0
        %846 = vmatpush.bf16.xpose.msra.mxu0 %v837
        %847 = vmatmul.bf16.gmra.mxu0 %v834
        %v848 = vpop.f32.mrf.mxu0
        %v849 = vadd.f32 0.0, %v848
        %v850 = vpop.f32.mrf.mxu0
        %851 = vdwg.mxu0
        %v853 = vunpack.c.l.b16 %v674
        %v854 = vpack.c.b16 %v853, %v853
        %855 = vrot.lane.b32.xlu0 %v854, 120
        %v856 = vpop.permute.xlu0 %855
        %v858 = vsel %vm800, %v856, 0
        %v861 = vsel %vm804, %v793, 0
        %863 = vmatpush.bf16.msra.mxu0 0
        %864 = vmatpush.bf16.msra.mxu0 0
        %865 = vmatpush.bf16.msra.mxu0 0
        %866 = vmatpush.bf16.msra.mxu0 0
        %867 = vmatpush.bf16.msra.mxu0 0
        %868 = vmatpush.bf16.msra.mxu0 0
        %869 = vmatpush.bf16.msra.mxu0 0
        %870 = vmatpush.bf16.msra.mxu0 %v861
        %871 = vmatmul.bf16.gmra.mxu0 %v858
        %v872 = vpop.f32.mrf.mxu0
        %v873 = vadd.f32 %v633, %v872
        %v874 = vpop.f32.mrf.mxu0
        %875 = vdwg.mxu0
        %v876 = vsel %vm800, %v873, -inf
        %877 = vmax.xlane.f32.xlu0 %v876
        %v878 = vpop.xlane.xlu0 %877
        %v879 = vsub.f32 %v873, %v878
        %v880 = vmul.f32 %v879, 1.442695
        %v881 = vpow.pop %v880
        %v882 = vsel %vm800, %v881, 0.0
        %883 = vadd.xlane.f32.xlu0 %v882
        %v884 = vpop.xlane.xlu0 %883
        %v885 = vrcp.pop %v884
        %v886 = vmul.f32 %v881, %v885
        %v887 = vpack.c.bf16 %v886, %v886
        %v889 = vsel %vm800, %v887, 0
        %v892 = vsel %vm800, %v797, 0
        %894 = vmatpush.bf16.xpose.msra.mxu0 0
        %895 = vmatpush.bf16.xpose.msra.mxu0 0
        %896 = vmatpush.bf16.xpose.msra.mxu0 0
        %897 = vmatpush.bf16.xpose.msra.mxu0 0
        %898 = vmatpush.bf16.xpose.msra.mxu0 0
        %899 = vmatpush.bf16.xpose.msra.mxu0 0
        %900 = vmatpush.bf16.xpose.msra.mxu0 0
        %901 = vmatpush.bf16.xpose.msra.mxu0 %v892
        %902 = vmatmul.bf16.gmra.mxu0 %v889
        %v903 = vpop.f32.mrf.mxu0
        %v904 = vadd.f32 0.0, %v903
        %v905 = vpop.f32.mrf.mxu0
        %906 = vdwg.mxu0
        %907 = vrot.lane.b32.xlu0 %v854, 112
        %v908 = vpop.permute.xlu0 %907
        %v910 = vsel %vm800, %v908, 0
        %v913 = vsel %vm804, %v794, 0
        %915 = vmatpush.bf16.msra.mxu0 0
        %916 = vmatpush.bf16.msra.mxu0 0
        %917 = vmatpush.bf16.msra.mxu0 0
        %918 = vmatpush.bf16.msra.mxu0 0
        %919 = vmatpush.bf16.msra.mxu0 0
        %920 = vmatpush.bf16.msra.mxu0 0
        %921 = vmatpush.bf16.msra.mxu0 0
        %922 = vmatpush.bf16.msra.mxu0 %v913
        %923 = vmatmul.bf16.gmra.mxu0 %v910
        %v924 = vpop.f32.mrf.mxu0
        %v925 = vadd.f32 %v633, %v924
        %v926 = vpop.f32.mrf.mxu0
        %927 = vdwg.mxu0
        %v928 = vsel %vm800, %v925, -inf
        %929 = vmax.xlane.f32.xlu0 %v928
        %v930 = vpop.xlane.xlu0 %929
        %v931 = vsub.f32 %v925, %v930
        %v932 = vmul.f32 %v931, 1.442695
        %v933 = vpow.pop %v932
        %v934 = vsel %vm800, %v933, 0.0
        %935 = vadd.xlane.f32.xlu0 %v934
        %v936 = vpop.xlane.xlu0 %935
        %v937 = vrcp.pop %v936
        %v938 = vmul.f32 %v933, %v937
        %v939 = vpack.c.bf16 %v938, %v938
        %v941 = vsel %vm800, %v939, 0
        %v944 = vsel %vm800, %v798, 0
        %946 = vmatpush.bf16.xpose.msra.mxu0 0
        %947 = vmatpush.bf16.xpose.msra.mxu0 0
        %948 = vmatpush.bf16.xpose.msra.mxu0 0
        %949 = vmatpush.bf16.xpose.msra.mxu0 0
        %950 = vmatpush.bf16.xpose.msra.mxu0 0
        %951 = vmatpush.bf16.xpose.msra.mxu0 0
        %952 = vmatpush.bf16.xpose.msra.mxu0 0
        %953 = vmatpush.bf16.xpose.msra.mxu0 %v944
        %954 = vmatmul.bf16.gmra.mxu0 %v941
        %v955 = vpop.f32.mrf.mxu0
        %v956 = vadd.f32 0.0, %v955
        %v957 = vpop.f32.mrf.mxu0
        %958 = vdwg.mxu0
        %959 = vrot.lane.b32.xlu0 %v854, 104
        %v960 = vpop.permute.xlu0 %959
        %v962 = vsel %vm800, %v960, 0
        %v965 = vsel %vm804, %v795, 0
        %967 = vmatpush.bf16.msra.mxu0 0
        %968 = vmatpush.bf16.msra.mxu0 0
        %969 = vmatpush.bf16.msra.mxu0 0
        %970 = vmatpush.bf16.msra.mxu0 0
        %971 = vmatpush.bf16.msra.mxu0 0
        %972 = vmatpush.bf16.msra.mxu0 0
        %973 = vmatpush.bf16.msra.mxu0 0
        %974 = vmatpush.bf16.msra.mxu0 %v965
        %975 = vmatmul.bf16.gmra.mxu0 %v962
        %v976 = vpop.f32.mrf.mxu0
        %v977 = vadd.f32 %v633, %v976
        %v978 = vpop.f32.mrf.mxu0
        %979 = vdwg.mxu0
        %v980 = vsel %vm800, %v977, -inf
        %981 = vmax.xlane.f32.xlu0 %v980
        %v982 = vpop.xlane.xlu0 %981
        %v983 = vsub.f32 %v977, %v982
        %v984 = vmul.f32 %v983, 1.442695
        %v985 = vpow.pop %v984
        %v986 = vsel %vm800, %v985, 0.0
        %987 = vadd.xlane.f32.xlu0 %v986
        %v988 = vpop.xlane.xlu0 %987
        %v989 = vrcp.pop %v988
        %v990 = vmul.f32 %v985, %v989
        %v991 = vpack.c.bf16 %v990, %v990
        %v993 = vsel %vm800, %v991, 0
        %v996 = vsel %vm800, %v799, 0
        %998 = vmatpush.bf16.xpose.msra.mxu0 0
        %999 = vmatpush.bf16.xpose.msra.mxu0 0
        %1000 = vmatpush.bf16.xpose.msra.mxu0 0
        %1001 = vmatpush.bf16.xpose.msra.mxu0 0
        %1002 = vmatpush.bf16.xpose.msra.mxu0 0
        %1003 = vmatpush.bf16.xpose.msra.mxu0 0
        %1004 = vmatpush.bf16.xpose.msra.mxu0 0
        %1005 = vmatpush.bf16.xpose.msra.mxu0 %v996
        %1006 = vmatmul.bf16.gmra.mxu0 %v993
        %v1007 = vpop.f32.mrf.mxu0
        %v1008 = vadd.f32 0.0, %v1007
        %v1009 = vpop.f32.mrf.mxu0
        %1010 = vdwg.mxu0
        %1012 = vrot.lane.b32.xlu0 %v904, 8
        %v1013 = vpop.permute.xlu0 %1012
        %1016 = vrot.lane.b32.xlu0 %v956, 16
        %v1017 = vpop.permute.xlu0 %1016
        %1020 = vrot.lane.b32.xlu0 %v1008, 24
        %v1021 = vpop.permute.xlu0 %1020
        %v1023 = vsel %vm800, %v849, %v1013
        %vm1024 = vcmask 130048
        %v1025 = vsel %vm1024, %v1023, %v1017
        %vm1026 = vcmask 195584
        %v1027 = vsel %vm1026, %v1025, %v1021
        %v1028 = vpack.c.bf16 %v1027, %v1027
        %v1029 = vld [vmem:[%s8] sm:$0xf]
        %v1030 = vld [vmem:[%s8 + $0x4] sm:$0xf]
        %v1031 = vld [vmem:[%s8 + $0x8] sm:$0xf]
        %v1032 = vld [vmem:[%s8 + $0xc] sm:$0xf]
        %v1033 = vld [vmem:[%s11] sm:$0x1]
        %v1035 = vperm.slane %v1033, 0
        %v1041 = vunpack.c.l.b16 %v1029
        %v1042 = vunpack.c.l.b16 %v1030
        %v1043 = vunpack.c.l.b16 %v1031
        %v1044 = vunpack.c.l.b16 %v1032
        %v1045 = vpack.c.b16 %v1042, %v1041
        %v1046 = vpack.c.b16 %v1044, %v1043
        %v1050 = vsel %vm656, %v1028, 0
        %1052 = vmatpush.bf16.msra.mxu0 0
        %1053 = vmatpush.bf16.msra.mxu0 0
        %1054 = vmatpush.bf16.msra.mxu0 0
        %1055 = vmatpush.bf16.msra.mxu0 0
        %1056 = vmatpush.bf16.msra.mxu0 0
        %1057 = vmatpush.bf16.msra.mxu0 0
        %1058 = vmatpush.bf16.msra.mxu0 %v1046
        %1059 = vmatpush.bf16.msra.mxu0 %v1045
        %1060 = vmatmul.bf16.gmra.mxu0 %v1050
        %v1061 = vpop.f32.mrf.mxu0
        %v1062 = vadd.f32 %v1035, %v1061
        %v1063 = vpop.f32.mrf.mxu0
        %1064 = vdwg.mxu0
        %v1065 = vadd.f32 %v632, %v1062
        %v1066 = vsel %vm656, %v1065, 0.0
        %1067 = vadd.xlane.f32.xlu0 %v1066
        %v1068 = vpop.xlane.xlu0 %1067
        %v1069 = vrcp.pop 32.0
        %v1070 = vmul.f32 32.0, %v1069
        %v1071 = vsub.f32 1.0, %v1070
        %v1072 = vmul.f32 %v1069, %v1071
        %v1073 = vadd.f32 %v1069, %v1072
        %vm1074 = vweird.f32 %v1069
        %v1075 = vsel %vm1074, %v1069, %v1073
        %v1076 = vmul.f32 %v1068, %v1075
        %v1077 = vmul.f32 %v1065, %v1065
        %v1078 = vsel %vm656, %v1077, 0.0
        %1079 = vadd.xlane.f32.xlu0 %v1078
        %v1080 = vpop.xlane.xlu0 %1079
        %v1081 = vmul.f32 %v1080, %v1075
        %v1082 = vmul.f32 %v1076, %v1076
        %v1083 = vsub.f32 %v1081, %v1082
        %v1084 = vmax.f32 %v1083, 0.0
        %v1085 = vsub.f32 %v1065, %v1076
        %v1086 = vadd.f32 %v1084, 1e-05
        %v1087 = vrsqrt.pop %v1086
        %v1088 = vmul.f32 %v1087, %v1086
        %v1089 = vmul.f32 %v1088, %v1087
        %v1090 = vmul.f32 0.5, %v1089
        %v1091 = vsub.f32 1.5, %v1090
        %v1092 = vmul.f32 %v1087, %v1091
        %vm1093 = vweird.f32 %v1086
        %vm1094 = vweird.f32 %v1087
        %vm1095 = vmor %vm1093, %vm1094
        %v1096 = vsel %vm1095, %v1087, %v1092
        %v1097 = vmul.f32 %v1085, %v1096
        %v1098 = vld [vmem:[%s12] sm:$0x1]
        %v1100 = vperm.slane %v1098, 0
        %v1102 = vmul.f32 %v1097, %v1100
        %v1103 = vld [vmem:[%s13] sm:$0x1]
        %v1105 = vperm.slane %v1103, 0
        %v1107 = vadd.f32 %v1102, %v1105
        %v1108 = vld [vmem:[%s620] sm:$0xff]
        %v1109 = vld [vmem:[%s620 + $0x8] sm:$0x3]
        %v1110 = vpack.c.bf16 %v1107, %v1107
        %v1111 = vpack.c.bf16 %v1109, %v1108
        %s1112 = scalar_lea.vmem %s6, 16
        %v1113 = vld [vmem:[%s1112] sm:$0xf]
        %v1114 = vld [vmem:[%s1112 + $0x4] sm:$0xf]
        %v1115 = vld [vmem:[%s1112 + $0x8] sm:$0xf]
        %v1116 = vld [vmem:[%s1112 + $0xc] sm:$0xf]
        %s1117 = scalar_lea.vmem %s9, 1
        %v1118 = vld [vmem:[%s1117] sm:$0x1]
        %v1120 = vperm.slane %v1118, 0
        %v1126 = vunpack.c.l.b16 %v1113
        %v1127 = vunpack.c.l.b16 %v1114
        %v1128 = vunpack.c.l.b16 %v1115
        %v1129 = vunpack.c.l.b16 %v1116
        %v1130 = vpack.c.b16 %v1127, %v1126
        %v1131 = vpack.c.b16 %v1129, %v1128
        %v1135 = vsel %vm656, %v1110, 0
        %1137 = vmatpush.bf16.msra.mxu0 0
        %1138 = vmatpush.bf16.msra.mxu0 0
        %1139 = vmatpush.bf16.msra.mxu0 0
        %1140 = vmatpush.bf16.msra.mxu0 0
        %1141 = vmatpush.bf16.msra.mxu0 0
        %1142 = vmatpush.bf16.msra.mxu0 0
        %1143 = vmatpush.bf16.msra.mxu0 %v1131
        %1144 = vmatpush.bf16.msra.mxu0 %v1130
        %1145 = vmatmul.bf16.gmra.mxu0 %v1135
        %v1146 = vpop.f32.mrf.mxu0
        %v1147 = vadd.f32 %v1120, %v1146
        %v1148 = vpop.f32.mrf.mxu0
        %1149 = vdwg.mxu0
        %v1150 = vmul.f32 %v1147, 0.35355338
        %v1151 = vpack.c.bf16 %v1150, %v1150
        %s1152 = scalar_lea.vmem %s7, 32
        %v1153 = vld [vmem:[%s1152] sm:$0xf]
        %v1154 = vld [vmem:[%s1152 + $0x4] sm:$0xf]
        %v1155 = vld [vmem:[%s1152 + $0x8] sm:$0xf]
        %v1156 = vld [vmem:[%s1152 + $0xc] sm:$0xf]
        %v1157 = vld [vmem:[%s1152 + $0x10] sm:$0xf]
        %v1158 = vld [vmem:[%s1152 + $0x14] sm:$0xf]
        %v1159 = vld [vmem:[%s1152 + $0x18] sm:$0xf]
        %v1160 = vld [vmem:[%s1152 + $0x1c] sm:$0xf]
        %s1161 = scalar_lea.vmem %s10, 64
        %v1162 = vld [vmem:[%s1161] sm:$0xff]
        %v1163 = vld [vmem:[%s1161 + $0x8] sm:$0xff]
        %v1164 = vld [vmem:[%s1161 + $0x10] sm:$0xff]
        %v1165 = vld [vmem:[%s1161 + $0x18] sm:$0xff]
        %v1166 = vld [vmem:[%s1161 + $0x20] sm:$0xff]
        %v1167 = vld [vmem:[%s1161 + $0x28] sm:$0xff]
        %v1168 = vld [vmem:[%s1161 + $0x30] sm:$0xff]
        %v1169 = vld [vmem:[%s1161 + $0x38] sm:$0xff]
        %1171 = vset.pattern.permute.xlu0 0
        %1172 = vperm.xlu0 %1171, %v1162
        %v1173 = vpop.permute.xlu0 %1172
        %1176 = vset.pattern.permute.xlu0 0
        %1177 = vperm.xlu0 %1176, %v1163
        %v1178 = vpop.permute.xlu0 %1177
        %1181 = vset.pattern.permute.xlu0 0
        %1182 = vperm.xlu0 %1181, %v1164
        %v1183 = vpop.permute.xlu0 %1182
        %1186 = vset.pattern.permute.xlu0 0
        %1187 = vperm.xlu0 %1186, %v1165
        %v1188 = vpop.permute.xlu0 %1187
        %1191 = vset.pattern.permute.xlu0 0
        %1192 = vperm.xlu0 %1191, %v1166
        %v1193 = vpop.permute.xlu0 %1192
        %1196 = vset.pattern.permute.xlu0 0
        %1197 = vperm.xlu0 %1196, %v1167
        %v1198 = vpop.permute.xlu0 %1197
        %1201 = vset.pattern.permute.xlu0 0
        %1202 = vperm.xlu0 %1201, %v1168
        %v1203 = vpop.permute.xlu0 %1202
        %1206 = vset.pattern.permute.xlu0 0
        %1207 = vperm.xlu0 %1206, %v1169
        %v1208 = vpop.permute.xlu0 %1207
        %v1218 = vunpack.c.l.b16 %v1153
        %v1219 = vunpack.c.l.b16 %v1154
        %v1220 = vunpack.c.l.b16 %v1155
        %v1221 = vunpack.c.l.b16 %v1156
        %v1222 = vunpack.c.l.b16 %v1157
        %v1223 = vunpack.c.l.b16 %v1158
        %v1224 = vunpack.c.l.b16 %v1159
        %v1225 = vunpack.c.l.b16 %v1160
        %v1226 = vpack.c.b16 %v1219, %v1218
        %v1227 = vpack.c.b16 %v1221, %v1220
        %v1228 = vpack.c.b16 %v1223, %v1222
        %v1229 = vpack.c.b16 %v1225, %v1224
        %v1231 = vsel %vm656, %v1226, 0
        %v1234 = vsel %vm656, %v1227, 0
        %v1237 = vsel %vm656, %v1228, 0
        %v1240 = vsel %vm656, %v1229, 0
        %v1243 = vsel %vm656, %v1111, 0
        %1245 = vmatpush.bf16.xpose.msra.mxu0 0
        %1246 = vmatpush.bf16.xpose.msra.mxu0 0
        %1247 = vmatpush.bf16.xpose.msra.mxu0 0
        %1248 = vmatpush.bf16.xpose.msra.mxu0 0
        %1249 = vmatpush.bf16.xpose.msra.mxu0 0
        %1250 = vmatpush.bf16.xpose.msra.mxu0 0
        %1251 = vmatpush.bf16.xpose.msra.mxu0 0
        %1252 = vmatpush.bf16.xpose.msra.mxu0 %v1243
        %1253 = vmatmul.bf16.gmra.mxu0 %v1231
        %v1254 = vpop.f32.mrf.mxu0
        %v1255 = vadd.f32 %v1173, %v1254
        %v1256 = vpop.f32.mrf.mxu0
        %v1257 = vadd.f32 %v1178, %v1256
        %1258 = vmatmul.bf16.gmra.mxu0 %v1234
        %v1259 = vpop.f32.mrf.mxu0
        %v1260 = vadd.f32 %v1183, %v1259
        %v1261 = vpop.f32.mrf.mxu0
        %v1262 = vadd.f32 %v1188, %v1261
        %1263 = vmatmul.bf16.gmra.mxu0 %v1237
        %v1264 = vpop.f32.mrf.mxu0
        %v1265 = vadd.f32 %v1193, %v1264
        %v1266 = vpop.f32.mrf.mxu0
        %v1267 = vadd.f32 %v1198, %v1266
        %1268 = vmatmul.bf16.gmra.mxu0 %v1240
        %v1269 = vpop.f32.mrf.mxu0
        %v1270 = vadd.f32 %v1203, %v1269
        %v1271 = vpop.f32.mrf.mxu0
        %v1272 = vadd.f32 %v1208, %v1271
        %1273 = vdwg.mxu0
        %v1274 = vpack.c.bf16 %v1255, %v1255
        %v1275 = vpack.c.bf16 %v1257, %v1257
        %v1276 = vpack.c.bf16 %v1260, %v1260
        %v1277 = vpack.c.bf16 %v1262, %v1262
        %v1278 = vpack.c.bf16 %v1265, %v1265
        %v1279 = vpack.c.bf16 %v1267, %v1267
        %v1280 = vpack.c.bf16 %v1270, %v1270
        %v1281 = vpack.c.bf16 %v1272, %v1272
        %v1283 = vsel %vm800, %v1151, 0
        %v1286 = vsel %vm804, %v1274, 0
        %1288 = vmatpush.bf16.msra.mxu0 0
        %1289 = vmatpush.bf16.msra.mxu0 0
        %1290 = vmatpush.bf16.msra.mxu0 0
        %1291 = vmatpush.bf16.msra.mxu0 0
        %1292 = vmatpush.bf16.msra.mxu0 0
        %1293 = vmatpush.bf16.msra.mxu0 0
        %1294 = vmatpush.bf16.msra.mxu0 0
        %1295 = vmatpush.bf16.msra.mxu0 %v1286
        %1296 = vmatmul.bf16.gmra.mxu0 %v1283
        %v1297 = vpop.f32.mrf.mxu0
        %v1298 = vadd.f32 %v634, %v1297
        %v1299 = vpop.f32.mrf.mxu0
        %1300 = vdwg.mxu0
        %vm1301 = vcmask 80896
        %v1302 = vsel %vm1301, %v1298, -inf
        %1303 = vmax.xlane.f32.xlu0 %v1302
        %v1304 = vpop.xlane.xlu0 %1303
        %v1305 = vsub.f32 %v1298, %v1304
        %v1306 = vmul.f32 %v1305, 1.442695
        %v1307 = vpow.pop %v1306
        %v1308 = vsel %vm1301, %v1307, 0.0
        %1309 = vadd.xlane.f32.xlu0 %v1308
        %v1310 = vpop.xlane.xlu0 %1309
        %v1311 = vrcp.pop %v1310
        %v1312 = vmul.f32 %v1307, %v1311
        %v1313 = vpack.c.bf16 %v1312, %v1312
        %v1315 = vsel %vm1301, %v1313, 0
        %v1318 = vsel %vm1301, %v1278, 0
        %1320 = vmatpush.bf16.xpose.msra.mxu0 0
        %1321 = vmatpush.bf16.xpose.msra.mxu0 0
        %1322 = vmatpush.bf16.xpose.msra.mxu0 0
        %1323 = vmatpush.bf16.xpose.msra.mxu0 0
        %1324 = vmatpush.bf16.xpose.msra.mxu0 0
        %1325 = vmatpush.bf16.xpose.msra.mxu0 0
        %1326 = vmatpush.bf16.xpose.msra.mxu0 0
        %1327 = vmatpush.bf16.xpose.msra.mxu0 %v1318
        %1328 = vmatmul.bf16.gmra.mxu0 %v1315
        %v1329 = vpop.f32.mrf.mxu0
        %v1330 = vadd.f32 0.0, %v1329
        %v1331 = vpop.f32.mrf.mxu0
        %1332 = vdwg.mxu0
        %v1334 = vunpack.c.l.b16 %v1151
        %v1335 = vpack.c.b16 %v1334, %v1334
        %1336 = vrot.lane.b32.xlu0 %v1335, 120
        %v1337 = vpop.permute.xlu0 %1336
        %v1339 = vsel %vm800, %v1337, 0
        %v1342 = vsel %vm804, %v1275, 0
        %1344 = vmatpush.bf16.msra.mxu0 0
        %1345 = vmatpush.bf16.msra.mxu0 0
        %1346 = vmatpush.bf16.msra.mxu0 0
        %1347 = vmatpush.bf16.msra.mxu0 0
        %1348 = vmatpush.bf16.msra.mxu0 0
        %1349 = vmatpush.bf16.msra.mxu0 0
        %1350 = vmatpush.bf16.msra.mxu0 0
        %1351 = vmatpush.bf16.msra.mxu0 %v1342
        %1352 = vmatmul.bf16.gmra.mxu0 %v1339
        %v1353 = vpop.f32.mrf.mxu0
        %v1354 = vadd.f32 %v634, %v1353
        %v1355 = vpop.f32.mrf.mxu0
        %1356 = vdwg.mxu0
        %v1357 = vsel %vm1301, %v1354, -inf
        %1358 = vmax.xlane.f32.xlu0 %v1357
        %v1359 = vpop.xlane.xlu0 %1358
        %v1360 = vsub.f32 %v1354, %v1359
        %v1361 = vmul.f32 %v1360, 1.442695
        %v1362 = vpow.pop %v1361
        %v1363 = vsel %vm1301, %v1362, 0.0
        %1364 = vadd.xlane.f32.xlu0 %v1363
        %v1365 = vpop.xlane.xlu0 %1364
        %v1366 = vrcp.pop %v1365
        %v1367 = vmul.f32 %v1362, %v1366
        %v1368 = vpack.c.bf16 %v1367, %v1367
        %v1370 = vsel %vm1301, %v1368, 0
        %v1373 = vsel %vm1301, %v1279, 0
        %1375 = vmatpush.bf16.xpose.msra.mxu0 0
        %1376 = vmatpush.bf16.xpose.msra.mxu0 0
        %1377 = vmatpush.bf16.xpose.msra.mxu0 0
        %1378 = vmatpush.bf16.xpose.msra.mxu0 0
        %1379 = vmatpush.bf16.xpose.msra.mxu0 0
        %1380 = vmatpush.bf16.xpose.msra.mxu0 0
        %1381 = vmatpush.bf16.xpose.msra.mxu0 0
        %1382 = vmatpush.bf16.xpose.msra.mxu0 %v1373
        %1383 = vmatmul.bf16.gmra.mxu0 %v1370
        %v1384 = vpop.f32.mrf.mxu0
        %v1385 = vadd.f32 0.0, %v1384
        %v1386 = vpop.f32.mrf.mxu0
        %1387 = vdwg.mxu0
        %1388 = vrot.lane.b32.xlu0 %v1335, 112
        %v1389 = vpop.permute.xlu0 %1388
        %v1391 = vsel %vm800, %v1389, 0
        %v1394 = vsel %vm804, %v1276, 0
        %1396 = vmatpush.bf16.msra.mxu0 0
        %1397 = vmatpush.bf16.msra.mxu0 0
        %1398 = vmatpush.bf16.msra.mxu0 0
        %1399 = vmatpush.bf16.msra.mxu0 0
        %1400 = vmatpush.bf16.msra.mxu0 0
        %1401 = vmatpush.bf16.msra.mxu0 0
        %1402 = vmatpush.bf16.msra.mxu0 0
        %1403 = vmatpush.bf16.msra.mxu0 %v1394
        %1404 = vmatmul.bf16.gmra.mxu0 %v1391
        %v1405 = vpop.f32.mrf.mxu0
        %v1406 = vadd.f32 %v634, %v1405
        %v1407 = vpop.f32.mrf.mxu0
        %1408 = vdwg.mxu0
        %v1409 = vsel %vm1301, %v1406, -inf
        %1410 = vmax.xlane.f32.xlu0 %v1409
        %v1411 = vpop.xlane.xlu0 %1410
        %v1412 = vsub.f32 %v1406, %v1411
        %v1413 = vmul.f32 %v1412, 1.442695
        %v1414 = vpow.pop %v1413
        %v1415 = vsel %vm1301, %v1414, 0.0
        %1416 = vadd.xlane.f32.xlu0 %v1415
        %v1417 = vpop.xlane.xlu0 %1416
        %v1418 = vrcp.pop %v1417
        %v1419 = vmul.f32 %v1414, %v1418
        %v1420 = vpack.c.bf16 %v1419, %v1419
        %v1422 = vsel %vm1301, %v1420, 0
        %v1425 = vsel %vm1301, %v1280, 0
        %1427 = vmatpush.bf16.xpose.msra.mxu0 0
        %1428 = vmatpush.bf16.xpose.msra.mxu0 0
        %1429 = vmatpush.bf16.xpose.msra.mxu0 0
        %1430 = vmatpush.bf16.xpose.msra.mxu0 0
        %1431 = vmatpush.bf16.xpose.msra.mxu0 0
        %1432 = vmatpush.bf16.xpose.msra.mxu0 0
        %1433 = vmatpush.bf16.xpose.msra.mxu0 0
        %1434 = vmatpush.bf16.xpose.msra.mxu0 %v1425
        %1435 = vmatmul.bf16.gmra.mxu0 %v1422
        %v1436 = vpop.f32.mrf.mxu0
        %v1437 = vadd.f32 0.0, %v1436
        %v1438 = vpop.f32.mrf.mxu0
        %1439 = vdwg.mxu0
        %1440 = vrot.lane.b32.xlu0 %v1335, 104
        %v1441 = vpop.permute.xlu0 %1440
        %v1443 = vsel %vm800, %v1441, 0
        %v1446 = vsel %vm804, %v1277, 0
        %1448 = vmatpush.bf16.msra.mxu0 0
        %1449 = vmatpush.bf16.msra.mxu0 0
        %1450 = vmatpush.bf16.msra.mxu0 0
        %1451 = vmatpush.bf16.msra.mxu0 0
        %1452 = vmatpush.bf16.msra.mxu0 0
        %1453 = vmatpush.bf16.msra.mxu0 0
        %1454 = vmatpush.bf16.msra.mxu0 0
        %1455 = vmatpush.bf16.msra.mxu0 %v1446
        %1456 = vmatmul.bf16.gmra.mxu0 %v1443
        %v1457 = vpop.f32.mrf.mxu0
        %v1458 = vadd.f32 %v634, %v1457
        %v1459 = vpop.f32.mrf.mxu0
        %1460 = vdwg.mxu0
        %v1461 = vsel %vm1301, %v1458, -inf
        %1462 = vmax.xlane.f32.xlu0 %v1461
        %v1463 = vpop.xlane.xlu0 %1462
        %v1464 = vsub.f32 %v1458, %v1463
        %v1465 = vmul.f32 %v1464, 1.442695
        %v1466 = vpow.pop %v1465
        %v1467 = vsel %vm1301, %v1466, 0.0
        %1468 = vadd.xlane.f32.xlu0 %v1467
        %v1469 = vpop.xlane.xlu0 %1468
        %v1470 = vrcp.pop %v1469
        %v1471 = vmul.f32 %v1466, %v1470
        %v1472 = vpack.c.bf16 %v1471, %v1471
        %v1474 = vsel %vm1301, %v1472, 0
        %v1477 = vsel %vm1301, %v1281, 0
        %1479 = vmatpush.bf16.xpose.msra.mxu0 0
        %1480 = vmatpush.bf16.xpose.msra.mxu0 0
        %1481 = vmatpush.bf16.xpose.msra.mxu0 0
        %1482 = vmatpush.bf16.xpose.msra.mxu0 0
        %1483 = vmatpush.bf16.xpose.msra.mxu0 0
        %1484 = vmatpush.bf16.xpose.msra.mxu0 0
        %1485 = vmatpush.bf16.xpose.msra.mxu0 0
        %1486 = vmatpush.bf16.xpose.msra.mxu0 %v1477
        %1487 = vmatmul.bf16.gmra.mxu0 %v1474
        %v1488 = vpop.f32.mrf.mxu0
        %v1489 = vadd.f32 0.0, %v1488
        %v1490 = vpop.f32.mrf.mxu0
        %1491 = vdwg.mxu0
        %1493 = vrot.lane.b32.xlu0 %v1385, 8
        %v1494 = vpop.permute.xlu0 %1493
        %1497 = vrot.lane.b32.xlu0 %v1437, 16
        %v1498 = vpop.permute.xlu0 %1497
        %1501 = vrot.lane.b32.xlu0 %v1489, 24
        %v1502 = vpop.permute.xlu0 %1501
        %v1504 = vsel %vm800, %v1330, %v1494
        %v1505 = vsel %vm1024, %v1504, %v1498
        %v1506 = vsel %vm1026, %v1505, %v1502
        %v1507 = vpack.c.bf16 %v1506, %v1506
        %s1508 = scalar_lea.vmem %s8, 16
        %v1509 = vld [vmem:[%s1508] sm:$0xf]
        %v1510 = vld [vmem:[%s1508 + $0x4] sm:$0xf]
        %v1511 = vld [vmem:[%s1508 + $0x8] sm:$0xf]
        %v1512 = vld [vmem:[%s1508 + $0xc] sm:$0xf]
        %s1513 = scalar_lea.vmem %s11, 1
        %v1514 = vld [vmem:[%s1513] sm:$0x1]
        %v1516 = vperm.slane %v1514, 0
        %v1522 = vunpack.c.l.b16 %v1509
        %v1523 = vunpack.c.l.b16 %v1510
        %v1524 = vunpack.c.l.b16 %v1511
        %v1525 = vunpack.c.l.b16 %v1512
        %v1526 = vpack.c.b16 %v1523, %v1522
        %v1527 = vpack.c.b16 %v1525, %v1524
        %v1531 = vsel %vm656, %v1507, 0
        %1533 = vmatpush.bf16.msra.mxu0 0
        %1534 = vmatpush.bf16.msra.mxu0 0
        %1535 = vmatpush.bf16.msra.mxu0 0
        %1536 = vmatpush.bf16.msra.mxu0 0
        %1537 = vmatpush.bf16.msra.mxu0 0
        %1538 = vmatpush.bf16.msra.mxu0 0
        %1539 = vmatpush.bf16.msra.mxu0 %v1527
        %1540 = vmatpush.bf16.msra.mxu0 %v1526
        %1541 = vmatmul.bf16.gmra.mxu0 %v1531
        %v1542 = vpop.f32.mrf.mxu0
        %v1543 = vadd.f32 %v1516, %v1542
        %v1544 = vpop.f32.mrf.mxu0
        %1545 = vdwg.mxu0
        %v1546 = vadd.f32 %v1107, %v1543
        %v1547 = vsel %vm656, %v1546, 0.0
        %1548 = vadd.xlane.f32.xlu0 %v1547
        %v1549 = vpop.xlane.xlu0 %1548
        %v1550 = vmul.f32 %v1549, %v1075
        %v1551 = vmul.f32 %v1546, %v1546
        %v1552 = vsel %vm656, %v1551, 0.0
        %1553 = vadd.xlane.f32.xlu0 %v1552
        %v1554 = vpop.xlane.xlu0 %1553
        %v1555 = vmul.f32 %v1554, %v1075
        %v1556 = vmul.f32 %v1550, %v1550
        %v1557 = vsub.f32 %v1555, %v1556
        %v1558 = vmax.f32 %v1557, 0.0
        %v1559 = vsub.f32 %v1546, %v1550
        %v1560 = vadd.f32 %v1558, 1e-05
        %v1561 = vrsqrt.pop %v1560
        %v1562 = vmul.f32 %v1561, %v1560
        %v1563 = vmul.f32 %v1562, %v1561
        %v1564 = vmul.f32 0.5, %v1563
        %v1565 = vsub.f32 1.5, %v1564
        %v1566 = vmul.f32 %v1561, %v1565
        %vm1567 = vweird.f32 %v1560
        %vm1568 = vweird.f32 %v1561
        %vm1569 = vmor %vm1567, %vm1568
        %v1570 = vsel %vm1569, %v1561, %v1566
        %v1571 = vmul.f32 %v1559, %v1570
        %s1572 = scalar_lea.vmem %s12, 1
        %v1573 = vld [vmem:[%s1572] sm:$0x1]
        %v1575 = vperm.slane %v1573, 0
        %v1577 = vmul.f32 %v1571, %v1575
        %s1578 = scalar_lea.vmem %s13, 1
        %v1579 = vld [vmem:[%s1578] sm:$0x1]
        %v1581 = vperm.slane %v1579, 0
        %v1583 = vadd.f32 %v1577, %v1581
        %v1584 = vld [vmem:[%s625] sm:$0xff]
        %v1585 = vld [vmem:[%s625 + $0x8] sm:$0x3]
        %v1586 = vpack.c.bf16 %v1583, %v1583
        %v1587 = vpack.c.bf16 %v1585, %v1584
        %s1588 = scalar_lea.vmem %s6, 32
        %v1589 = vld [vmem:[%s1588] sm:$0xf]
        %v1590 = vld [vmem:[%s1588 + $0x4] sm:$0xf]
        %v1591 = vld [vmem:[%s1588 + $0x8] sm:$0xf]
        %v1592 = vld [vmem:[%s1588 + $0xc] sm:$0xf]
        %s1593 = scalar_lea.vmem %s9, 2
        %v1594 = vld [vmem:[%s1593] sm:$0x1]
        %v1596 = vperm.slane %v1594, 0
        %v1602 = vunpack.c.l.b16 %v1589
        %v1603 = vunpack.c.l.b16 %v1590
        %v1604 = vunpack.c.l.b16 %v1591
        %v1605 = vunpack.c.l.b16 %v1592
        %v1606 = vpack.c.b16 %v1603, %v1602
        %v1607 = vpack.c.b16 %v1605, %v1604
        %v1611 = vsel %vm656, %v1586, 0
        %1613 = vmatpush.bf16.msra.mxu0 0
        %1614 = vmatpush.bf16.msra.mxu0 0
        %1615 = vmatpush.bf16.msra.mxu0 0
        %1616 = vmatpush.bf16.msra.mxu0 0
        %1617 = vmatpush.bf16.msra.mxu0 0
        %1618 = vmatpush.bf16.msra.mxu0 0
        %1619 = vmatpush.bf16.msra.mxu0 %v1607
        %1620 = vmatpush.bf16.msra.mxu0 %v1606
        %1621 = vmatmul.bf16.gmra.mxu0 %v1611
        %v1622 = vpop.f32.mrf.mxu0
        %v1623 = vadd.f32 %v1596, %v1622
        %v1624 = vpop.f32.mrf.mxu0
        %1625 = vdwg.mxu0
        %v1626 = vmul.f32 %v1623, 0.35355338
        %v1627 = vpack.c.bf16 %v1626, %v1626
        %s1628 = scalar_lea.vmem %s7, 64
        %v1629 = vld [vmem:[%s1628] sm:$0xf]
        %v1630 = vld [vmem:[%s1628 + $0x4] sm:$0xf]
        %v1631 = vld [vmem:[%s1628 + $0x8] sm:$0xf]
        %v1632 = vld [vmem:[%s1628 + $0xc] sm:$0xf]
        %v1633 = vld [vmem:[%s1628 + $0x10] sm:$0xf]
        %v1634 = vld [vmem:[%s1628 + $0x14] sm:$0xf]
        %v1635 = vld [vmem:[%s1628 + $0x18] sm:$0xf]
        %v1636 = vld [vmem:[%s1628 + $0x1c] sm:$0xf]
        %s1637 = scalar_lea.vmem %s10, 128
        %v1638 = vld [vmem:[%s1637] sm:$0xff]
        %v1639 = vld [vmem:[%s1637 + $0x8] sm:$0xff]
        %v1640 = vld [vmem:[%s1637 + $0x10] sm:$0xff]
        %v1641 = vld [vmem:[%s1637 + $0x18] sm:$0xff]
        %v1642 = vld [vmem:[%s1637 + $0x20] sm:$0xff]
        %v1643 = vld [vmem:[%s1637 + $0x28] sm:$0xff]
        %v1644 = vld [vmem:[%s1637 + $0x30] sm:$0xff]
        %v1645 = vld [vmem:[%s1637 + $0x38] sm:$0xff]
        %1647 = vset.pattern.permute.xlu0 0
        %1648 = vperm.xlu0 %1647, %v1638
        %v1649 = vpop.permute.xlu0 %1648
        %1652 = vset.pattern.permute.xlu0 0
        %1653 = vperm.xlu0 %1652, %v1639
        %v1654 = vpop.permute.xlu0 %1653
        %1657 = vset.pattern.permute.xlu0 0
        %1658 = vperm.xlu0 %1657, %v1640
        %v1659 = vpop.permute.xlu0 %1658
        %1662 = vset.pattern.permute.xlu0 0
        %1663 = vperm.xlu0 %1662, %v1641
        %v1664 = vpop.permute.xlu0 %1663
        %1667 = vset.pattern.permute.xlu0 0
        %1668 = vperm.xlu0 %1667, %v1642
        %v1669 = vpop.permute.xlu0 %1668
        %1672 = vset.pattern.permute.xlu0 0
        %1673 = vperm.xlu0 %1672, %v1643
        %v1674 = vpop.permute.xlu0 %1673
        %1677 = vset.pattern.permute.xlu0 0
        %1678 = vperm.xlu0 %1677, %v1644
        %v1679 = vpop.permute.xlu0 %1678
        %1682 = vset.pattern.permute.xlu0 0
        %1683 = vperm.xlu0 %1682, %v1645
        %v1684 = vpop.permute.xlu0 %1683
        %v1694 = vunpack.c.l.b16 %v1629
        %v1695 = vunpack.c.l.b16 %v1630
        %v1696 = vunpack.c.l.b16 %v1631
        %v1697 = vunpack.c.l.b16 %v1632
        %v1698 = vunpack.c.l.b16 %v1633
        %v1699 = vunpack.c.l.b16 %v1634
        %v1700 = vunpack.c.l.b16 %v1635
        %v1701 = vunpack.c.l.b16 %v1636
        %v1702 = vpack.c.b16 %v1695, %v1694
        %v1703 = vpack.c.b16 %v1697, %v1696
        %v1704 = vpack.c.b16 %v1699, %v1698
        %v1705 = vpack.c.b16 %v1701, %v1700
        %v1707 = vsel %vm656, %v1702, 0
        %v1710 = vsel %vm656, %v1703, 0
        %v1713 = vsel %vm656, %v1704, 0
        %v1716 = vsel %vm656, %v1705, 0
        %v1719 = vsel %vm656, %v1587, 0
        %1721 = vmatpush.bf16.xpose.msra.mxu0 0
        %1722 = vmatpush.bf16.xpose.msra.mxu0 0
        %1723 = vmatpush.bf16.xpose.msra.mxu0 0
        %1724 = vmatpush.bf16.xpose.msra.mxu0 0
        %1725 = vmatpush.bf16.xpose.msra.mxu0 0
        %1726 = vmatpush.bf16.xpose.msra.mxu0 0
        %1727 = vmatpush.bf16.xpose.msra.mxu0 0
        %1728 = vmatpush.bf16.xpose.msra.mxu0 %v1719
        %1729 = vmatmul.bf16.gmra.mxu0 %v1707
        %v1730 = vpop.f32.mrf.mxu0
        %v1731 = vadd.f32 %v1649, %v1730
        %v1732 = vpop.f32.mrf.mxu0
        %v1733 = vadd.f32 %v1654, %v1732
        %1734 = vmatmul.bf16.gmra.mxu0 %v1710
        %v1735 = vpop.f32.mrf.mxu0
        %v1736 = vadd.f32 %v1659, %v1735
        %v1737 = vpop.f32.mrf.mxu0
        %v1738 = vadd.f32 %v1664, %v1737
        %1739 = vmatmul.bf16.gmra.mxu0 %v1713
        %v1740 = vpop.f32.mrf.mxu0
        %v1741 = vadd.f32 %v1669, %v1740
        %v1742 = vpop.f32.mrf.mxu0
        %v1743 = vadd.f32 %v1674, %v1742
        %1744 = vmatmul.bf16.gmra.mxu0 %v1716
        %v1745 = vpop.f32.mrf.mxu0
        %v1746 = vadd.f32 %v1679, %v1745
        %v1747 = vpop.f32.mrf.mxu0
        %v1748 = vadd.f32 %v1684, %v1747
        %1749 = vdwg.mxu0
        %v1750 = vpack.c.bf16 %v1731, %v1731
        %v1751 = vpack.c.bf16 %v1733, %v1733
        %v1752 = vpack.c.bf16 %v1736, %v1736
        %v1753 = vpack.c.bf16 %v1738, %v1738
        %v1754 = vpack.c.bf16 %v1741, %v1741
        %v1755 = vpack.c.bf16 %v1743, %v1743
        %v1756 = vpack.c.bf16 %v1746, %v1746
        %v1757 = vpack.c.bf16 %v1748, %v1748
        %v1759 = vsel %vm800, %v1627, 0
        %v1762 = vsel %vm804, %v1750, 0
        %1764 = vmatpush.bf16.msra.mxu0 0
        %1765 = vmatpush.bf16.msra.mxu0 0
        %1766 = vmatpush.bf16.msra.mxu0 0
        %1767 = vmatpush.bf16.msra.mxu0 0
        %1768 = vmatpush.bf16.msra.mxu0 0
        %1769 = vmatpush.bf16.msra.mxu0 0
        %1770 = vmatpush.bf16.msra.mxu0 0
        %1771 = vmatpush.bf16.msra.mxu0 %v1762
        %1772 = vmatmul.bf16.gmra.mxu0 %v1759
        %v1773 = vpop.f32.mrf.mxu0
        %v1774 = vadd.f32 %v634, %v1773
        %v1775 = vpop.f32.mrf.mxu0
        %1776 = vdwg.mxu0
        %v1777 = vsel %vm1301, %v1774, -inf
        %1778 = vmax.xlane.f32.xlu0 %v1777
        %v1779 = vpop.xlane.xlu0 %1778
        %v1780 = vsub.f32 %v1774, %v1779
        %v1781 = vmul.f32 %v1780, 1.442695
        %v1782 = vpow.pop %v1781
        %v1783 = vsel %vm1301, %v1782, 0.0
        %1784 = vadd.xlane.f32.xlu0 %v1783
        %v1785 = vpop.xlane.xlu0 %1784
        %v1786 = vrcp.pop %v1785
        %v1787 = vmul.f32 %v1782, %v1786
        %v1788 = vpack.c.bf16 %v1787, %v1787
        %v1790 = vsel %vm1301, %v1788, 0
        %v1793 = vsel %vm1301, %v1754, 0
        %1795 = vmatpush.bf16.xpose.msra.mxu0 0
        %1796 = vmatpush.bf16.xpose.msra.mxu0 0
        %1797 = vmatpush.bf16.xpose.msra.mxu0 0
        %1798 = vmatpush.bf16.xpose.msra.mxu0 0
        %1799 = vmatpush.bf16.xpose.msra.mxu0 0
        %1800 = vmatpush.bf16.xpose.msra.mxu0 0
        %1801 = vmatpush.bf16.xpose.msra.mxu0 0
        %1802 = vmatpush.bf16.xpose.msra.mxu0 %v1793
        %1803 = vmatmul.bf16.gmra.mxu0 %v1790
        %v1804 = vpop.f32.mrf.mxu0
        %v1805 = vadd.f32 0.0, %v1804
        %v1806 = vpop.f32.mrf.mxu0
        %1807 = vdwg.mxu0
        %v1809 = vunpack.c.l.b16 %v1627
        %v1810 = vpack.c.b16 %v1809, %v1809
        %1811 = vrot.lane.b32.xlu0 %v1810, 120
        %v1812 = vpop.permute.xlu0 %1811
        %v1814 = vsel %vm800, %v1812, 0
        %v1817 = vsel %vm804, %v1751, 0
        %1819 = vmatpush.bf16.msra.mxu0 0
        %1820 = vmatpush.bf16.msra.mxu0 0
        %1821 = vmatpush.bf16.msra.mxu0 0
        %1822 = vmatpush.bf16.msra.mxu0 0
        %1823 = vmatpush.bf16.msra.mxu0 0
        %1824 = vmatpush.bf16.msra.mxu0 0
        %1825 = vmatpush.bf16.msra.mxu0 0
        %1826 = vmatpush.bf16.msra.mxu0 %v1817
        %1827 = vmatmul.bf16.gmra.mxu0 %v1814
        %v1828 = vpop.f32.mrf.mxu0
        %v1829 = vadd.f32 %v634, %v1828
        %v1830 = vpop.f32.mrf.mxu0
        %1831 = vdwg.mxu0
        %v1832 = vsel %vm1301, %v1829, -inf
        %1833 = vmax.xlane.f32.xlu0 %v1832
        %v1834 = vpop.xlane.xlu0 %1833
        %v1835 = vsub.f32 %v1829, %v1834
        %v1836 = vmul.f32 %v1835, 1.442695
        %v1837 = vpow.pop %v1836
        %v1838 = vsel %vm1301, %v1837, 0.0
        %1839 = vadd.xlane.f32.xlu0 %v1838
        %v1840 = vpop.xlane.xlu0 %1839
        %v1841 = vrcp.pop %v1840
        %v1842 = vmul.f32 %v1837, %v1841
        %v1843 = vpack.c.bf16 %v1842, %v1842
        %v1845 = vsel %vm1301, %v1843, 0
        %v1848 = vsel %vm1301, %v1755, 0
        %1850 = vmatpush.bf16.xpose.msra.mxu0 0
        %1851 = vmatpush.bf16.xpose.msra.mxu0 0
        %1852 = vmatpush.bf16.xpose.msra.mxu0 0
        %1853 = vmatpush.bf16.xpose.msra.mxu0 0
        %1854 = vmatpush.bf16.xpose.msra.mxu0 0
        %1855 = vmatpush.bf16.xpose.msra.mxu0 0
        %1856 = vmatpush.bf16.xpose.msra.mxu0 0
        %1857 = vmatpush.bf16.xpose.msra.mxu0 %v1848
        %1858 = vmatmul.bf16.gmra.mxu0 %v1845
        %v1859 = vpop.f32.mrf.mxu0
        %v1860 = vadd.f32 0.0, %v1859
        %v1861 = vpop.f32.mrf.mxu0
        %1862 = vdwg.mxu0
        %1863 = vrot.lane.b32.xlu0 %v1810, 112
        %v1864 = vpop.permute.xlu0 %1863
        %v1866 = vsel %vm800, %v1864, 0
        %v1869 = vsel %vm804, %v1752, 0
        %1871 = vmatpush.bf16.msra.mxu0 0
        %1872 = vmatpush.bf16.msra.mxu0 0
        %1873 = vmatpush.bf16.msra.mxu0 0
        %1874 = vmatpush.bf16.msra.mxu0 0
        %1875 = vmatpush.bf16.msra.mxu0 0
        %1876 = vmatpush.bf16.msra.mxu0 0
        %1877 = vmatpush.bf16.msra.mxu0 0
        %1878 = vmatpush.bf16.msra.mxu0 %v1869
        %1879 = vmatmul.bf16.gmra.mxu0 %v1866
        %v1880 = vpop.f32.mrf.mxu0
        %v1881 = vadd.f32 %v634, %v1880
        %v1882 = vpop.f32.mrf.mxu0
        %1883 = vdwg.mxu0
        %v1884 = vsel %vm1301, %v1881, -inf
        %1885 = vmax.xlane.f32.xlu0 %v1884
        %v1886 = vpop.xlane.xlu0 %1885
        %v1887 = vsub.f32 %v1881, %v1886
        %v1888 = vmul.f32 %v1887, 1.442695
        %v1889 = vpow.pop %v1888
        %v1890 = vsel %vm1301, %v1889, 0.0
        %1891 = vadd.xlane.f32.xlu0 %v1890
        %v1892 = vpop.xlane.xlu0 %1891
        %v1893 = vrcp.pop %v1892
        %v1894 = vmul.f32 %v1889, %v1893
        %v1895 = vpack.c.bf16 %v1894, %v1894
        %v1897 = vsel %vm1301, %v1895, 0
        %v1900 = vsel %vm1301, %v1756, 0
        %1902 = vmatpush.bf16.xpose.msra.mxu0 0
        %1903 = vmatpush.bf16.xpose.msra.mxu0 0
        %1904 = vmatpush.bf16.xpose.msra.mxu0 0
        %1905 = vmatpush.bf16.xpose.msra.mxu0 0
        %1906 = vmatpush.bf16.xpose.msra.mxu0 0
        %1907 = vmatpush.bf16.xpose.msra.mxu0 0
        %1908 = vmatpush.bf16.xpose.msra.mxu0 0
        %1909 = vmatpush.bf16.xpose.msra.mxu0 %v1900
        %1910 = vmatmul.bf16.gmra.mxu0 %v1897
        %v1911 = vpop.f32.mrf.mxu0
        %v1912 = vadd.f32 0.0, %v1911
        %v1913 = vpop.f32.mrf.mxu0
        %1914 = vdwg.mxu0
        %1915 = vrot.lane.b32.xlu0 %v1810, 104
        %v1916 = vpop.permute.xlu0 %1915
        %v1918 = vsel %vm800, %v1916, 0
        %v1921 = vsel %vm804, %v1753, 0
        %1923 = vmatpush.bf16.msra.mxu0 0
        %1924 = vmatpush.bf16.msra.mxu0 0
        %1925 = vmatpush.bf16.msra.mxu0 0
        %1926 = vmatpush.bf16.msra.mxu0 0
        %1927 = vmatpush.bf16.msra.mxu0 0
        %1928 = vmatpush.bf16.msra.mxu0 0
        %1929 = vmatpush.bf16.msra.mxu0 0
        %1930 = vmatpush.bf16.msra.mxu0 %v1921
        %1931 = vmatmul.bf16.gmra.mxu0 %v1918
        %v1932 = vpop.f32.mrf.mxu0
        %v1933 = vadd.f32 %v634, %v1932
        %v1934 = vpop.f32.mrf.mxu0
        %1935 = vdwg.mxu0
        %v1936 = vsel %vm1301, %v1933, -inf
        %1937 = vmax.xlane.f32.xlu0 %v1936
        %v1938 = vpop.xlane.xlu0 %1937
        %v1939 = vsub.f32 %v1933, %v1938
        %v1940 = vmul.f32 %v1939, 1.442695
        %v1941 = vpow.pop %v1940
        %v1942 = vsel %vm1301, %v1941, 0.0
        %1943 = vadd.xlane.f32.xlu0 %v1942
        %v1944 = vpop.xlane.xlu0 %1943
        %v1945 = vrcp.pop %v1944
        %v1946 = vmul.f32 %v1941, %v1945
        %v1947 = vpack.c.bf16 %v1946, %v1946
        %v1949 = vsel %vm1301, %v1947, 0
        %v1952 = vsel %vm1301, %v1757, 0
        %1954 = vmatpush.bf16.xpose.msra.mxu0 0
        %1955 = vmatpush.bf16.xpose.msra.mxu0 0
        %1956 = vmatpush.bf16.xpose.msra.mxu0 0
        %1957 = vmatpush.bf16.xpose.msra.mxu0 0
        %1958 = vmatpush.bf16.xpose.msra.mxu0 0
        %1959 = vmatpush.bf16.xpose.msra.mxu0 0
        %1960 = vmatpush.bf16.xpose.msra.mxu0 0
        %1961 = vmatpush.bf16.xpose.msra.mxu0 %v1952
        %1962 = vmatmul.bf16.gmra.mxu0 %v1949
        %v1963 = vpop.f32.mrf.mxu0
        %v1964 = vadd.f32 0.0, %v1963
        %v1965 = vpop.f32.mrf.mxu0
        %1966 = vdwg.mxu0
        %1968 = vrot.lane.b32.xlu0 %v1860, 8
        %v1969 = vpop.permute.xlu0 %1968
        %1972 = vrot.lane.b32.xlu0 %v1912, 16
        %v1973 = vpop.permute.xlu0 %1972
        %1976 = vrot.lane.b32.xlu0 %v1964, 24
        %v1977 = vpop.permute.xlu0 %1976
        %v1979 = vsel %vm800, %v1805, %v1969
        %v1980 = vsel %vm1024, %v1979, %v1973
        %v1981 = vsel %vm1026, %v1980, %v1977
        %v1982 = vpack.c.bf16 %v1981, %v1981
        %s1983 = scalar_lea.vmem %s8, 32
        %v1984 = vld [vmem:[%s1983] sm:$0xf]
        %v1985 = vld [vmem:[%s1983 + $0x4] sm:$0xf]
        %v1986 = vld [vmem:[%s1983 + $0x8] sm:$0xf]
        %v1987 = vld [vmem:[%s1983 + $0xc] sm:$0xf]
        %s1988 = scalar_lea.vmem %s11, 2
        %v1989 = vld [vmem:[%s1988] sm:$0x1]
        %v1991 = vperm.slane %v1989, 0
        %v1997 = vunpack.c.l.b16 %v1984
        %v1998 = vunpack.c.l.b16 %v1985
        %v1999 = vunpack.c.l.b16 %v1986
        %v2000 = vunpack.c.l.b16 %v1987
        %v2001 = vpack.c.b16 %v1998, %v1997
        %v2002 = vpack.c.b16 %v2000, %v1999
        %v2006 = vsel %vm656, %v1982, 0
        %2008 = vmatpush.bf16.msra.mxu0 0
        %2009 = vmatpush.bf16.msra.mxu0 0
        %2010 = vmatpush.bf16.msra.mxu0 0
        %2011 = vmatpush.bf16.msra.mxu0 0
        %2012 = vmatpush.bf16.msra.mxu0 0
        %2013 = vmatpush.bf16.msra.mxu0 0
        %2014 = vmatpush.bf16.msra.mxu0 %v2002
        %2015 = vmatpush.bf16.msra.mxu0 %v2001
        %2016 = vmatmul.bf16.gmra.mxu0 %v2006
        %v2017 = vpop.f32.mrf.mxu0
        %v2018 = vadd.f32 %v1991, %v2017
        %v2019 = vpop.f32.mrf.mxu0
        %2020 = vdwg.mxu0
        %v2021 = vadd.f32 %v1583, %v2018
        %v2022 = vsel %vm656, %v2021, 0.0
        %2023 = vadd.xlane.f32.xlu0 %v2022
        %v2024 = vpop.xlane.xlu0 %2023
        %v2025 = vmul.f32 %v2024, %v1075
        %v2026 = vmul.f32 %v2021, %v2021
        %v2027 = vsel %vm656, %v2026, 0.0
        %2028 = vadd.xlane.f32.xlu0 %v2027
        %v2029 = vpop.xlane.xlu0 %2028
        %v2030 = vmul.f32 %v2029, %v1075
        %v2031 = vmul.f32 %v2025, %v2025
        %v2032 = vsub.f32 %v2030, %v2031
        %v2033 = vmax.f32 %v2032, 0.0
        %v2034 = vsub.f32 %v2021, %v2025
        %v2035 = vadd.f32 %v2033, 1e-05
        %v2036 = vrsqrt.pop %v2035
        %v2037 = vmul.f32 %v2036, %v2035
        %v2038 = vmul.f32 %v2037, %v2036
        %v2039 = vmul.f32 0.5, %v2038
        %v2040 = vsub.f32 1.5, %v2039
        %v2041 = vmul.f32 %v2036, %v2040
        %vm2042 = vweird.f32 %v2035
        %vm2043 = vweird.f32 %v2036
        %vm2044 = vmor %vm2042, %vm2043
        %v2045 = vsel %vm2044, %v2036, %v2041
        %v2046 = vmul.f32 %v2034, %v2045
        %s2047 = scalar_lea.vmem %s12, 2
        %v2048 = vld [vmem:[%s2047] sm:$0x1]
        %v2050 = vperm.slane %v2048, 0
        %v2052 = vmul.f32 %v2046, %v2050
        %s2053 = scalar_lea.vmem %s13, 2
        %v2054 = vld [vmem:[%s2053] sm:$0x1]
        %v2056 = vperm.slane %v2054, 0
        %v2058 = vadd.f32 %v2052, %v2056
        %v2059 = vld [vmem:[%s630] sm:$0xff]
        %v2060 = vld [vmem:[%s630 + $0x8] sm:$0x3]
        %v2061 = vpack.c.bf16 %v2058, %v2058
        %v2062 = vpack.c.bf16 %v2060, %v2059
        %s2063 = scalar_lea.vmem %s6, 48
        %v2064 = vld [vmem:[%s2063] sm:$0xf]
        %v2065 = vld [vmem:[%s2063 + $0x4] sm:$0xf]
        %v2066 = vld [vmem:[%s2063 + $0x8] sm:$0xf]
        %v2067 = vld [vmem:[%s2063 + $0xc] sm:$0xf]
        %s2068 = scalar_lea.vmem %s9, 3
        %v2069 = vld [vmem:[%s2068] sm:$0x1]
        %v2071 = vperm.slane %v2069, 0
        %v2077 = vunpack.c.l.b16 %v2064
        %v2078 = vunpack.c.l.b16 %v2065
        %v2079 = vunpack.c.l.b16 %v2066
        %v2080 = vunpack.c.l.b16 %v2067
        %v2081 = vpack.c.b16 %v2078, %v2077
        %v2082 = vpack.c.b16 %v2080, %v2079
        %v2086 = vsel %vm656, %v2061, 0
        %2088 = vmatpush.bf16.msra.mxu0 0
        %2089 = vmatpush.bf16.msra.mxu0 0
        %2090 = vmatpush.bf16.msra.mxu0 0
        %2091 = vmatpush.bf16.msra.mxu0 0
        %2092 = vmatpush.bf16.msra.mxu0 0
        %2093 = vmatpush.bf16.msra.mxu0 0
        %2094 = vmatpush.bf16.msra.mxu0 %v2082
        %2095 = vmatpush.bf16.msra.mxu0 %v2081
        %2096 = vmatmul.bf16.gmra.mxu0 %v2086
        %v2097 = vpop.f32.mrf.mxu0
        %v2098 = vadd.f32 %v2071, %v2097
        %v2099 = vpop.f32.mrf.mxu0
        %2100 = vdwg.mxu0
        %v2101 = vmul.f32 %v2098, 0.35355338
        %v2102 = vpack.c.bf16 %v2101, %v2101
        %s2103 = scalar_lea.vmem %s7, 96
        %v2104 = vld [vmem:[%s2103] sm:$0xf]
        %v2105 = vld [vmem:[%s2103 + $0x4] sm:$0xf]
        %v2106 = vld [vmem:[%s2103 + $0x8] sm:$0xf]
        %v2107 = vld [vmem:[%s2103 + $0xc] sm:$0xf]
        %v2108 = vld [vmem:[%s2103 + $0x10] sm:$0xf]
        %v2109 = vld [vmem:[%s2103 + $0x14] sm:$0xf]
        %v2110 = vld [vmem:[%s2103 + $0x18] sm:$0xf]
        %v2111 = vld [vmem:[%s2103 + $0x1c] sm:$0xf]
        %s2112 = scalar_lea.vmem %s10, 192
        %v2113 = vld [vmem:[%s2112] sm:$0xff]
        %v2114 = vld [vmem:[%s2112 + $0x8] sm:$0xff]
        %v2115 = vld [vmem:[%s2112 + $0x10] sm:$0xff]
        %v2116 = vld [vmem:[%s2112 + $0x18] sm:$0xff]
        %v2117 = vld [vmem:[%s2112 + $0x20] sm:$0xff]
        %v2118 = vld [vmem:[%s2112 + $0x28] sm:$0xff]
        %v2119 = vld [vmem:[%s2112 + $0x30] sm:$0xff]
        %v2120 = vld [vmem:[%s2112 + $0x38] sm:$0xff]
        %2122 = vset.pattern.permute.xlu0 0
        %2123 = vperm.xlu0 %2122, %v2113
        %v2124 = vpop.permute.xlu0 %2123
        %2127 = vset.pattern.permute.xlu0 0
        %2128 = vperm.xlu0 %2127, %v2114
        %v2129 = vpop.permute.xlu0 %2128
        %2132 = vset.pattern.permute.xlu0 0
        %2133 = vperm.xlu0 %2132, %v2115
        %v2134 = vpop.permute.xlu0 %2133
        %2137 = vset.pattern.permute.xlu0 0
        %2138 = vperm.xlu0 %2137, %v2116
        %v2139 = vpop.permute.xlu0 %2138
        %2142 = vset.pattern.permute.xlu0 0
        %2143 = vperm.xlu0 %2142, %v2117
        %v2144 = vpop.permute.xlu0 %2143
        %2147 = vset.pattern.permute.xlu0 0
        %2148 = vperm.xlu0 %2147, %v2118
        %v2149 = vpop.permute.xlu0 %2148
        %2152 = vset.pattern.permute.xlu0 0
        %2153 = vperm.xlu0 %2152, %v2119
        %v2154 = vpop.permute.xlu0 %2153
        %2157 = vset.pattern.permute.xlu0 0
        %2158 = vperm.xlu0 %2157, %v2120
        %v2159 = vpop.permute.xlu0 %2158
        %v2169 = vunpack.c.l.b16 %v2104
        %v2170 = vunpack.c.l.b16 %v2105
        %v2171 = vunpack.c.l.b16 %v2106
        %v2172 = vunpack.c.l.b16 %v2107
        %v2173 = vunpack.c.l.b16 %v2108
        %v2174 = vunpack.c.l.b16 %v2109
        %v2175 = vunpack.c.l.b16 %v2110
        %v2176 = vunpack.c.l.b16 %v2111
        %v2177 = vpack.c.b16 %v2170, %v2169
        %v2178 = vpack.c.b16 %v2172, %v2171
        %v2179 = vpack.c.b16 %v2174, %v2173
        %v2180 = vpack.c.b16 %v2176, %v2175
        %v2182 = vsel %vm656, %v2177, 0
        %v2185 = vsel %vm656, %v2178, 0
        %v2188 = vsel %vm656, %v2179, 0
        %v2191 = vsel %vm656, %v2180, 0
        %v2194 = vsel %vm656, %v2062, 0
        %2196 = vmatpush.bf16.xpose.msra.mxu0 0
        %2197 = vmatpush.bf16.xpose.msra.mxu0 0
        %2198 = vmatpush.bf16.xpose.msra.mxu0 0
        %2199 = vmatpush.bf16.xpose.msra.mxu0 0
        %2200 = vmatpush.bf16.xpose.msra.mxu0 0
        %2201 = vmatpush.bf16.xpose.msra.mxu0 0
        %2202 = vmatpush.bf16.xpose.msra.mxu0 0
        %2203 = vmatpush.bf16.xpose.msra.mxu0 %v2194
        %2204 = vmatmul.bf16.gmra.mxu0 %v2182
        %v2205 = vpop.f32.mrf.mxu0
        %v2206 = vadd.f32 %v2124, %v2205
        %v2207 = vpop.f32.mrf.mxu0
        %v2208 = vadd.f32 %v2129, %v2207
        %2209 = vmatmul.bf16.gmra.mxu0 %v2185
        %v2210 = vpop.f32.mrf.mxu0
        %v2211 = vadd.f32 %v2134, %v2210
        %v2212 = vpop.f32.mrf.mxu0
        %v2213 = vadd.f32 %v2139, %v2212
        %2214 = vmatmul.bf16.gmra.mxu0 %v2188
        %v2215 = vpop.f32.mrf.mxu0
        %v2216 = vadd.f32 %v2144, %v2215
        %v2217 = vpop.f32.mrf.mxu0
        %v2218 = vadd.f32 %v2149, %v2217
        %2219 = vmatmul.bf16.gmra.mxu0 %v2191
        %v2220 = vpop.f32.mrf.mxu0
        %v2221 = vadd.f32 %v2154, %v2220
        %v2222 = vpop.f32.mrf.mxu0
        %v2223 = vadd.f32 %v2159, %v2222
        %2224 = vdwg.mxu0
        %v2225 = vpack.c.bf16 %v2206, %v2206
        %v2226 = vpack.c.bf16 %v2208, %v2208
        %v2227 = vpack.c.bf16 %v2211, %v2211
        %v2228 = vpack.c.bf16 %v2213, %v2213
        %v2229 = vpack.c.bf16 %v2216, %v2216
        %v2230 = vpack.c.bf16 %v2218, %v2218
        %v2231 = vpack.c.bf16 %v2221, %v2221
        %v2232 = vpack.c.bf16 %v2223, %v2223
        %v2234 = vsel %vm800, %v2102, 0
        %v2237 = vsel %vm804, %v2225, 0
        %2239 = vmatpush.bf16.msra.mxu0 0
        %2240 = vmatpush.bf16.msra.mxu0 0
        %2241 = vmatpush.bf16.msra.mxu0 0
        %2242 = vmatpush.bf16.msra.mxu0 0
        %2243 = vmatpush.bf16.msra.mxu0 0
        %2244 = vmatpush.bf16.msra.mxu0 0
        %2245 = vmatpush.bf16.msra.mxu0 0
        %2246 = vmatpush.bf16.msra.mxu0 %v2237
        %2247 = vmatmul.bf16.gmra.mxu0 %v2234
        %v2248 = vpop.f32.mrf.mxu0
        %v2249 = vadd.f32 %v634, %v2248
        %v2250 = vpop.f32.mrf.mxu0
        %2251 = vdwg.mxu0
        %v2252 = vsel %vm1301, %v2249, -inf
        %2253 = vmax.xlane.f32.xlu0 %v2252
        %v2254 = vpop.xlane.xlu0 %2253
        %v2255 = vsub.f32 %v2249, %v2254
        %v2256 = vmul.f32 %v2255, 1.442695
        %v2257 = vpow.pop %v2256
        %v2258 = vsel %vm1301, %v2257, 0.0
        %2259 = vadd.xlane.f32.xlu0 %v2258
        %v2260 = vpop.xlane.xlu0 %2259
        %v2261 = vrcp.pop %v2260
        %v2262 = vmul.f32 %v2257, %v2261
        %v2263 = vpack.c.bf16 %v2262, %v2262
        %v2265 = vsel %vm1301, %v2263, 0
        %v2268 = vsel %vm1301, %v2229, 0
        %2270 = vmatpush.bf16.xpose.msra.mxu0 0
        %2271 = vmatpush.bf16.xpose.msra.mxu0 0
        %2272 = vmatpush.bf16.xpose.msra.mxu0 0
        %2273 = vmatpush.bf16.xpose.msra.mxu0 0
        %2274 = vmatpush.bf16.xpose.msra.mxu0 0
        %2275 = vmatpush.bf16.xpose.msra.mxu0 0
        %2276 = vmatpush.bf16.xpose.msra.mxu0 0
        %2277 = vmatpush.bf16.xpose.msra.mxu0 %v2268
        %2278 = vmatmul.bf16.gmra.mxu0 %v2265
        %v2279 = vpop.f32.mrf.mxu0
        %v2280 = vadd.f32 0.0, %v2279
        %v2281 = vpop.f32.mrf.mxu0
        %2282 = vdwg.mxu0
        %v2284 = vunpack.c.l.b16 %v2102
        %v2285 = vpack.c.b16 %v2284, %v2284
        %2286 = vrot.lane.b32.xlu0 %v2285, 120
        %v2287 = vpop.permute.xlu0 %2286
        %v2289 = vsel %vm800, %v2287, 0
        %v2292 = vsel %vm804, %v2226, 0
        %2294 = vmatpush.bf16.msra.mxu0 0
        %2295 = vmatpush.bf16.msra.mxu0 0
        %2296 = vmatpush.bf16.msra.mxu0 0
        %2297 = vmatpush.bf16.msra.mxu0 0
        %2298 = vmatpush.bf16.msra.mxu0 0
        %2299 = vmatpush.bf16.msra.mxu0 0
        %2300 = vmatpush.bf16.msra.mxu0 0
        %2301 = vmatpush.bf16.msra.mxu0 %v2292
        %2302 = vmatmul.bf16.gmra.mxu0 %v2289
        %v2303 = vpop.f32.mrf.mxu0
        %v2304 = vadd.f32 %v634, %v2303
        %v2305 = vpop.f32.mrf.mxu0
        %2306 = vdwg.mxu0
        %v2307 = vsel %vm1301, %v2304, -inf
        %2308 = vmax.xlane.f32.xlu0 %v2307
        %v2309 = vpop.xlane.xlu0 %2308
        %v2310 = vsub.f32 %v2304, %v2309
        %v2311 = vmul.f32 %v2310, 1.442695
        %v2312 = vpow.pop %v2311
        %v2313 = vsel %vm1301, %v2312, 0.0
        %2314 = vadd.xlane.f32.xlu0 %v2313
        %v2315 = vpop.xlane.xlu0 %2314
        %v2316 = vrcp.pop %v2315
        %v2317 = vmul.f32 %v2312, %v2316
        %v2318 = vpack.c.bf16 %v2317, %v2317
        %v2320 = vsel %vm1301, %v2318, 0
        %v2323 = vsel %vm1301, %v2230, 0
        %2325 = vmatpush.bf16.xpose.msra.mxu0 0
        %2326 = vmatpush.bf16.xpose.msra.mxu0 0
        %2327 = vmatpush.bf16.xpose.msra.mxu0 0
        %2328 = vmatpush.bf16.xpose.msra.mxu0 0
        %2329 = vmatpush.bf16.xpose.msra.mxu0 0
        %2330 = vmatpush.bf16.xpose.msra.mxu0 0
        %2331 = vmatpush.bf16.xpose.msra.mxu0 0
        %2332 = vmatpush.bf16.xpose.msra.mxu0 %v2323
        %2333 = vmatmul.bf16.gmra.mxu0 %v2320
        %v2334 = vpop.f32.mrf.mxu0
        %v2335 = vadd.f32 0.0, %v2334
        %v2336 = vpop.f32.mrf.mxu0
        %2337 = vdwg.mxu0
        %2338 = vrot.lane.b32.xlu0 %v2285, 112
        %v2339 = vpop.permute.xlu0 %2338
        %v2341 = vsel %vm800, %v2339, 0
        %v2344 = vsel %vm804, %v2227, 0
        %2346 = vmatpush.bf16.msra.mxu0 0
        %2347 = vmatpush.bf16.msra.mxu0 0
        %2348 = vmatpush.bf16.msra.mxu0 0
        %2349 = vmatpush.bf16.msra.mxu0 0
        %2350 = vmatpush.bf16.msra.mxu0 0
        %2351 = vmatpush.bf16.msra.mxu0 0
        %2352 = vmatpush.bf16.msra.mxu0 0
        %2353 = vmatpush.bf16.msra.mxu0 %v2344
        %2354 = vmatmul.bf16.gmra.mxu0 %v2341
        %v2355 = vpop.f32.mrf.mxu0
        %v2356 = vadd.f32 %v634, %v2355
        %v2357 = vpop.f32.mrf.mxu0
        %2358 = vdwg.mxu0
        %v2359 = vsel %vm1301, %v2356, -inf
        %2360 = vmax.xlane.f32.xlu0 %v2359
        %v2361 = vpop.xlane.xlu0 %2360
        %v2362 = vsub.f32 %v2356, %v2361
        %v2363 = vmul.f32 %v2362, 1.442695
        %v2364 = vpow.pop %v2363
        %v2365 = vsel %vm1301, %v2364, 0.0
        %2366 = vadd.xlane.f32.xlu0 %v2365
        %v2367 = vpop.xlane.xlu0 %2366
        %v2368 = vrcp.pop %v2367
        %v2369 = vmul.f32 %v2364, %v2368
        %v2370 = vpack.c.bf16 %v2369, %v2369
        %v2372 = vsel %vm1301, %v2370, 0
        %v2375 = vsel %vm1301, %v2231, 0
        %2377 = vmatpush.bf16.xpose.msra.mxu0 0
        %2378 = vmatpush.bf16.xpose.msra.mxu0 0
        %2379 = vmatpush.bf16.xpose.msra.mxu0 0
        %2380 = vmatpush.bf16.xpose.msra.mxu0 0
        %2381 = vmatpush.bf16.xpose.msra.mxu0 0
        %2382 = vmatpush.bf16.xpose.msra.mxu0 0
        %2383 = vmatpush.bf16.xpose.msra.mxu0 0
        %2384 = vmatpush.bf16.xpose.msra.mxu0 %v2375
        %2385 = vmatmul.bf16.gmra.mxu0 %v2372
        %v2386 = vpop.f32.mrf.mxu0
        %v2387 = vadd.f32 0.0, %v2386
        %v2388 = vpop.f32.mrf.mxu0
        %2389 = vdwg.mxu0
        %2390 = vrot.lane.b32.xlu0 %v2285, 104
        %v2391 = vpop.permute.xlu0 %2390
        %v2393 = vsel %vm800, %v2391, 0
        %v2396 = vsel %vm804, %v2228, 0
        %2398 = vmatpush.bf16.msra.mxu0 0
        %2399 = vmatpush.bf16.msra.mxu0 0
        %2400 = vmatpush.bf16.msra.mxu0 0
        %2401 = vmatpush.bf16.msra.mxu0 0
        %2402 = vmatpush.bf16.msra.mxu0 0
        %2403 = vmatpush.bf16.msra.mxu0 0
        %2404 = vmatpush.bf16.msra.mxu0 0
        %2405 = vmatpush.bf16.msra.mxu0 %v2396
        %2406 = vmatmul.bf16.gmra.mxu0 %v2393
        %v2407 = vpop.f32.mrf.mxu0
        %v2408 = vadd.f32 %v634, %v2407
        %v2409 = vpop.f32.mrf.mxu0
        %2410 = vdwg.mxu0
        %v2411 = vsel %vm1301, %v2408, -inf
        %2412 = vmax.xlane.f32.xlu0 %v2411
        %v2413 = vpop.xlane.xlu0 %2412
        %v2414 = vsub.f32 %v2408, %v2413
        %v2415 = vmul.f32 %v2414, 1.442695
        %v2416 = vpow.pop %v2415
        %v2417 = vsel %vm1301, %v2416, 0.0
        %2418 = vadd.xlane.f32.xlu0 %v2417
        %v2419 = vpop.xlane.xlu0 %2418
        %v2420 = vrcp.pop %v2419
        %v2421 = vmul.f32 %v2416, %v2420
        %v2422 = vpack.c.bf16 %v2421, %v2421
        %v2424 = vsel %vm1301, %v2422, 0
        %v2427 = vsel %vm1301, %v2232, 0
        %2429 = vmatpush.bf16.xpose.msra.mxu0 0
        %2430 = vmatpush.bf16.xpose.msra.mxu0 0
        %2431 = vmatpush.bf16.xpose.msra.mxu0 0
        %2432 = vmatpush.bf16.xpose.msra.mxu0 0
        %2433 = vmatpush.bf16.xpose.msra.mxu0 0
        %2434 = vmatpush.bf16.xpose.msra.mxu0 0
        %2435 = vmatpush.bf16.xpose.msra.mxu0 0
        %2436 = vmatpush.bf16.xpose.msra.mxu0 %v2427
        %2437 = vmatmul.bf16.gmra.mxu0 %v2424
        %v2438 = vpop.f32.mrf.mxu0
        %v2439 = vadd.f32 0.0, %v2438
        %v2440 = vpop.f32.mrf.mxu0
        %2441 = vdwg.mxu0
        %2443 = vrot.lane.b32.xlu0 %v2335, 8
        %v2444 = vpop.permute.xlu0 %2443
        %2447 = vrot.lane.b32.xlu0 %v2387, 16
        %v2448 = vpop.permute.xlu0 %2447
        %2451 = vrot.lane.b32.xlu0 %v2439, 24
        %v2452 = vpop.permute.xlu0 %2451
        %v2454 = vsel %vm800, %v2280, %v2444
        %v2455 = vsel %vm1024, %v2454, %v2448
        %v2456 = vsel %vm1026, %v2455, %v2452
        %v2457 = vpack.c.bf16 %v2456, %v2456
        %s2458 = scalar_lea.vmem %s8, 48
        %v2459 = vld [vmem:[%s2458] sm:$0xf]
        %v2460 = vld [vmem:[%s2458 + $0x4] sm:$0xf]
        %v2461 = vld [vmem:[%s2458 + $0x8] sm:$0xf]
        %v2462 = vld [vmem:[%s2458 + $0xc] sm:$0xf]
        %s2463 = scalar_lea.vmem %s11, 3
        %v2464 = vld [vmem:[%s2463] sm:$0x1]
        %v2466 = vperm.slane %v2464, 0
        %v2472 = vunpack.c.l.b16 %v2459
        %v2473 = vunpack.c.l.b16 %v2460
        %v2474 = vunpack.c.l.b16 %v2461
        %v2475 = vunpack.c.l.b16 %v2462
        %v2476 = vpack.c.b16 %v2473, %v2472
        %v2477 = vpack.c.b16 %v2475, %v2474
        %v2481 = vsel %vm656, %v2457, 0
        %2483 = vmatpush.bf16.msra.mxu0 0
        %2484 = vmatpush.bf16.msra.mxu0 0
        %2485 = vmatpush.bf16.msra.mxu0 0
        %2486 = vmatpush.bf16.msra.mxu0 0
        %2487 = vmatpush.bf16.msra.mxu0 0
        %2488 = vmatpush.bf16.msra.mxu0 0
        %2489 = vmatpush.bf16.msra.mxu0 %v2477
        %2490 = vmatpush.bf16.msra.mxu0 %v2476
        %2491 = vmatmul.bf16.gmra.mxu0 %v2481
        %v2492 = vpop.f32.mrf.mxu0
        %v2493 = vadd.f32 %v2466, %v2492
        %v2494 = vpop.f32.mrf.mxu0
        %2495 = vdwg.mxu0
        %v2496 = vadd.f32 %v2058, %v2493
        %v2497 = vsel %vm656, %v2496, 0.0
        %2498 = vadd.xlane.f32.xlu0 %v2497
        %v2499 = vpop.xlane.xlu0 %2498
        %v2500 = vmul.f32 %v2499, %v1075
        %v2501 = vmul.f32 %v2496, %v2496
        %v2502 = vsel %vm656, %v2501, 0.0
        %2503 = vadd.xlane.f32.xlu0 %v2502
        %v2504 = vpop.xlane.xlu0 %2503
        %v2505 = vmul.f32 %v2504, %v1075
        %v2506 = vmul.f32 %v2500, %v2500
        %v2507 = vsub.f32 %v2505, %v2506
        %v2508 = vmax.f32 %v2507, 0.0
        %v2509 = vsub.f32 %v2496, %v2500
        %v2510 = vadd.f32 %v2508, 1e-05
        %v2511 = vrsqrt.pop %v2510
        %v2512 = vmul.f32 %v2511, %v2510
        %v2513 = vmul.f32 %v2512, %v2511
        %v2514 = vmul.f32 0.5, %v2513
        %v2515 = vsub.f32 1.5, %v2514
        %v2516 = vmul.f32 %v2511, %v2515
        %vm2517 = vweird.f32 %v2510
        %vm2518 = vweird.f32 %v2511
        %vm2519 = vmor %vm2517, %vm2518
        %v2520 = vsel %vm2519, %v2511, %v2516
        %v2521 = vmul.f32 %v2509, %v2520
        %s2522 = scalar_lea.vmem %s12, 3
        %v2523 = vld [vmem:[%s2522] sm:$0x1]
        %v2525 = vperm.slane %v2523, 0
        %v2527 = vmul.f32 %v2521, %v2525
        %s2528 = scalar_lea.vmem %s13, 3
        %v2529 = vld [vmem:[%s2528] sm:$0x1]
        %v2531 = vperm.slane %v2529, 0
        %v2533 = vadd.f32 %v2527, %v2531
        %v2534 = vpack.c.bf16 %v2533, %v2533
        %v2535 = vld [vmem:[%s14] sm:$0xf]
        %v2536 = vld [vmem:[%s14 + $0x4] sm:$0xf]
        %v2537 = vld [vmem:[%s14 + $0x8] sm:$0xf]
        %v2538 = vld [vmem:[%s14 + $0xc] sm:$0xf]
        %v2539 = vld [vmem:[%s15] sm:$0x1]
        %v2541 = vperm.slane %v2539, 0
        %v2547 = vunpack.c.l.b16 %v2535
        %v2548 = vunpack.c.l.b16 %v2536
        %v2549 = vunpack.c.l.b16 %v2537
        %v2550 = vunpack.c.l.b16 %v2538
        %v2551 = vpack.c.b16 %v2548, %v2547
        %v2552 = vpack.c.b16 %v2550, %v2549
        %v2556 = vsel %vm656, %v2534, 0
        %2558 = vmatpush.bf16.msra.mxu0 0
        %2559 = vmatpush.bf16.msra.mxu0 0
        %2560 = vmatpush.bf16.msra.mxu0 0
        %2561 = vmatpush.bf16.msra.mxu0 0
        %2562 = vmatpush.bf16.msra.mxu0 0
        %2563 = vmatpush.bf16.msra.mxu0 0
        %2564 = vmatpush.bf16.msra.mxu0 %v2552
        %2565 = vmatpush.bf16.msra.mxu0 %v2551
        %2566 = vmatmul.bf16.gmra.mxu0 %v2556
        %v2567 = vpop.f32.mrf.mxu0
        %v2568 = vadd.f32 %v2541, %v2567
        %v2569 = vpop.f32.mrf.mxu0
        %2570 = vdwg.mxu0
        %v2571 = vmax.f32 %v2568, 0.0
        %v2572 = vpack.c.bf16 %v2571, %v2571
        %v2573 = vld [vmem:[%s16] sm:$0xf]
        %v2574 = vld [vmem:[%s16 + $0x4] sm:$0xf]
        %v2575 = vld [vmem:[%s16 + $0x8] sm:$0xf]
        %v2576 = vld [vmem:[%s16 + $0xc] sm:$0xf]
        %v2577 = vld [vmem:[%s16 + $0x10] sm:$0xf]
        %v2578 = vld [vmem:[%s16 + $0x14] sm:$0xf]
        %v2579 = vld [vmem:[%s16 + $0x18] sm:$0xf]
        %v2580 = vld [vmem:[%s16 + $0x1c] sm:$0xf]
        %v2581 = vld [vmem:[%s17] sm:$0x1]
        %v2583 = vperm.slane %v2581, 0
        %v2593 = vunpack.c.l.b16 %v2573
        %v2594 = vunpack.c.l.b16 %v2574
        %v2595 = vunpack.c.l.b16 %v2575
        %v2596 = vunpack.c.l.b16 %v2576
        %v2597 = vunpack.c.l.b16 %v2577
        %v2598 = vunpack.c.l.b16 %v2578
        %v2599 = vunpack.c.l.b16 %v2579
        %v2600 = vunpack.c.l.b16 %v2580
        %v2601 = vpack.c.b16 %v2594, %v2593
        %v2602 = vpack.c.b16 %v2596, %v2595
        %v2603 = vpack.c.b16 %v2598, %v2597
        %v2604 = vpack.c.b16 %v2600, %v2599
        %vm2609 = vcmask 523264
        %v2611 = vsel %vm2609, %v2572, 0
        %2613 = vmatpush.bf16.msra.mxu0 0
        %2614 = vmatpush.bf16.msra.mxu0 0
        %2615 = vmatpush.bf16.msra.mxu0 0
        %2616 = vmatpush.bf16.msra.mxu0 0
        %2617 = vmatpush.bf16.msra.mxu0 %v2604
        %2618 = vmatpush.bf16.msra.mxu0 %v2603
        %2619 = vmatpush.bf16.msra.mxu0 %v2602
        %2620 = vmatpush.bf16.msra.mxu0 %v2601
        %2621 = vmatmul.bf16.gmra.mxu0 %v2611
        %v2622 = vpop.f32.mrf.mxu0
        %v2623 = vadd.f32 %v2583, %v2622
        %v2624 = vpop.f32.mrf.mxu0
        %2625 = vdwg.mxu0
        %v2626 = vadd.f32 %v2533, %v2623
        %v2627 = vsel %vm656, %v2626, 0.0
        %2628 = vadd.xlane.f32.xlu0 %v2627
        %v2629 = vpop.xlane.xlu0 %2628
        %v2630 = vmul.f32 %v2629, %v1075
        %v2631 = vmul.f32 %v2626, %v2626
        %v2632 = vsel %vm656, %v2631, 0.0
        %2633 = vadd.xlane.f32.xlu0 %v2632
        %v2634 = vpop.xlane.xlu0 %2633
        %v2635 = vmul.f32 %v2634, %v1075
        %v2636 = vmul.f32 %v2630, %v2630
        %v2637 = vsub.f32 %v2635, %v2636
        %v2638 = vmax.f32 %v2637, 0.0
        %v2639 = vsub.f32 %v2626, %v2630
        %v2640 = vadd.f32 %v2638, 1e-05
        %v2641 = vrsqrt.pop %v2640
        %v2642 = vmul.f32 %v2641, %v2640
        %v2643 = vmul.f32 %v2642, %v2641
        %v2644 = vmul.f32 0.5, %v2643
        %v2645 = vsub.f32 1.5, %v2644
        %v2646 = vmul.f32 %v2641, %v2645
        %vm2647 = vweird.f32 %v2640
        %vm2648 = vweird.f32 %v2641
        %vm2649 = vmor %vm2647, %vm2648
        %v2650 = vsel %vm2649, %v2641, %v2646
        %v2651 = vmul.f32 %v2639, %v2650
        %s2652 = scalar_lea.vmem %s12, 4
        %v2653 = vld [vmem:[%s2652] sm:$0x1]
        %v2655 = vperm.slane %v2653, 0
        %v2657 = vmul.f32 %v2651, %v2655
        %s2658 = scalar_lea.vmem %s13, 4
        %v2659 = vld [vmem:[%s2658] sm:$0x1]
        %v2661 = vperm.slane %v2659, 0
        %v2663 = vadd.f32 %v2657, %v2661
        %2664 = vst.msk [vmem:[%s611] sm:$0xff] %vm656, %v2663
        %s2665 = sand.u32 %s438, 1
        %s2666 = scalar_lea.sflag [#allocation3], %s2665
        %s2667 = sand.u32 %s438, 1
        %s2668 = smul.addr %s2667, 8
        %s2669 = scalar_lea.vmem [#allocation2], %s2668
        // Predicated region
        $region93: #{tpu_custom_call.1} parent=91 // pred_check
          %p2670 = pneg %p448
        $region94: #{tpu_custom_call.1} parent=91 // pred_check_branch
          %2672 = sbr.rel (%p2670) target = $region96
        $region95: #{tpu_custom_call.1} parent=91 // pred_region
          %2674 = vsyncadd %s2666, 0
          %s2675 = smul.addr %s32, 8
          %s2676 = scalar_lea.hbm %s18, %s2675
          %s2678 = sshll.u32 %s2669, 4
          %s2679 = int_to_ptr.vmem [resolvable:$true] %s2678
          %s2680 = sshll.u32 %s2676, 4
          %s2681 = int_to_ptr.hbm [resolvable:$true] %s2680
          %2683 = dma.vmem_to_hbm [thread:$0]  %s2679, 128, %s2681, %s2666
        $region96: #{tpu_custom_call.1} parent=91 // pred_fallthru
          _
      $region92: #{tpu_custom_call.1} parent=5 // pred_fallthru
        _
      %p2684 = scmp.le.s32.totalorder 2, %s27
      // Predicated region
      $region97: #{tpu_custom_call.1} parent=5 // pred_check
        %p2685 = pneg %p2684
      $region98: #{tpu_custom_call.1} parent=5 // pred_check_branch
        %2687 = sbr.rel (%p2685) target = $region100
      $region99: #{tpu_custom_call.1} parent=5 // pred_region
        %s2688 = ssub.s32 %s27, 2
        // Predicated region
        $region101: #{tpu_custom_call.1} parent=99 // pred_check
          %p2689 = pneg %p454
        $region102: #{tpu_custom_call.1} parent=99 // pred_check_branch
          %2691 = sbr.rel (%p2689) target = $region104
        $region103: #{tpu_custom_call.1} parent=99 // pred_region
          %s2692 = sand.u32 %s439, 1
          %s2693 = scalar_lea.sflag [#allocation3], %s2692
          %s2694 = sand.u32 %s439, 1
          %s2695 = smul.addr %s2694, 8
          %s2696 = scalar_lea.vmem [#allocation2], %s2695
          %2698 = dma.done %s2693, 128
        $region104: #{tpu_custom_call.1} parent=99 // pred_fallthru
          _
      $region100: #{tpu_custom_call.1} parent=5 // pred_fallthru
        _
    $region6: #{tpu_custom_call.1} parent=1 // loop_footer
      %s31 = sadd.s32 1, %s27
    $region7: #{tpu_custom_call.1} parent=1 // loop_footer_branch
      %26 = sbr.rel target = $region3
    $region8: #{tpu_custom_call.1} parent=1 // loop_exit
      _
    %2699 = vsyncpa [#allocation3], 1
    %s2700 = scalar_lea.sflag [#allocation3], 1
    %2701 = vsyncpa %s2700, 1

</llo_original>
